<compile_context>
chip_gen: v6e
topology: v6e:2x2x1
jax: 0.10.0
libtpu: 0.0.40
codegen_flags: <defaults>
</compile_context>

<pallas_src>
import functools
import math

import jax
import jax.numpy as jnp
from jax.experimental import pallas as pl
from jax.experimental.pallas import tpu as pltpu


def _layernorm(z, gamma, beta, eps=1e-5):
    mean = jnp.mean(z, axis=-1, keepdims=True)
    var = jnp.mean(jnp.square(z - mean), axis=-1, keepdims=True)
    return (z - mean) * jax.lax.rsqrt(var + eps) * gamma + beta


def encoder_kernel(
    x_ref,
    wq_ref, bq_ref, wk_ref, bk_ref, wv_ref, bv_ref, wo_ref, bo_ref,
    ln1_g_ref, ln1_b_ref,
    w1_ref, b1_ref, w2_ref, b2_ref,
    ln2_g_ref, ln2_b_ref,
    o_ref,
    *, n_heads, dim_q, dim_v, chunk_size, d_ff_tile,
):
    x = x_ref[...]                              # (rows, d_model) f32
    rows, d_model = x.shape
    n_chunks = rows // chunk_size

    # ---------------- Multi-head "chunk" attention ----------------
    # QKV projections over all heads in one MXU matmul each.  The
    # 1/sqrt(chunk_size) score scale is already folded into wq/bq host-side.
    q_all = jnp.dot(x, wq_ref[...], preferred_element_type=jnp.float32) + bq_ref[...]
    k_all = jnp.dot(x, wk_ref[...], preferred_element_type=jnp.float32) + bk_ref[...]
    v_all = jnp.dot(x, wv_ref[...], preferred_element_type=jnp.float32) + bv_ref[...]

    # Accumulate each head's contribution straight through its slice of Wo
    # (avoids concatenating (rows, dim_v) slabs along lanes).
    mha = jnp.zeros((rows, d_model), jnp.float32) + bo_ref[...]
    for h in range(n_heads):
        qh = q_all[:, h * dim_q:(h + 1) * dim_q].reshape(n_chunks, chunk_size, dim_q)
        kh = k_all[:, h * dim_q:(h + 1) * dim_q].reshape(n_chunks, chunk_size, dim_q)
        vh = v_all[:, h * dim_v:(h + 1) * dim_v].reshape(n_chunks, chunk_size, dim_v)

        # Mask-free per-chunk attention (block-diagonal over the sequence).
        s = jnp.einsum("cqd,ckd->cqk", qh, kh, preferred_element_type=jnp.float32)
        s = s - jnp.max(s, axis=-1, keepdims=True)
        p = jnp.exp(s)
        inv = pl.reciprocal(jnp.sum(p, axis=-1, keepdims=True), approx=False)
        p = p * inv
        oh = jnp.einsum("cqk,ckd->cqd", p, vh, preferred_element_type=jnp.float32)
        oh = oh.reshape(rows, dim_v)
        mha = mha + jnp.dot(oh, wo_ref[h * dim_v:(h + 1) * dim_v, :],
                            preferred_element_type=jnp.float32)

    # dropout == identity (eval mode); residual + LayerNorm1
    y = _layernorm(mha + x, ln1_g_ref[...], ln1_b_ref[...])

    # ---------------- Position-wise feed forward ----------------
    # bf16 weights, f32 accumulation; d_ff reduction tiled so the live hidden
    # is only (rows, d_ff_tile).
    y_lo = y.astype(w1_ref.dtype)
    d_ff = w1_ref.shape[-1]
    n_ff_tiles = d_ff // d_ff_tile

    def ff_body(t, acc):
        c0 = pl.multiple_of(t * d_ff_tile, d_ff_tile)
        w1c = w1_ref[:, pl.ds(c0, d_ff_tile)]                     # (D, tile) bf16
        b1c = b1_ref[:, pl.ds(c0, d_ff_tile)]                     # (1, tile) f32
        hdn = jnp.dot(y_lo, w1c, preferred_element_type=jnp.float32) + b1c
        hdn = jnp.maximum(hdn, 0.0).astype(w2_ref.dtype)
        w2c = w2_ref[pl.ds(c0, d_ff_tile), :]                     # (tile, D) bf16
        return acc + jnp.dot(hdn, w2c, preferred_element_type=jnp.float32)

    ff = jnp.zeros((rows, d_model), jnp.float32) + b2_ref[...]
    ff = jax.lax.fori_loop(0, n_ff_tiles, ff_body, ff, unroll=True)

    # residual + LayerNorm2
    out = _layernorm(ff + y, ln2_g_ref[...], ln2_b_ref[...])
    o_ref[...] = out.astype(o_ref.dtype)


PARAM_ORDER = (
    "wq", "bq", "wk", "bk", "wv", "bv", "wo", "bo",
    "ln1_g", "ln1_b", "w1", "b1", "w2", "b2", "ln2_g", "ln2_b",
)


def encoder_forward(x, params, *, n_heads, dim_q, dim_v, chunk_size,
                    d_ff_tile=512, row_tile=None,
                    ffn_weight_dtype=jnp.bfloat16):
    B, K, D = x.shape
    assert K % chunk_size == 0, "sequence length must be a multiple of chunk_size"
    M = B * K
    if row_tile is None:
        # Single grid step: fills MXU rows with all B*K tokens and pays the
        # pipeline-step overhead once.  On v7x set row_tile=M//2 to give each
        # of the two TensorCores a shard via the "parallel" grid axis.
        row_tile = M
    assert M % row_tile == 0 and row_tile % chunk_size == 0

    # Host-side (free) parameter preprocessing.
    scale = 1.0 / math.sqrt(chunk_size)
    p = dict(params)
    p["wq"] = p["wq"] * scale          # fold attention scale into Q projection
    p["bq"] = p["bq"] * scale
    p["w1"] = p["w1"].astype(ffn_weight_dtype)   # big FFN weights -> bf16
    p["w2"] = p["w2"].astype(ffn_weight_dtype)

    d_ff = p["w1"].shape[-1]
    assert d_ff % d_ff_tile == 0

    x2 = x.reshape(M, D)

    kernel = functools.partial(
        encoder_kernel, n_heads=n_heads, dim_q=dim_q, dim_v=dim_v,
        chunk_size=chunk_size, d_ff_tile=d_ff_tile)

    in_specs = [pl.BlockSpec((row_tile, D), lambda r: (r, 0))]
    args = [x2]
    for name in PARAM_ORDER:
        w = p[name]
        in_specs.append(pl.BlockSpec(w.shape, lambda r, n=w.ndim: (0,) * n))
        args.append(w)

    out2 = pl.pallas_call(
        kernel,
        out_shape=jax.ShapeDtypeStruct((M, D), x.dtype),
        grid=(M // row_tile,),
        in_specs=in_specs,
        out_specs=pl.BlockSpec((row_tile, D), lambda r: (r, 0)),
        compiler_params=pltpu.CompilerParams(
            dimension_semantics=("parallel",),
            vmem_limit_bytes=32 * 1024 * 1024,
        ),
    )(*args)
    return out2.reshape(B, K, D)


def encoder_reference(x, p, *, n_heads, dim_q, dim_v, chunk_size,
                      ffn_weight_dtype=None):
    """Pure-JAX reference implementing the chunked attention via reshapes.

    If ffn_weight_dtype is set, the FFN matmuls mirror the kernel's
    low-precision path (bf16 inputs, f32 accumulation) for a tight check.
    """
    def layernorm(z, g, b):
        m = z.mean(-1, keepdims=True)
        v_ = ((z - m) ** 2).mean(-1, keepdims=True)
        return (z - m) / jnp.sqrt(v_ + 1e-5) * g + b

    B, K, _ = x.shape
    n_chunk = K // chunk_size
    q_all = x @ p["wq"] + p["bq"]
    k_all = x @ p["wk"] + p["bk"]
    v_all = x @ p["wv"] + p["bv"]
    heads = []
    for i in range(n_heads):
        qi = q_all[..., i * dim_q:(i + 1) * dim_q].reshape(B, n_chunk, chunk_size, dim_q)
        ki = k_all[..., i * dim_q:(i + 1) * dim_q].reshape(B, n_chunk, chunk_size, dim_q)
        vi = v_all[..., i * dim_v:(i + 1) * dim_v].reshape(B, n_chunk, chunk_size, dim_v)
        s = jnp.einsum("bncd,bnkd->bnck", qi, ki) / math.sqrt(chunk_size)
        pr = jax.nn.softmax(s, axis=-1)
        heads.append(jnp.einsum("bnck,bnkd->bncd", pr, vi).reshape(B, K, dim_v))
    attn = jnp.concatenate(heads, -1)
    mha = attn @ p["wo"] + p["bo"]
    y = layernorm(mha + x, p["ln1_g"], p["ln1_b"])
    if ffn_weight_dtype is None:
        h_ = jnp.maximum(y @ p["w1"] + p["b1"], 0.0)
        ff = h_ @ p["w2"] + p["b2"]
    else:
        w1 = p["w1"].astype(ffn_weight_dtype)
        w2 = p["w2"].astype(ffn_weight_dtype)
        h_ = jnp.maximum(
            jnp.dot(y.astype(ffn_weight_dtype), w1,
                    preferred_element_type=jnp.float32) + p["b1"], 0.0)
        ff = jnp.dot(h_.astype(ffn_weight_dtype), w2,
                     preferred_element_type=jnp.float32) + p["b2"]
    return layernorm(ff + y, p["ln2_g"], p["ln2_b"])


if __name__ == "__main__":
    # Small shapes consistent with Encoder(d_model=32, q=8, v=8, h=4),
    # PositionwiseFeedForward default d_ff=2048, chunk_size=8 (K=16 -> 2 chunks).
    B, K, d_model = 2, 16, 32
    dim_q = dim_v = 8
    n_heads = 4
    chunk_size = 8
    d_ff = 2048

    key = jax.random.PRNGKey(0)
    ks = jax.random.split(key, 18)

    def init(k, shape, scale=0.1):
        return (scale * jax.random.normal(k, shape)).astype(jnp.float32)

    params = {
        "wq": init(ks[0], (d_model, dim_q * n_heads)),
        "bq": init(ks[1], (1, dim_q * n_heads)),
        "wk": init(ks[2], (d_model, dim_q * n_heads)),
        "bk": init(ks[3], (1, dim_q * n_heads)),
        "wv": init(ks[4], (d_model, dim_v * n_heads)),
        "bv": init(ks[5], (1, dim_v * n_heads)),
        "wo": init(ks[6], (dim_v * n_heads, d_model)),
        "bo": init(ks[7], (1, d_model)),
        "ln1_g": (1.0 + 0.1 * jax.random.normal(ks[8], (1, d_model))).astype(jnp.float32),
        "ln1_b": init(ks[9], (1, d_model)),
        "w1": init(ks[10], (d_model, d_ff)),
        "b1": init(ks[11], (1, d_ff)),
        "w2": init(ks[12], (d_ff, d_model)),
        "b2": init(ks[13], (1, d_model)),
        "ln2_g": (1.0 + 0.1 * jax.random.normal(ks[14], (1, d_model))).astype(jnp.float32),
        "ln2_b": init(ks[15], (1, d_model)),
    }
    x = jax.random.normal(ks[16], (B, K, d_model), dtype=jnp.float32)

    out = encoder_forward(x, params, n_heads=n_heads, dim_q=dim_q,
                          dim_v=dim_v, chunk_size=chunk_size)
    out = jax.block_until_ready(out)
    assert out.shape == (B, K, d_model), out.shape

    # Tight check against a reference that mirrors the kernel's bf16 FFN path.
    ref_mirror = encoder_reference(x, params, n_heads=n_heads, dim_q=dim_q,
                                   dim_v=dim_v, chunk_size=chunk_size,
                                   ffn_weight_dtype=jnp.bfloat16)
    assert jnp.allclose(out, ref_mirror, atol=2e-3, rtol=2e-3), \
        float(jnp.max(jnp.abs(out - ref_mirror)))

    # Looser check against the pure-f32 reference (original module numerics).
    ref_f32 = encoder_reference(x, params, n_heads=n_heads, dim_q=dim_q,
                                dim_v=dim_v, chunk_size=chunk_size)
    assert jnp.allclose(out, ref_f32, atol=5e-2, rtol=5e-2), \
        float(jnp.max(jnp.abs(out - ref_f32)))

    print("KERNEL_OK")
</pallas_src>

<mosaic_0001>
module attributes {stable_mosaic.version = 11 : i64} {
  func.func @encoder_kernel(%arg0: i32, %arg1: memref<32x32xf32, #tpu.memory_space<vmem>>, %arg2: memref<32x32xf32, #tpu.memory_space<vmem>>, %arg3: memref<1x32xf32, #tpu.memory_space<vmem>>, %arg4: memref<32x32xf32, #tpu.memory_space<vmem>>, %arg5: memref<1x32xf32, #tpu.memory_space<vmem>>, %arg6: memref<32x32xf32, #tpu.memory_space<vmem>>, %arg7: memref<1x32xf32, #tpu.memory_space<vmem>>, %arg8: memref<32x32xf32, #tpu.memory_space<vmem>>, %arg9: memref<1x32xf32, #tpu.memory_space<vmem>>, %arg10: memref<1x32xf32, #tpu.memory_space<vmem>>, %arg11: memref<1x32xf32, #tpu.memory_space<vmem>>, %arg12: memref<32x2048xbf16, #tpu.memory_space<vmem>>, %arg13: memref<1x2048xf32, #tpu.memory_space<vmem>>, %arg14: memref<2048x32xbf16, #tpu.memory_space<vmem>>, %arg15: memref<1x32xf32, #tpu.memory_space<vmem>>, %arg16: memref<1x32xf32, #tpu.memory_space<vmem>>, %arg17: memref<1x32xf32, #tpu.memory_space<vmem>>, %arg18: memref<32x32xf32, #tpu.memory_space<vmem>>) attributes {dimension_semantics = [#tpu.dimension_semantics<parallel>], iteration_bounds = array<i64: 1>, scalar_prefetch = 0 : i64, scratch_operands = 0 : i64, tpu.core_type = #tpu.core_type<tc>, window_params = [{transform_indices = @transform_0, window_bounds = array<i64: 32, 32>}, {pipeline_mode = #tpu.pipeline_mode<synchronous>, transform_indices = @transform_1, window_bounds = array<i64: 32, 32>}, {pipeline_mode = #tpu.pipeline_mode<synchronous>, transform_indices = @transform_2, window_bounds = array<i64: 1, 32>}, {pipeline_mode = #tpu.pipeline_mode<synchronous>, transform_indices = @transform_3, window_bounds = array<i64: 32, 32>}, {pipeline_mode = #tpu.pipeline_mode<synchronous>, transform_indices = @transform_4, window_bounds = array<i64: 1, 32>}, {pipeline_mode = #tpu.pipeline_mode<synchronous>, transform_indices = @transform_5, window_bounds = array<i64: 32, 32>}, {pipeline_mode = #tpu.pipeline_mode<synchronous>, transform_indices = @transform_6, window_bounds = array<i64: 1, 32>}, {pipeline_mode = #tpu.pipeline_mode<synchronous>, transform_indices = @transform_7, window_bounds = array<i64: 32, 32>}, {pipeline_mode = #tpu.pipeline_mode<synchronous>, transform_indices = @transform_8, window_bounds = array<i64: 1, 32>}, {pipeline_mode = #tpu.pipeline_mode<synchronous>, transform_indices = @transform_9, window_bounds = array<i64: 1, 32>}, {pipeline_mode = #tpu.pipeline_mode<synchronous>, transform_indices = @transform_10, window_bounds = array<i64: 1, 32>}, {pipeline_mode = #tpu.pipeline_mode<synchronous>, transform_indices = @transform_11, window_bounds = array<i64: 32, 2048>}, {pipeline_mode = #tpu.pipeline_mode<synchronous>, transform_indices = @transform_12, window_bounds = array<i64: 1, 2048>}, {pipeline_mode = #tpu.pipeline_mode<synchronous>, transform_indices = @transform_13, window_bounds = array<i64: 2048, 32>}, {pipeline_mode = #tpu.pipeline_mode<synchronous>, transform_indices = @transform_14, window_bounds = array<i64: 1, 32>}, {pipeline_mode = #tpu.pipeline_mode<synchronous>, transform_indices = @transform_15, window_bounds = array<i64: 1, 32>}, {pipeline_mode = #tpu.pipeline_mode<synchronous>, transform_indices = @transform_16, window_bounds = array<i64: 1, 32>}, {transform_indices = @transform_17, window_bounds = array<i64: 32, 32>}]} {
    %c0 = arith.constant 0 : index
    %c0_0 = arith.constant 0 : index
    %0 = vector.load %arg1[%c0, %c0_0] : memref<32x32xf32, #tpu.memory_space<vmem>>, vector<32x32xf32>
    %c0_1 = arith.constant 0 : index
    %c0_2 = arith.constant 0 : index
    %1 = vector.load %arg2[%c0_1, %c0_2] : memref<32x32xf32, #tpu.memory_space<vmem>>, vector<32x32xf32>
    %cst = arith.constant dense<0.000000e+00> : vector<32x32xf32>
    %2 = tpu.matmul %0, %1, %cst {dimension_numbers = #tpu.dot_dimension_numbers<[1], [0], [0], [1], [0, 0, 1, 1], [], []>} : vector<32x32xf32>, vector<32x32xf32>, vector<32x32xf32> -> vector<32x32xf32>
    %c0_3 = arith.constant 0 : index
    %c0_4 = arith.constant 0 : index
    %3 = vector.load %arg3[%c0_3, %c0_4] : memref<1x32xf32, #tpu.memory_space<vmem>>, vector<1x32xf32>
    %4 = vector.broadcast %3 : vector<1x32xf32> to vector<32x32xf32>
    %5 = arith.addf %2, %4 : vector<32x32xf32>
    %c0_5 = arith.constant 0 : index
    %c0_6 = arith.constant 0 : index
    %6 = vector.load %arg4[%c0_5, %c0_6] : memref<32x32xf32, #tpu.memory_space<vmem>>, vector<32x32xf32>
    %cst_7 = arith.constant dense<0.000000e+00> : vector<32x32xf32>
    %7 = tpu.matmul %0, %6, %cst_7 {dimension_numbers = #tpu.dot_dimension_numbers<[1], [0], [0], [1], [0, 0, 1, 1], [], []>} : vector<32x32xf32>, vector<32x32xf32>, vector<32x32xf32> -> vector<32x32xf32>
    %c0_8 = arith.constant 0 : index
    %c0_9 = arith.constant 0 : index
    %8 = vector.load %arg5[%c0_8, %c0_9] : memref<1x32xf32, #tpu.memory_space<vmem>>, vector<1x32xf32>
    %9 = vector.broadcast %8 : vector<1x32xf32> to vector<32x32xf32>
    %10 = arith.addf %7, %9 : vector<32x32xf32>
    %c0_10 = arith.constant 0 : index
    %c0_11 = arith.constant 0 : index
    %11 = vector.load %arg6[%c0_10, %c0_11] : memref<32x32xf32, #tpu.memory_space<vmem>>, vector<32x32xf32>
    %cst_12 = arith.constant dense<0.000000e+00> : vector<32x32xf32>
    %12 = tpu.matmul %0, %11, %cst_12 {dimension_numbers = #tpu.dot_dimension_numbers<[1], [0], [0], [1], [0, 0, 1, 1], [], []>} : vector<32x32xf32>, vector<32x32xf32>, vector<32x32xf32> -> vector<32x32xf32>
    %c0_13 = arith.constant 0 : index
    %c0_14 = arith.constant 0 : index
    %13 = vector.load %arg7[%c0_13, %c0_14] : memref<1x32xf32, #tpu.memory_space<vmem>>, vector<1x32xf32>
    %14 = vector.broadcast %13 : vector<1x32xf32> to vector<32x32xf32>
    %15 = arith.addf %12, %14 : vector<32x32xf32>
    %cst_15 = arith.constant 0.000000e+00 : f32
    %16 = vector.broadcast %cst_15 : f32 to vector<32x32xf32>
    %c0_16 = arith.constant 0 : index
    %c0_17 = arith.constant 0 : index
    %17 = vector.load %arg9[%c0_16, %c0_17] : memref<1x32xf32, #tpu.memory_space<vmem>>, vector<1x32xf32>
    %18 = vector.broadcast %17 : vector<1x32xf32> to vector<32x32xf32>
    %19 = arith.addf %16, %18 : vector<32x32xf32>
    %20 = vector.extract_strided_slice %5 {offsets = [0, 0], sizes = [32, 8], strides = [1, 1]} : vector<32x32xf32> to vector<32x8xf32>
    %21 = vector.shape_cast %20 : vector<32x8xf32> to vector<4x8x8xf32>
    %22 = vector.extract_strided_slice %10 {offsets = [0, 0], sizes = [32, 8], strides = [1, 1]} : vector<32x32xf32> to vector<32x8xf32>
    %23 = vector.shape_cast %22 : vector<32x8xf32> to vector<4x8x8xf32>
    %24 = vector.extract_strided_slice %15 {offsets = [0, 0], sizes = [32, 8], strides = [1, 1]} : vector<32x32xf32> to vector<32x8xf32>
    %25 = vector.shape_cast %24 : vector<32x8xf32> to vector<4x8x8xf32>
    "tpu.trace_start"() <{level = 10 : i32, message = "cqd,ckd->cqk"}> : () -> ()
    %cst_18 = arith.constant dense<0.000000e+00> : vector<4x8x8xf32>
    %26 = tpu.matmul %21, %23, %cst_18 {dimension_numbers = #tpu.dot_dimension_numbers<[2], [2], [1], [1], [0, 0, 0, 1, 1, 1], [0], [0]>} : vector<4x8x8xf32>, vector<4x8x8xf32>, vector<4x8x8xf32> -> vector<4x8x8xf32>
    "tpu.trace_stop"() : () -> ()
    %cst_19 = arith.constant dense<0xFF800000> : vector<4x8xf32>
    %27 = vector.multi_reduction <maximumf>, %26, %cst_19 [2] : vector<4x8x8xf32> to vector<4x8xf32>
    %28 = vector.shape_cast %27 : vector<4x8xf32> to vector<4x8x1xf32>
    %29 = vector.broadcast %28 : vector<4x8x1xf32> to vector<4x8x8xf32>
    %30 = arith.subf %26, %29 : vector<4x8x8xf32>
    %31 = math.exp %30 : vector<4x8x8xf32>
    %cst_20 = arith.constant dense<0.000000e+00> : vector<4x8xf32>
    %32 = vector.multi_reduction <add>, %31, %cst_20 [2] : vector<4x8x8xf32> to vector<4x8xf32>
    %33 = vector.shape_cast %32 : vector<4x8xf32> to vector<4x8x1xf32>
    %34 = tpu.reciprocal %33 : vector<4x8x1xf32> -> vector<4x8x1xf32>
    %35 = vector.broadcast %34 : vector<4x8x1xf32> to vector<4x8x8xf32>
    %36 = arith.mulf %31, %35 : vector<4x8x8xf32>
    "tpu.trace_start"() <{level = 10 : i32, message = "cqk,ckd->cqd"}> : () -> ()
    %cst_21 = arith.constant dense<0.000000e+00> : vector<4x8x8xf32>
    %37 = tpu.matmul %36, %25, %cst_21 {dimension_numbers = #tpu.dot_dimension_numbers<[2], [1], [1], [2], [0, 0, 0, 1, 1, 2], [0], [0]>} : vector<4x8x8xf32>, vector<4x8x8xf32>, vector<4x8x8xf32> -> vector<4x8x8xf32>
    "tpu.trace_stop"() : () -> ()
    %38 = vector.shape_cast %37 : vector<4x8x8xf32> to vector<32x8xf32>
    %c0_22 = arith.constant 0 : index
    %c0_23 = arith.constant 0 : index
    %39 = vector.load %arg8[%c0_22, %c0_23] : memref<32x32xf32, #tpu.memory_space<vmem>>, vector<8x32xf32>
    %cst_24 = arith.constant dense<0.000000e+00> : vector<32x32xf32>
    %40 = tpu.matmul %38, %39, %cst_24 {dimension_numbers = #tpu.dot_dimension_numbers<[1], [0], [0], [1], [0, 0, 1, 1], [], []>} : vector<32x8xf32>, vector<8x32xf32>, vector<32x32xf32> -> vector<32x32xf32>
    %41 = arith.addf %19, %40 : vector<32x32xf32>
    %42 = vector.extract_strided_slice %5 {offsets = [0, 8], sizes = [32, 8], strides = [1, 1]} : vector<32x32xf32> to vector<32x8xf32>
    %43 = vector.shape_cast %42 : vector<32x8xf32> to vector<4x8x8xf32>
    %44 = vector.extract_strided_slice %10 {offsets = [0, 8], sizes = [32, 8], strides = [1, 1]} : vector<32x32xf32> to vector<32x8xf32>
    %45 = vector.shape_cast %44 : vector<32x8xf32> to vector<4x8x8xf32>
    %46 = vector.extract_strided_slice %15 {offsets = [0, 8], sizes = [32, 8], strides = [1, 1]} : vector<32x32xf32> to vector<32x8xf32>
    %47 = vector.shape_cast %46 : vector<32x8xf32> to vector<4x8x8xf32>
    "tpu.trace_start"() <{level = 10 : i32, message = "cqd,ckd->cqk"}> : () -> ()
    %cst_25 = arith.constant dense<0.000000e+00> : vector<4x8x8xf32>
    %48 = tpu.matmul %43, %45, %cst_25 {dimension_numbers = #tpu.dot_dimension_numbers<[2], [2], [1], [1], [0, 0, 0, 1, 1, 1], [0], [0]>} : vector<4x8x8xf32>, vector<4x8x8xf32>, vector<4x8x8xf32> -> vector<4x8x8xf32>
    "tpu.trace_stop"() : () -> ()
    %cst_26 = arith.constant dense<0xFF800000> : vector<4x8xf32>
    %49 = vector.multi_reduction <maximumf>, %48, %cst_26 [2] : vector<4x8x8xf32> to vector<4x8xf32>
    %50 = vector.shape_cast %49 : vector<4x8xf32> to vector<4x8x1xf32>
    %51 = vector.broadcast %50 : vector<4x8x1xf32> to vector<4x8x8xf32>
    %52 = arith.subf %48, %51 : vector<4x8x8xf32>
    %53 = math.exp %52 : vector<4x8x8xf32>
    %cst_27 = arith.constant dense<0.000000e+00> : vector<4x8xf32>
    %54 = vector.multi_reduction <add>, %53, %cst_27 [2] : vector<4x8x8xf32> to vector<4x8xf32>
    %55 = vector.shape_cast %54 : vector<4x8xf32> to vector<4x8x1xf32>
    %56 = tpu.reciprocal %55 : vector<4x8x1xf32> -> vector<4x8x1xf32>
    %57 = vector.broadcast %56 : vector<4x8x1xf32> to vector<4x8x8xf32>
    %58 = arith.mulf %53, %57 : vector<4x8x8xf32>
    "tpu.trace_start"() <{level = 10 : i32, message = "cqk,ckd->cqd"}> : () -> ()
    %cst_28 = arith.constant dense<0.000000e+00> : vector<4x8x8xf32>
    %59 = tpu.matmul %58, %47, %cst_28 {dimension_numbers = #tpu.dot_dimension_numbers<[2], [1], [1], [2], [0, 0, 0, 1, 1, 2], [0], [0]>} : vector<4x8x8xf32>, vector<4x8x8xf32>, vector<4x8x8xf32> -> vector<4x8x8xf32>
    "tpu.trace_stop"() : () -> ()
    %60 = vector.shape_cast %59 : vector<4x8x8xf32> to vector<32x8xf32>
    %c8 = arith.constant 8 : index
    %c0_29 = arith.constant 0 : index
    %61 = vector.load %arg8[%c8, %c0_29] : memref<32x32xf32, #tpu.memory_space<vmem>>, vector<8x32xf32>
    %cst_30 = arith.constant dense<0.000000e+00> : vector<32x32xf32>
    %62 = tpu.matmul %60, %61, %cst_30 {dimension_numbers = #tpu.dot_dimension_numbers<[1], [0], [0], [1], [0, 0, 1, 1], [], []>} : vector<32x8xf32>, vector<8x32xf32>, vector<32x32xf32> -> vector<32x32xf32>
    %63 = arith.addf %41, %62 : vector<32x32xf32>
    %64 = vector.extract_strided_slice %5 {offsets = [0, 16], sizes = [32, 8], strides = [1, 1]} : vector<32x32xf32> to vector<32x8xf32>
    %65 = vector.shape_cast %64 : vector<32x8xf32> to vector<4x8x8xf32>
    %66 = vector.extract_strided_slice %10 {offsets = [0, 16], sizes = [32, 8], strides = [1, 1]} : vector<32x32xf32> to vector<32x8xf32>
    %67 = vector.shape_cast %66 : vector<32x8xf32> to vector<4x8x8xf32>
    %68 = vector.extract_strided_slice %15 {offsets = [0, 16], sizes = [32, 8], strides = [1, 1]} : vector<32x32xf32> to vector<32x8xf32>
    %69 = vector.shape_cast %68 : vector<32x8xf32> to vector<4x8x8xf32>
    "tpu.trace_start"() <{level = 10 : i32, message = "cqd,ckd->cqk"}> : () -> ()
    %cst_31 = arith.constant dense<0.000000e+00> : vector<4x8x8xf32>
    %70 = tpu.matmul %65, %67, %cst_31 {dimension_numbers = #tpu.dot_dimension_numbers<[2], [2], [1], [1], [0, 0, 0, 1, 1, 1], [0], [0]>} : vector<4x8x8xf32>, vector<4x8x8xf32>, vector<4x8x8xf32> -> vector<4x8x8xf32>
    "tpu.trace_stop"() : () -> ()
    %cst_32 = arith.constant dense<0xFF800000> : vector<4x8xf32>
    %71 = vector.multi_reduction <maximumf>, %70, %cst_32 [2] : vector<4x8x8xf32> to vector<4x8xf32>
    %72 = vector.shape_cast %71 : vector<4x8xf32> to vector<4x8x1xf32>
    %73 = vector.broadcast %72 : vector<4x8x1xf32> to vector<4x8x8xf32>
    %74 = arith.subf %70, %73 : vector<4x8x8xf32>
    %75 = math.exp %74 : vector<4x8x8xf32>
    %cst_33 = arith.constant dense<0.000000e+00> : vector<4x8xf32>
    %76 = vector.multi_reduction <add>, %75, %cst_33 [2] : vector<4x8x8xf32> to vector<4x8xf32>
    %77 = vector.shape_cast %76 : vector<4x8xf32> to vector<4x8x1xf32>
    %78 = tpu.reciprocal %77 : vector<4x8x1xf32> -> vector<4x8x1xf32>
    %79 = vector.broadcast %78 : vector<4x8x1xf32> to vector<4x8x8xf32>
    %80 = arith.mulf %75, %79 : vector<4x8x8xf32>
    "tpu.trace_start"() <{level = 10 : i32, message = "cqk,ckd->cqd"}> : () -> ()
    %cst_34 = arith.constant dense<0.000000e+00> : vector<4x8x8xf32>
    %81 = tpu.matmul %80, %69, %cst_34 {dimension_numbers = #tpu.dot_dimension_numbers<[2], [1], [1], [2], [0, 0, 0, 1, 1, 2], [0], [0]>} : vector<4x8x8xf32>, vector<4x8x8xf32>, vector<4x8x8xf32> -> vector<4x8x8xf32>
    "tpu.trace_stop"() : () -> ()
    %82 = vector.shape_cast %81 : vector<4x8x8xf32> to vector<32x8xf32>
    %c16 = arith.constant 16 : index
    %c0_35 = arith.constant 0 : index
    %83 = vector.load %arg8[%c16, %c0_35] : memref<32x32xf32, #tpu.memory_space<vmem>>, vector<8x32xf32>
    %cst_36 = arith.constant dense<0.000000e+00> : vector<32x32xf32>
    %84 = tpu.matmul %82, %83, %cst_36 {dimension_numbers = #tpu.dot_dimension_numbers<[1], [0], [0], [1], [0, 0, 1, 1], [], []>} : vector<32x8xf32>, vector<8x32xf32>, vector<32x32xf32> -> vector<32x32xf32>
    %85 = arith.addf %63, %84 : vector<32x32xf32>
    %86 = vector.extract_strided_slice %5 {offsets = [0, 24], sizes = [32, 8], strides = [1, 1]} : vector<32x32xf32> to vector<32x8xf32>
    %87 = vector.shape_cast %86 : vector<32x8xf32> to vector<4x8x8xf32>
    %88 = vector.extract_strided_slice %10 {offsets = [0, 24], sizes = [32, 8], strides = [1, 1]} : vector<32x32xf32> to vector<32x8xf32>
    %89 = vector.shape_cast %88 : vector<32x8xf32> to vector<4x8x8xf32>
    %90 = vector.extract_strided_slice %15 {offsets = [0, 24], sizes = [32, 8], strides = [1, 1]} : vector<32x32xf32> to vector<32x8xf32>
    %91 = vector.shape_cast %90 : vector<32x8xf32> to vector<4x8x8xf32>
    "tpu.trace_start"() <{level = 10 : i32, message = "cqd,ckd->cqk"}> : () -> ()
    %cst_37 = arith.constant dense<0.000000e+00> : vector<4x8x8xf32>
    %92 = tpu.matmul %87, %89, %cst_37 {dimension_numbers = #tpu.dot_dimension_numbers<[2], [2], [1], [1], [0, 0, 0, 1, 1, 1], [0], [0]>} : vector<4x8x8xf32>, vector<4x8x8xf32>, vector<4x8x8xf32> -> vector<4x8x8xf32>
    "tpu.trace_stop"() : () -> ()
    %cst_38 = arith.constant dense<0xFF800000> : vector<4x8xf32>
    %93 = vector.multi_reduction <maximumf>, %92, %cst_38 [2] : vector<4x8x8xf32> to vector<4x8xf32>
    %94 = vector.shape_cast %93 : vector<4x8xf32> to vector<4x8x1xf32>
    %95 = vector.broadcast %94 : vector<4x8x1xf32> to vector<4x8x8xf32>
    %96 = arith.subf %92, %95 : vector<4x8x8xf32>
    %97 = math.exp %96 : vector<4x8x8xf32>
    %cst_39 = arith.constant dense<0.000000e+00> : vector<4x8xf32>
    %98 = vector.multi_reduction <add>, %97, %cst_39 [2] : vector<4x8x8xf32> to vector<4x8xf32>
    %99 = vector.shape_cast %98 : vector<4x8xf32> to vector<4x8x1xf32>
    %100 = tpu.reciprocal %99 : vector<4x8x1xf32> -> vector<4x8x1xf32>
    %101 = vector.broadcast %100 : vector<4x8x1xf32> to vector<4x8x8xf32>
    %102 = arith.mulf %97, %101 : vector<4x8x8xf32>
    "tpu.trace_start"() <{level = 10 : i32, message = "cqk,ckd->cqd"}> : () -> ()
    %cst_40 = arith.constant dense<0.000000e+00> : vector<4x8x8xf32>
    %103 = tpu.matmul %102, %91, %cst_40 {dimension_numbers = #tpu.dot_dimension_numbers<[2], [1], [1], [2], [0, 0, 0, 1, 1, 2], [0], [0]>} : vector<4x8x8xf32>, vector<4x8x8xf32>, vector<4x8x8xf32> -> vector<4x8x8xf32>
    "tpu.trace_stop"() : () -> ()
    %104 = vector.shape_cast %103 : vector<4x8x8xf32> to vector<32x8xf32>
    %c24 = arith.constant 24 : index
    %c0_41 = arith.constant 0 : index
    %105 = vector.load %arg8[%c24, %c0_41] : memref<32x32xf32, #tpu.memory_space<vmem>>, vector<8x32xf32>
    %cst_42 = arith.constant dense<0.000000e+00> : vector<32x32xf32>
    %106 = tpu.matmul %104, %105, %cst_42 {dimension_numbers = #tpu.dot_dimension_numbers<[1], [0], [0], [1], [0, 0, 1, 1], [], []>} : vector<32x8xf32>, vector<8x32xf32>, vector<32x32xf32> -> vector<32x32xf32>
    %107 = arith.addf %85, %106 : vector<32x32xf32>
    %108 = arith.addf %107, %0 : vector<32x32xf32>
    %c0_43 = arith.constant 0 : index
    %c0_44 = arith.constant 0 : index
    %109 = vector.load %arg10[%c0_43, %c0_44] : memref<1x32xf32, #tpu.memory_space<vmem>>, vector<1x32xf32>
    %c0_45 = arith.constant 0 : index
    %c0_46 = arith.constant 0 : index
    %110 = vector.load %arg11[%c0_45, %c0_46] : memref<1x32xf32, #tpu.memory_space<vmem>>, vector<1x32xf32>
    %cst_47 = arith.constant dense<0.000000e+00> : vector<32xf32>
    %111 = vector.multi_reduction <add>, %108, %cst_47 [1] : vector<32x32xf32> to vector<32xf32>
    %112 = vector.shape_cast %111 : vector<32xf32> to vector<32x1xf32>
    %cst_48 = arith.constant 3.200000e+01 : f32
    %113 = vector.broadcast %cst_48 : f32 to vector<32x1xf32>
    %114 = arith.divf %112, %113 : vector<32x1xf32>
    %115 = vector.broadcast %114 : vector<32x1xf32> to vector<32x32xf32>
    %116 = arith.subf %108, %115 : vector<32x32xf32>
    %117 = arith.mulf %116, %116 : vector<32x32xf32>
    %cst_49 = arith.constant dense<0.000000e+00> : vector<32xf32>
    %118 = vector.multi_reduction <add>, %117, %cst_49 [1] : vector<32x32xf32> to vector<32xf32>
    %119 = vector.shape_cast %118 : vector<32xf32> to vector<32x1xf32>
    %cst_50 = arith.constant 3.200000e+01 : f32
    %120 = vector.broadcast %cst_50 : f32 to vector<32x1xf32>
    %121 = arith.divf %119, %120 : vector<32x1xf32>
    %122 = vector.broadcast %114 : vector<32x1xf32> to vector<32x32xf32>
    %123 = arith.subf %108, %122 : vector<32x32xf32>
    %cst_51 = arith.constant 9.99999974E-6 : f32
    %124 = vector.broadcast %cst_51 : f32 to vector<32x1xf32>
    %125 = arith.addf %121, %124 : vector<32x1xf32>
    %126 = math.rsqrt %125 : vector<32x1xf32>
    %127 = vector.broadcast %126 : vector<32x1xf32> to vector<32x32xf32>
    %128 = arith.mulf %123, %127 : vector<32x32xf32>
    %129 = vector.broadcast %109 : vector<1x32xf32> to vector<32x32xf32>
    %130 = arith.mulf %128, %129 : vector<32x32xf32>
    %131 = vector.broadcast %110 : vector<1x32xf32> to vector<32x32xf32>
    %132 = arith.addf %130, %131 : vector<32x32xf32>
    %133 = arith.truncf %132 : vector<32x32xf32> to vector<32x32xbf16>
    %cst_52 = arith.constant 0.000000e+00 : f32
    %134 = vector.broadcast %cst_52 : f32 to vector<32x32xf32>
    %c0_53 = arith.constant 0 : index
    %c0_54 = arith.constant 0 : index
    %135 = vector.load %arg15[%c0_53, %c0_54] : memref<1x32xf32, #tpu.memory_space<vmem>>, vector<1x32xf32>
    %136 = vector.broadcast %135 : vector<1x32xf32> to vector<32x32xf32>
    %137 = arith.addf %134, %136 : vector<32x32xf32>
    %c0_i32 = arith.constant 0 : i32
    %c512_i32 = arith.constant 512 : i32
    %138 = arith.muli %c0_i32, %c512_i32 : i32
    %139 = tpu.assume_multiple %138, 512 : i32
    %c0_55 = arith.constant 0 : index
    %140 = arith.index_cast %139 : i32 to index
    %141 = vector.load %arg12[%c0_55, %140] : memref<32x2048xbf16, #tpu.memory_space<vmem>>, vector<32x512xbf16>
    %c0_56 = arith.constant 0 : index
    %142 = arith.index_cast %139 : i32 to index
    %143 = vector.load %arg13[%c0_56, %142] : memref<1x2048xf32, #tpu.memory_space<vmem>>, vector<1x512xf32>
    %cst_57 = arith.constant dense<0.000000e+00> : vector<32x512xf32>
    %144 = tpu.matmul %133, %141, %cst_57 {dimension_numbers = #tpu.dot_dimension_numbers<[1], [0], [0], [1], [0, 0, 1, 1], [], []>} : vector<32x32xbf16>, vector<32x512xbf16>, vector<32x512xf32> -> vector<32x512xf32>
    %145 = vector.broadcast %143 : vector<1x512xf32> to vector<32x512xf32>
    %146 = arith.addf %144, %145 : vector<32x512xf32>
    %cst_58 = arith.constant 0.000000e+00 : f32
    %147 = vector.broadcast %cst_58 : f32 to vector<32x512xf32>
    %148 = arith.maximumf %146, %147 : vector<32x512xf32>
    %149 = arith.truncf %148 : vector<32x512xf32> to vector<32x512xbf16>
    %150 = arith.index_cast %139 : i32 to index
    %c0_59 = arith.constant 0 : index
    %151 = vector.load %arg14[%150, %c0_59] : memref<2048x32xbf16, #tpu.memory_space<vmem>>, vector<512x32xbf16>
    %cst_60 = arith.constant dense<0.000000e+00> : vector<32x32xf32>
    %152 = tpu.matmul %149, %151, %cst_60 {dimension_numbers = #tpu.dot_dimension_numbers<[1], [0], [0], [1], [0, 0, 1, 1], [], []>} : vector<32x512xbf16>, vector<512x32xbf16>, vector<32x32xf32> -> vector<32x32xf32>
    %153 = arith.addf %137, %152 : vector<32x32xf32>
    %c1_i32 = arith.constant 1 : i32
    %c512_i32_61 = arith.constant 512 : i32
    %154 = arith.muli %c1_i32, %c512_i32_61 : i32
    %155 = tpu.assume_multiple %154, 512 : i32
    %c0_62 = arith.constant 0 : index
    %156 = arith.index_cast %155 : i32 to index
    %157 = vector.load %arg12[%c0_62, %156] : memref<32x2048xbf16, #tpu.memory_space<vmem>>, vector<32x512xbf16>
    %c0_63 = arith.constant 0 : index
    %158 = arith.index_cast %155 : i32 to index
    %159 = vector.load %arg13[%c0_63, %158] : memref<1x2048xf32, #tpu.memory_space<vmem>>, vector<1x512xf32>
    %cst_64 = arith.constant dense<0.000000e+00> : vector<32x512xf32>
    %160 = tpu.matmul %133, %157, %cst_64 {dimension_numbers = #tpu.dot_dimension_numbers<[1], [0], [0], [1], [0, 0, 1, 1], [], []>} : vector<32x32xbf16>, vector<32x512xbf16>, vector<32x512xf32> -> vector<32x512xf32>
    %161 = vector.broadcast %159 : vector<1x512xf32> to vector<32x512xf32>
    %162 = arith.addf %160, %161 : vector<32x512xf32>
    %cst_65 = arith.constant 0.000000e+00 : f32
    %163 = vector.broadcast %cst_65 : f32 to vector<32x512xf32>
    %164 = arith.maximumf %162, %163 : vector<32x512xf32>
    %165 = arith.truncf %164 : vector<32x512xf32> to vector<32x512xbf16>
    %166 = arith.index_cast %155 : i32 to index
    %c0_66 = arith.constant 0 : index
    %167 = vector.load %arg14[%166, %c0_66] : memref<2048x32xbf16, #tpu.memory_space<vmem>>, vector<512x32xbf16>
    %cst_67 = arith.constant dense<0.000000e+00> : vector<32x32xf32>
    %168 = tpu.matmul %165, %167, %cst_67 {dimension_numbers = #tpu.dot_dimension_numbers<[1], [0], [0], [1], [0, 0, 1, 1], [], []>} : vector<32x512xbf16>, vector<512x32xbf16>, vector<32x32xf32> -> vector<32x32xf32>
    %169 = arith.addf %153, %168 : vector<32x32xf32>
    %c2_i32 = arith.constant 2 : i32
    %c512_i32_68 = arith.constant 512 : i32
    %170 = arith.muli %c2_i32, %c512_i32_68 : i32
    %171 = tpu.assume_multiple %170, 512 : i32
    %c0_69 = arith.constant 0 : index
    %172 = arith.index_cast %171 : i32 to index
    %173 = vector.load %arg12[%c0_69, %172] : memref<32x2048xbf16, #tpu.memory_space<vmem>>, vector<32x512xbf16>
    %c0_70 = arith.constant 0 : index
    %174 = arith.index_cast %171 : i32 to index
    %175 = vector.load %arg13[%c0_70, %174] : memref<1x2048xf32, #tpu.memory_space<vmem>>, vector<1x512xf32>
    %cst_71 = arith.constant dense<0.000000e+00> : vector<32x512xf32>
    %176 = tpu.matmul %133, %173, %cst_71 {dimension_numbers = #tpu.dot_dimension_numbers<[1], [0], [0], [1], [0, 0, 1, 1], [], []>} : vector<32x32xbf16>, vector<32x512xbf16>, vector<32x512xf32> -> vector<32x512xf32>
    %177 = vector.broadcast %175 : vector<1x512xf32> to vector<32x512xf32>
    %178 = arith.addf %176, %177 : vector<32x512xf32>
    %cst_72 = arith.constant 0.000000e+00 : f32
    %179 = vector.broadcast %cst_72 : f32 to vector<32x512xf32>
    %180 = arith.maximumf %178, %179 : vector<32x512xf32>
    %181 = arith.truncf %180 : vector<32x512xf32> to vector<32x512xbf16>
    %182 = arith.index_cast %171 : i32 to index
    %c0_73 = arith.constant 0 : index
    %183 = vector.load %arg14[%182, %c0_73] : memref<2048x32xbf16, #tpu.memory_space<vmem>>, vector<512x32xbf16>
    %cst_74 = arith.constant dense<0.000000e+00> : vector<32x32xf32>
    %184 = tpu.matmul %181, %183, %cst_74 {dimension_numbers = #tpu.dot_dimension_numbers<[1], [0], [0], [1], [0, 0, 1, 1], [], []>} : vector<32x512xbf16>, vector<512x32xbf16>, vector<32x32xf32> -> vector<32x32xf32>
    %185 = arith.addf %169, %184 : vector<32x32xf32>
    %c3_i32 = arith.constant 3 : i32
    %c512_i32_75 = arith.constant 512 : i32
    %186 = arith.muli %c3_i32, %c512_i32_75 : i32
    %187 = tpu.assume_multiple %186, 512 : i32
    %c0_76 = arith.constant 0 : index
    %188 = arith.index_cast %187 : i32 to index
    %189 = vector.load %arg12[%c0_76, %188] : memref<32x2048xbf16, #tpu.memory_space<vmem>>, vector<32x512xbf16>
    %c0_77 = arith.constant 0 : index
    %190 = arith.index_cast %187 : i32 to index
    %191 = vector.load %arg13[%c0_77, %190] : memref<1x2048xf32, #tpu.memory_space<vmem>>, vector<1x512xf32>
    %cst_78 = arith.constant dense<0.000000e+00> : vector<32x512xf32>
    %192 = tpu.matmul %133, %189, %cst_78 {dimension_numbers = #tpu.dot_dimension_numbers<[1], [0], [0], [1], [0, 0, 1, 1], [], []>} : vector<32x32xbf16>, vector<32x512xbf16>, vector<32x512xf32> -> vector<32x512xf32>
    %193 = vector.broadcast %191 : vector<1x512xf32> to vector<32x512xf32>
    %194 = arith.addf %192, %193 : vector<32x512xf32>
    %cst_79 = arith.constant 0.000000e+00 : f32
    %195 = vector.broadcast %cst_79 : f32 to vector<32x512xf32>
    %196 = arith.maximumf %194, %195 : vector<32x512xf32>
    %197 = arith.truncf %196 : vector<32x512xf32> to vector<32x512xbf16>
    %198 = arith.index_cast %187 : i32 to index
    %c0_80 = arith.constant 0 : index
    %199 = vector.load %arg14[%198, %c0_80] : memref<2048x32xbf16, #tpu.memory_space<vmem>>, vector<512x32xbf16>
    %cst_81 = arith.constant dense<0.000000e+00> : vector<32x32xf32>
    %200 = tpu.matmul %197, %199, %cst_81 {dimension_numbers = #tpu.dot_dimension_numbers<[1], [0], [0], [1], [0, 0, 1, 1], [], []>} : vector<32x512xbf16>, vector<512x32xbf16>, vector<32x32xf32> -> vector<32x32xf32>
    %201 = arith.addf %185, %200 : vector<32x32xf32>
    %c4_i32 = arith.constant 4 : i32
    %202 = arith.addf %201, %132 : vector<32x32xf32>
    %c0_82 = arith.constant 0 : index
    %c0_83 = arith.constant 0 : index
    %203 = vector.load %arg16[%c0_82, %c0_83] : memref<1x32xf32, #tpu.memory_space<vmem>>, vector<1x32xf32>
    %c0_84 = arith.constant 0 : index
    %c0_85 = arith.constant 0 : index
    %204 = vector.load %arg17[%c0_84, %c0_85] : memref<1x32xf32, #tpu.memory_space<vmem>>, vector<1x32xf32>
    %cst_86 = arith.constant dense<0.000000e+00> : vector<32xf32>
    %205 = vector.multi_reduction <add>, %202, %cst_86 [1] : vector<32x32xf32> to vector<32xf32>
    %206 = vector.shape_cast %205 : vector<32xf32> to vector<32x1xf32>
    %cst_87 = arith.constant 3.200000e+01 : f32
    %207 = vector.broadcast %cst_87 : f32 to vector<32x1xf32>
    %208 = arith.divf %206, %207 : vector<32x1xf32>
    %209 = vector.broadcast %208 : vector<32x1xf32> to vector<32x32xf32>
    %210 = arith.subf %202, %209 : vector<32x32xf32>
    %211 = arith.mulf %210, %210 : vector<32x32xf32>
    %cst_88 = arith.constant dense<0.000000e+00> : vector<32xf32>
    %212 = vector.multi_reduction <add>, %211, %cst_88 [1] : vector<32x32xf32> to vector<32xf32>
    %213 = vector.shape_cast %212 : vector<32xf32> to vector<32x1xf32>
    %cst_89 = arith.constant 3.200000e+01 : f32
    %214 = vector.broadcast %cst_89 : f32 to vector<32x1xf32>
    %215 = arith.divf %213, %214 : vector<32x1xf32>
    %216 = vector.broadcast %208 : vector<32x1xf32> to vector<32x32xf32>
    %217 = arith.subf %202, %216 : vector<32x32xf32>
    %cst_90 = arith.constant 9.99999974E-6 : f32
    %218 = vector.broadcast %cst_90 : f32 to vector<32x1xf32>
    %219 = arith.addf %215, %218 : vector<32x1xf32>
    %220 = math.rsqrt %219 : vector<32x1xf32>
    %221 = vector.broadcast %220 : vector<32x1xf32> to vector<32x32xf32>
    %222 = arith.mulf %217, %221 : vector<32x32xf32>
    %223 = vector.broadcast %203 : vector<1x32xf32> to vector<32x32xf32>
    %224 = arith.mulf %222, %223 : vector<32x32xf32>
    %225 = vector.broadcast %204 : vector<1x32xf32> to vector<32x32xf32>
    %226 = arith.addf %224, %225 : vector<32x32xf32>
    %c0_91 = arith.constant 0 : index
    %c0_92 = arith.constant 0 : index
    %227 = vector.load %arg18[%c0_91, %c0_92] : memref<32x32xf32, #tpu.memory_space<vmem>>, vector<32x32xf32>
    tpu.vector_store %arg18[%c0_91, %c0_92], %226 {strides = array<i32>} : memref<32x32xf32, #tpu.memory_space<vmem>>, vector<32x32xf32>,
    return
  }
  func.func @transform_0(%arg0: i32) -> (i32, i32) {
    %c0_i32 = arith.constant 0 : i32
    %c0_i32_0 = arith.constant 0 : i32
    return %arg0, %c0_i32 : i32, i32
  }
  func.func @transform_1(%arg0: i32) -> (i32, i32) {
    %c0_i32 = arith.constant 0 : i32
    %c0_i32_0 = arith.constant 0 : i32
    %c0_i32_1 = arith.constant 0 : i32
    return %c0_i32, %c0_i32_0 : i32, i32
  }
  func.func @transform_2(%arg0: i32) -> (i32, i32) {
    %c0_i32 = arith.constant 0 : i32
    %c0_i32_0 = arith.constant 0 : i32
    %c0_i32_1 = arith.constant 0 : i32
    return %c0_i32, %c0_i32_0 : i32, i32
  }
  func.func @transform_3(%arg0: i32) -> (i32, i32) {
    %c0_i32 = arith.constant 0 : i32
    %c0_i32_0 = arith.constant 0 : i32
    %c0_i32_1 = arith.constant 0 : i32
    return %c0_i32, %c0_i32_0 : i32, i32
  }
  func.func @transform_4(%arg0: i32) -> (i32, i32) {
    %c0_i32 = arith.constant 0 : i32
    %c0_i32_0 = arith.constant 0 : i32
    %c0_i32_1 = arith.constant 0 : i32
    return %c0_i32, %c0_i32_0 : i32, i32
  }
  func.func @transform_5(%arg0: i32) -> (i32, i32) {
    %c0_i32 = arith.constant 0 : i32
    %c0_i32_0 = arith.constant 0 : i32
    %c0_i32_1 = arith.constant 0 : i32
    return %c0_i32, %c0_i32_0 : i32, i32
  }
  func.func @transform_6(%arg0: i32) -> (i32, i32) {
    %c0_i32 = arith.constant 0 : i32
    %c0_i32_0 = arith.constant 0 : i32
    %c0_i32_1 = arith.constant 0 : i32
    return %c0_i32, %c0_i32_0 : i32, i32
  }
  func.func @transform_7(%arg0: i32) -> (i32, i32) {
    %c0_i32 = arith.constant 0 : i32
    %c0_i32_0 = arith.constant 0 : i32
    %c0_i32_1 = arith.constant 0 : i32
    return %c0_i32, %c0_i32_0 : i32, i32
  }
  func.func @transform_8(%arg0: i32) -> (i32, i32) {
    %c0_i32 = arith.constant 0 : i32
    %c0_i32_0 = arith.constant 0 : i32
    %c0_i32_1 = arith.constant 0 : i32
    return %c0_i32, %c0_i32_0 : i32, i32
  }
  func.func @transform_9(%arg0: i32) -> (i32, i32) {
    %c0_i32 = arith.constant 0 : i32
    %c0_i32_0 = arith.constant 0 : i32
    %c0_i32_1 = arith.constant 0 : i32
    return %c0_i32, %c0_i32_0 : i32, i32
  }
  func.func @transform_10(%arg0: i32) -> (i32, i32) {
    %c0_i32 = arith.constant 0 : i32
    %c0_i32_0 = arith.constant 0 : i32
    %c0_i32_1 = arith.constant 0 : i32
    return %c0_i32, %c0_i32_0 : i32, i32
  }
  func.func @transform_11(%arg0: i32) -> (i32, i32) {
    %c0_i32 = arith.constant 0 : i32
    %c0_i32_0 = arith.constant 0 : i32
    %c0_i32_1 = arith.constant 0 : i32
    return %c0_i32, %c0_i32_0 : i32, i32
  }
  func.func @transform_12(%arg0: i32) -> (i32, i32) {
    %c0_i32 = arith.constant 0 : i32
    %c0_i32_0 = arith.constant 0 : i32
    %c0_i32_1 = arith.constant 0 : i32
    return %c0_i32, %c0_i32_0 : i32, i32
  }
  func.func @transform_13(%arg0: i32) -> (i32, i32) {
    %c0_i32 = arith.constant 0 : i32
    %c0_i32_0 = arith.constant 0 : i32
    %c0_i32_1 = arith.constant 0 : i32
    return %c0_i32, %c0_i32_0 : i32, i32
  }
  func.func @transform_14(%arg0: i32) -> (i32, i32) {
    %c0_i32 = arith.constant 0 : i32
    %c0_i32_0 = arith.constant 0 : i32
    %c0_i32_1 = arith.constant 0 : i32
    return %c0_i32, %c0_i32_0 : i32, i32
  }
  func.func @transform_15(%arg0: i32) -> (i32, i32) {
    %c0_i32 = arith.constant 0 : i32
    %c0_i32_0 = arith.constant 0 : i32
    %c0_i32_1 = arith.constant 0 : i32
    return %c0_i32, %c0_i32_0 : i32, i32
  }
  func.func @transform_16(%arg0: i32) -> (i32, i32) {
    %c0_i32 = arith.constant 0 : i32
    %c0_i32_0 = arith.constant 0 : i32
    %c0_i32_1 = arith.constant 0 : i32
    return %c0_i32, %c0_i32_0 : i32, i32
  }
  func.func @transform_17(%arg0: i32) -> (i32, i32) {
    %c0_i32 = arith.constant 0 : i32
    %c0_i32_0 = arith.constant 0 : i32
    return %arg0, %c0_i32 : i32, i32
  }
}

</mosaic_0001>

<llo_original>
// kernel: tpu_custom_call.1
$region0: #{tpu_custom_call.1}
  #allocation0 [shape = 'u32[]', space=smem, size = 0x4, offset = 0x4, fixed_abs, tag = 'smem constant byte address 0x4 - core index']
  #allocation1 [shape = 'u32[144,128]{1,0:T(1,128)}', space=vmem, size = 0x12000, scoped, tag = 'internal scratch']
  %s0 = inlined_call_operand.vmem [shape: f32[32,32], index: 0, kind: input, shape index: {}]
  %s1 = inlined_call_operand.vmem [shape: f32[32,32], index: 1, kind: input, shape index: {}]
  %s2 = inlined_call_operand.vmem [shape: f32[1,32], index: 2, kind: input, shape index: {}]
  %s3 = inlined_call_operand.vmem [shape: f32[32,32], index: 3, kind: input, shape index: {}]
  %s4 = inlined_call_operand.vmem [shape: f32[1,32], index: 4, kind: input, shape index: {}]
  %s5 = inlined_call_operand.vmem [shape: f32[32,32], index: 5, kind: input, shape index: {}]
  %s6 = inlined_call_operand.vmem [shape: f32[1,32], index: 6, kind: input, shape index: {}]
  %s7 = inlined_call_operand.vmem [shape: f32[32,32], index: 7, kind: input, shape index: {}]
  %s8 = inlined_call_operand.vmem [shape: f32[1,32], index: 8, kind: input, shape index: {}]
  %s9 = inlined_call_operand.vmem [shape: f32[1,32], index: 9, kind: input, shape index: {}]
  %s10 = inlined_call_operand.vmem [shape: f32[1,32], index: 10, kind: input, shape index: {}]
  %s11 = inlined_call_operand.vmem [shape: bf16[32,2048], index: 11, kind: input, shape index: {}]
  %s12 = inlined_call_operand.vmem [shape: f32[1,2048], index: 12, kind: input, shape index: {}]
  %s13 = inlined_call_operand.vmem [shape: bf16[2048,32], index: 13, kind: input, shape index: {}]
  %s14 = inlined_call_operand.vmem [shape: f32[1,32], index: 14, kind: input, shape index: {}]
  %s15 = inlined_call_operand.vmem [shape: f32[1,32], index: 15, kind: input, shape index: {}]
  %s16 = inlined_call_operand.vmem [shape: f32[1,32], index: 16, kind: input, shape index: {}]
  %s17 = inlined_call_operand.hbm [shape: f32[32,32], index: 17, kind: output, shape index: {}]
  %s18 = sld [smem:[#allocation0]]
  $region78: #{tpu_custom_call.1} parent=0
    _
  %s20 = ssub.s32 1, %s18
  %s21 = scalar_select 0, %s20, %s18
  $region1: #{tpu_custom_call.1} parent=0
    #allocation2 [shape = 'u8[16384]{0}', space=vmem, size = 0x4000, scoped, tag = 'output window, operand 0, single buffered']
    #allocation3 [shape = 's32[1]{0}', space=sflag, size = 0x4, scoped, tag = 'scoped memory for tpu_custom_call.1']
    %22 = vsyncpa [#allocation3], 0
    // Predicated region
    $region2: #{tpu_custom_call.1} parent=1 // pred_check
      _
    $region3: #{tpu_custom_call.1} parent=1 // pred_check_branch
      %24 = sbr.rel (0) target = $region5
    $region4: #{tpu_custom_call.1} parent=1 // pred_region
      _
    $region5: #{tpu_custom_call.1} parent=1 // pred_fallthru
      _
    // Predicated region
    $region6: #{tpu_custom_call.1} parent=1 // pred_check
      _
    $region7: #{tpu_custom_call.1} parent=1 // pred_check_branch
      %26 = sbr.rel (0) target = $region9
    $region8: #{tpu_custom_call.1} parent=1 // pred_region
      _
    $region9: #{tpu_custom_call.1} parent=1 // pred_fallthru
      _
    // Predicated region
    $region10: #{tpu_custom_call.1} parent=1 // pred_check
      _
    $region11: #{tpu_custom_call.1} parent=1 // pred_check_branch
      %28 = sbr.rel (0) target = $region13
    $region12: #{tpu_custom_call.1} parent=1 // pred_region
      _
    $region13: #{tpu_custom_call.1} parent=1 // pred_fallthru
      _
    // Predicated region
    $region14: #{tpu_custom_call.1} parent=1 // pred_check
      _
    $region15: #{tpu_custom_call.1} parent=1 // pred_check_branch
      %30 = sbr.rel (0) target = $region17
    $region16: #{tpu_custom_call.1} parent=1 // pred_region
      _
    $region17: #{tpu_custom_call.1} parent=1 // pred_fallthru
      _
    // Predicated region
    $region18: #{tpu_custom_call.1} parent=1 // pred_check
      _
    $region19: #{tpu_custom_call.1} parent=1 // pred_check_branch
      %32 = sbr.rel (0) target = $region21
    $region20: #{tpu_custom_call.1} parent=1 // pred_region
      _
    $region21: #{tpu_custom_call.1} parent=1 // pred_fallthru
      _
    // Predicated region
    $region22: #{tpu_custom_call.1} parent=1 // pred_check
      _
    $region23: #{tpu_custom_call.1} parent=1 // pred_check_branch
      %34 = sbr.rel (0) target = $region25
    $region24: #{tpu_custom_call.1} parent=1 // pred_region
      _
    $region25: #{tpu_custom_call.1} parent=1 // pred_fallthru
      _
    // Predicated region
    $region26: #{tpu_custom_call.1} parent=1 // pred_check
      _
    $region27: #{tpu_custom_call.1} parent=1 // pred_check_branch
      %36 = sbr.rel (0) target = $region29
    $region28: #{tpu_custom_call.1} parent=1 // pred_region
      _
    $region29: #{tpu_custom_call.1} parent=1 // pred_fallthru
      _
    // Predicated region
    $region30: #{tpu_custom_call.1} parent=1 // pred_check
      _
    $region31: #{tpu_custom_call.1} parent=1 // pred_check_branch
      %38 = sbr.rel (0) target = $region33
    $region32: #{tpu_custom_call.1} parent=1 // pred_region
      _
    $region33: #{tpu_custom_call.1} parent=1 // pred_fallthru
      _
    // Predicated region
    $region34: #{tpu_custom_call.1} parent=1 // pred_check
      _
    $region35: #{tpu_custom_call.1} parent=1 // pred_check_branch
      %40 = sbr.rel (0) target = $region37
    $region36: #{tpu_custom_call.1} parent=1 // pred_region
      _
    $region37: #{tpu_custom_call.1} parent=1 // pred_fallthru
      _
    // Predicated region
    $region38: #{tpu_custom_call.1} parent=1 // pred_check
      _
    $region39: #{tpu_custom_call.1} parent=1 // pred_check_branch
      %42 = sbr.rel (0) target = $region41
    $region40: #{tpu_custom_call.1} parent=1 // pred_region
      _
    $region41: #{tpu_custom_call.1} parent=1 // pred_fallthru
      _
    // Predicated region
    $region42: #{tpu_custom_call.1} parent=1 // pred_check
      _
    $region43: #{tpu_custom_call.1} parent=1 // pred_check_branch
      %44 = sbr.rel (0) target = $region45
    $region44: #{tpu_custom_call.1} parent=1 // pred_region
      _
    $region45: #{tpu_custom_call.1} parent=1 // pred_fallthru
      _
    // Predicated region
    $region46: #{tpu_custom_call.1} parent=1 // pred_check
      _
    $region47: #{tpu_custom_call.1} parent=1 // pred_check_branch
      %46 = sbr.rel (0) target = $region49
    $region48: #{tpu_custom_call.1} parent=1 // pred_region
      _
    $region49: #{tpu_custom_call.1} parent=1 // pred_fallthru
      _
    // Predicated region
    $region50: #{tpu_custom_call.1} parent=1 // pred_check
      _
    $region51: #{tpu_custom_call.1} parent=1 // pred_check_branch
      %48 = sbr.rel (0) target = $region53
    $region52: #{tpu_custom_call.1} parent=1 // pred_region
      _
    $region53: #{tpu_custom_call.1} parent=1 // pred_fallthru
      _
    // Predicated region
    $region54: #{tpu_custom_call.1} parent=1 // pred_check
      _
    $region55: #{tpu_custom_call.1} parent=1 // pred_check_branch
      %50 = sbr.rel (0) target = $region57
    $region56: #{tpu_custom_call.1} parent=1 // pred_region
      _
    $region57: #{tpu_custom_call.1} parent=1 // pred_fallthru
      _
    // Predicated region
    $region58: #{tpu_custom_call.1} parent=1 // pred_check
      _
    $region59: #{tpu_custom_call.1} parent=1 // pred_check_branch
      %52 = sbr.rel (0) target = $region61
    $region60: #{tpu_custom_call.1} parent=1 // pred_region
      _
    $region61: #{tpu_custom_call.1} parent=1 // pred_fallthru
      _
    // Predicated region
    $region62: #{tpu_custom_call.1} parent=1 // pred_check
      _
    $region63: #{tpu_custom_call.1} parent=1 // pred_check_branch
      %54 = sbr.rel (0) target = $region65
    $region64: #{tpu_custom_call.1} parent=1 // pred_region
      _
    $region65: #{tpu_custom_call.1} parent=1 // pred_fallthru
      _
    // Predicated region
    $region66: #{tpu_custom_call.1} parent=1 // pred_check
      _
    $region67: #{tpu_custom_call.1} parent=1 // pred_check_branch
      %56 = sbr.rel (0) target = $region69
    $region68: #{tpu_custom_call.1} parent=1 // pred_region
      _
    $region69: #{tpu_custom_call.1} parent=1 // pred_fallthru
      _
    %v58 = vld [vmem:[%s0] sm:$0xff]
    %v59 = vld [vmem:[%s0 + $0x8] sm:$0xff]
    %v60 = vld [vmem:[%s0 + $0x10] sm:$0xff]
    %v61 = vld [vmem:[%s0 + $0x18] sm:$0xff]
    %v62 = vld [vmem:[%s1] sm:$0xff]
    %v63 = vld [vmem:[%s1 + $0x8] sm:$0xff]
    %v64 = vld [vmem:[%s1 + $0x10] sm:$0xff]
    %v65 = vld [vmem:[%s1 + $0x18] sm:$0xff]
    %v66 = vld [vmem:[%s2] sm:$0x1]
    %v68 = vlaneseq
    %v69 = vshrl.u32 %v68, 7
    %v70 = vsub.s32 0, %v69
    %v71 = vrot.slane %v66, %v70
    %vm73 = vcmask 261120
    %v75 = vsel %vm73, %v58, 0
    %v78 = vsel %vm73, %v59, 0
    %v81 = vsel %vm73, %v60, 0
    %v84 = vsel %vm73, %v61, 0
    %86 = vmatprep.subr.mxu0 0.0
    %87 = vmatpush1.msra.mxu0 0.0
    %88 = vmatprep.subr.mxu0 0.0
    %89 = vmatpush1.msra.mxu0 0.0
    %90 = vmatprep.subr.mxu0 0.0
    %91 = vmatpush1.msra.mxu0 0.0
    %92 = vmatprep.subr.mxu0 0.0
    %93 = vmatpush1.msra.mxu0 0.0
    %94 = vmatprep.subr.mxu0 0.0
    %95 = vmatpush1.msra.mxu0 0.0
    %96 = vmatprep.subr.mxu0 0.0
    %97 = vmatpush1.msra.mxu0 0.0
    %98 = vmatprep.subr.mxu0 0.0
    %99 = vmatpush1.msra.mxu0 0.0
    %100 = vmatprep.subr.mxu0 0.0
    %101 = vmatpush1.msra.mxu0 0.0
    %102 = vmatprep.subr.mxu0 0.0
    %103 = vmatpush1.msra.mxu0 0.0
    %104 = vmatprep.subr.mxu0 0.0
    %105 = vmatpush1.msra.mxu0 0.0
    %106 = vmatprep.subr.mxu0 0.0
    %107 = vmatpush1.msra.mxu0 0.0
    %108 = vmatprep.subr.mxu0 0.0
    %109 = vmatpush1.msra.mxu0 0.0
    %110 = vmatprep.subr.mxu0 0.0
    %111 = vmatpush1.msra.mxu0 %v65
    %112 = vmatprep.subr.mxu0 0.0
    %113 = vmatpush1.msra.mxu0 %v64
    %114 = vmatprep.subr.mxu0 0.0
    %115 = vmatpush1.msra.mxu0 %v63
    %116 = vmatprep.subr.mxu0 0.0
    %117 = vmatpush1.msra.mxu0 %v62
    %118 = vmatprep.subr.mxu0 0.0
    %119 = vmatpush2.msra.mxu0 0.0
    %120 = vmatprep.subr.mxu0 0.0
    %121 = vmatpush2.msra.mxu0 0.0
    %122 = vmatprep.subr.mxu0 0.0
    %123 = vmatpush2.msra.mxu0 0.0
    %124 = vmatprep.subr.mxu0 0.0
    %125 = vmatpush2.msra.mxu0 0.0
    %126 = vmatprep.subr.mxu0 0.0
    %127 = vmatpush2.msra.mxu0 0.0
    %128 = vmatprep.subr.mxu0 0.0
    %129 = vmatpush2.msra.mxu0 0.0
    %130 = vmatprep.subr.mxu0 0.0
    %131 = vmatpush2.msra.mxu0 0.0
    %132 = vmatprep.subr.mxu0 0.0
    %133 = vmatpush2.msra.mxu0 0.0
    %134 = vmatprep.subr.mxu0 0.0
    %135 = vmatpush2.msra.mxu0 0.0
    %136 = vmatprep.subr.mxu0 0.0
    %137 = vmatpush2.msra.mxu0 0.0
    %138 = vmatprep.subr.mxu0 0.0
    %139 = vmatpush2.msra.mxu0 0.0
    %140 = vmatprep.subr.mxu0 0.0
    %141 = vmatpush2.msra.mxu0 0.0
    %142 = vmatprep.subr.mxu0 0.0
    %143 = vmatpush2.msra.mxu0 0.0
    %144 = vmatprep.subr.mxu0 0.0
    %145 = vmatpush2.msra.mxu0 0.0
    %146 = vmatprep.subr.mxu0 0.0
    %147 = vmatpush2.msra.mxu0 0.0
    %148 = vmatprep.subr.mxu0 0.0
    %149 = vmatpush2.msra.mxu0 0.0
    %150 = vmatprep.mubr.f32.mxu0 0.0
    %151 = vmatmul.mubr.f32.gmra.mxu0 %v75
    %v152 = vpop.f32.mrf.mxu0
    %v153 = vadd.f32 %v71, %v152
    %v154 = vpop.f32.mrf.mxu0
    %155 = vmatprep.mubr.f32.mxu0 0.0
    %156 = vmatmul.mubr.f32.gmra.mxu0 %v78
    %v157 = vpop.f32.mrf.mxu0
    %v158 = vadd.f32 %v71, %v157
    %v159 = vpop.f32.mrf.mxu0
    %160 = vmatprep.mubr.f32.mxu0 0.0
    %161 = vmatmul.mubr.f32.gmra.mxu0 %v81
    %v162 = vpop.f32.mrf.mxu0
    %v163 = vadd.f32 %v71, %v162
    %v164 = vpop.f32.mrf.mxu0
    %165 = vmatprep.mubr.f32.mxu0 0.0
    %166 = vmatmul.mubr.f32.gmra.mxu0 %v84
    %v167 = vpop.f32.mrf.mxu0
    %v168 = vadd.f32 %v71, %v167
    %v169 = vpop.f32.mrf.mxu0
    %170 = vdwg.mxu0
    %v171 = vld [vmem:[%s3] sm:$0xff]
    %v172 = vld [vmem:[%s3 + $0x8] sm:$0xff]
    %v173 = vld [vmem:[%s3 + $0x10] sm:$0xff]
    %v174 = vld [vmem:[%s3 + $0x18] sm:$0xff]
    %v175 = vld [vmem:[%s4] sm:$0x1]
    %v177 = vlaneseq
    %v178 = vshrl.u32 %v177, 7
    %v179 = vsub.s32 0, %v178
    %v180 = vrot.slane %v175, %v179
    %182 = vmatprep.subr.mxu0 0.0
    %183 = vmatpush1.msra.mxu0 0.0
    %184 = vmatprep.subr.mxu0 0.0
    %185 = vmatpush1.msra.mxu0 0.0
    %186 = vmatprep.subr.mxu0 0.0
    %187 = vmatpush1.msra.mxu0 0.0
    %188 = vmatprep.subr.mxu0 0.0
    %189 = vmatpush1.msra.mxu0 0.0
    %190 = vmatprep.subr.mxu0 0.0
    %191 = vmatpush1.msra.mxu0 0.0
    %192 = vmatprep.subr.mxu0 0.0
    %193 = vmatpush1.msra.mxu0 0.0
    %194 = vmatprep.subr.mxu0 0.0
    %195 = vmatpush1.msra.mxu0 0.0
    %196 = vmatprep.subr.mxu0 0.0
    %197 = vmatpush1.msra.mxu0 0.0
    %198 = vmatprep.subr.mxu0 0.0
    %199 = vmatpush1.msra.mxu0 0.0
    %200 = vmatprep.subr.mxu0 0.0
    %201 = vmatpush1.msra.mxu0 0.0
    %202 = vmatprep.subr.mxu0 0.0
    %203 = vmatpush1.msra.mxu0 0.0
    %204 = vmatprep.subr.mxu0 0.0
    %205 = vmatpush1.msra.mxu0 0.0
    %206 = vmatprep.subr.mxu0 0.0
    %207 = vmatpush1.msra.mxu0 %v174
    %208 = vmatprep.subr.mxu0 0.0
    %209 = vmatpush1.msra.mxu0 %v173
    %210 = vmatprep.subr.mxu0 0.0
    %211 = vmatpush1.msra.mxu0 %v172
    %212 = vmatprep.subr.mxu0 0.0
    %213 = vmatpush1.msra.mxu0 %v171
    %214 = vmatprep.subr.mxu0 0.0
    %215 = vmatpush2.msra.mxu0 0.0
    %216 = vmatprep.subr.mxu0 0.0
    %217 = vmatpush2.msra.mxu0 0.0
    %218 = vmatprep.subr.mxu0 0.0
    %219 = vmatpush2.msra.mxu0 0.0
    %220 = vmatprep.subr.mxu0 0.0
    %221 = vmatpush2.msra.mxu0 0.0
    %222 = vmatprep.subr.mxu0 0.0
    %223 = vmatpush2.msra.mxu0 0.0
    %224 = vmatprep.subr.mxu0 0.0
    %225 = vmatpush2.msra.mxu0 0.0
    %226 = vmatprep.subr.mxu0 0.0
    %227 = vmatpush2.msra.mxu0 0.0
    %228 = vmatprep.subr.mxu0 0.0
    %229 = vmatpush2.msra.mxu0 0.0
    %230 = vmatprep.subr.mxu0 0.0
    %231 = vmatpush2.msra.mxu0 0.0
    %232 = vmatprep.subr.mxu0 0.0
    %233 = vmatpush2.msra.mxu0 0.0
    %234 = vmatprep.subr.mxu0 0.0
    %235 = vmatpush2.msra.mxu0 0.0
    %236 = vmatprep.subr.mxu0 0.0
    %237 = vmatpush2.msra.mxu0 0.0
    %238 = vmatprep.subr.mxu0 0.0
    %239 = vmatpush2.msra.mxu0 0.0
    %240 = vmatprep.subr.mxu0 0.0
    %241 = vmatpush2.msra.mxu0 0.0
    %242 = vmatprep.subr.mxu0 0.0
    %243 = vmatpush2.msra.mxu0 0.0
    %244 = vmatprep.subr.mxu0 0.0
    %245 = vmatpush2.msra.mxu0 0.0
    %246 = vmatprep.mubr.f32.mxu0 0.0
    %247 = vmatmul.mubr.f32.gmra.mxu0 %v75
    %v248 = vpop.f32.mrf.mxu0
    %v249 = vadd.f32 %v180, %v248
    %v250 = vpop.f32.mrf.mxu0
    %251 = vmatprep.mubr.f32.mxu0 0.0
    %252 = vmatmul.mubr.f32.gmra.mxu0 %v78
    %v253 = vpop.f32.mrf.mxu0
    %v254 = vadd.f32 %v180, %v253
    %v255 = vpop.f32.mrf.mxu0
    %256 = vmatprep.mubr.f32.mxu0 0.0
    %257 = vmatmul.mubr.f32.gmra.mxu0 %v81
    %v258 = vpop.f32.mrf.mxu0
    %v259 = vadd.f32 %v180, %v258
    %v260 = vpop.f32.mrf.mxu0
    %261 = vmatprep.mubr.f32.mxu0 0.0
    %262 = vmatmul.mubr.f32.gmra.mxu0 %v84
    %v263 = vpop.f32.mrf.mxu0
    %v264 = vadd.f32 %v180, %v263
    %v265 = vpop.f32.mrf.mxu0
    %266 = vdwg.mxu0
    %v267 = vld [vmem:[%s5] sm:$0xff]
    %v268 = vld [vmem:[%s5 + $0x8] sm:$0xff]
    %v269 = vld [vmem:[%s5 + $0x10] sm:$0xff]
    %v270 = vld [vmem:[%s5 + $0x18] sm:$0xff]
    %v271 = vld [vmem:[%s6] sm:$0x1]
    %v273 = vlaneseq
    %v274 = vshrl.u32 %v273, 7
    %v275 = vsub.s32 0, %v274
    %v276 = vrot.slane %v271, %v275
    %278 = vmatprep.subr.mxu0 0.0
    %279 = vmatpush1.msra.mxu0 0.0
    %280 = vmatprep.subr.mxu0 0.0
    %281 = vmatpush1.msra.mxu0 0.0
    %282 = vmatprep.subr.mxu0 0.0
    %283 = vmatpush1.msra.mxu0 0.0
    %284 = vmatprep.subr.mxu0 0.0
    %285 = vmatpush1.msra.mxu0 0.0
    %286 = vmatprep.subr.mxu0 0.0
    %287 = vmatpush1.msra.mxu0 0.0
    %288 = vmatprep.subr.mxu0 0.0
    %289 = vmatpush1.msra.mxu0 0.0
    %290 = vmatprep.subr.mxu0 0.0
    %291 = vmatpush1.msra.mxu0 0.0
    %292 = vmatprep.subr.mxu0 0.0
    %293 = vmatpush1.msra.mxu0 0.0
    %294 = vmatprep.subr.mxu0 0.0
    %295 = vmatpush1.msra.mxu0 0.0
    %296 = vmatprep.subr.mxu0 0.0
    %297 = vmatpush1.msra.mxu0 0.0
    %298 = vmatprep.subr.mxu0 0.0
    %299 = vmatpush1.msra.mxu0 0.0
    %300 = vmatprep.subr.mxu0 0.0
    %301 = vmatpush1.msra.mxu0 0.0
    %302 = vmatprep.subr.mxu0 0.0
    %303 = vmatpush1.msra.mxu0 %v270
    %304 = vmatprep.subr.mxu0 0.0
    %305 = vmatpush1.msra.mxu0 %v269
    %306 = vmatprep.subr.mxu0 0.0
    %307 = vmatpush1.msra.mxu0 %v268
    %308 = vmatprep.subr.mxu0 0.0
    %309 = vmatpush1.msra.mxu0 %v267
    %310 = vmatprep.subr.mxu0 0.0
    %311 = vmatpush2.msra.mxu0 0.0
    %312 = vmatprep.subr.mxu0 0.0
    %313 = vmatpush2.msra.mxu0 0.0
    %314 = vmatprep.subr.mxu0 0.0
    %315 = vmatpush2.msra.mxu0 0.0
    %316 = vmatprep.subr.mxu0 0.0
    %317 = vmatpush2.msra.mxu0 0.0
    %318 = vmatprep.subr.mxu0 0.0
    %319 = vmatpush2.msra.mxu0 0.0
    %320 = vmatprep.subr.mxu0 0.0
    %321 = vmatpush2.msra.mxu0 0.0
    %322 = vmatprep.subr.mxu0 0.0
    %323 = vmatpush2.msra.mxu0 0.0
    %324 = vmatprep.subr.mxu0 0.0
    %325 = vmatpush2.msra.mxu0 0.0
    %326 = vmatprep.subr.mxu0 0.0
    %327 = vmatpush2.msra.mxu0 0.0
    %328 = vmatprep.subr.mxu0 0.0
    %329 = vmatpush2.msra.mxu0 0.0
    %330 = vmatprep.subr.mxu0 0.0
    %331 = vmatpush2.msra.mxu0 0.0
    %332 = vmatprep.subr.mxu0 0.0
    %333 = vmatpush2.msra.mxu0 0.0
    %334 = vmatprep.subr.mxu0 0.0
    %335 = vmatpush2.msra.mxu0 0.0
    %336 = vmatprep.subr.mxu0 0.0
    %337 = vmatpush2.msra.mxu0 0.0
    %338 = vmatprep.subr.mxu0 0.0
    %339 = vmatpush2.msra.mxu0 0.0
    %340 = vmatprep.subr.mxu0 0.0
    %341 = vmatpush2.msra.mxu0 0.0
    %342 = vmatprep.mubr.f32.mxu0 0.0
    %343 = vmatmul.mubr.f32.gmra.mxu0 %v75
    %v344 = vpop.f32.mrf.mxu0
    %v345 = vadd.f32 %v276, %v344
    %v346 = vpop.f32.mrf.mxu0
    %347 = vmatprep.mubr.f32.mxu0 0.0
    %348 = vmatmul.mubr.f32.gmra.mxu0 %v78
    %v349 = vpop.f32.mrf.mxu0
    %v350 = vadd.f32 %v276, %v349
    %v351 = vpop.f32.mrf.mxu0
    %352 = vmatprep.mubr.f32.mxu0 0.0
    %353 = vmatmul.mubr.f32.gmra.mxu0 %v81
    %v354 = vpop.f32.mrf.mxu0
    %v355 = vadd.f32 %v276, %v354
    %v356 = vpop.f32.mrf.mxu0
    %357 = vmatprep.mubr.f32.mxu0 0.0
    %358 = vmatmul.mubr.f32.gmra.mxu0 %v84
    %v359 = vpop.f32.mrf.mxu0
    %v360 = vadd.f32 %v276, %v359
    %v361 = vpop.f32.mrf.mxu0
    %362 = vdwg.mxu0
    %v363 = vld [vmem:[%s8] sm:$0x1]
    %v365 = vlaneseq
    %v366 = vshrl.u32 %v365, 7
    %v367 = vsub.s32 0, %v366
    %v368 = vrot.slane %v363, %v367
    %v370 = vadd.f32 %v368, 0.0
    %vm371 = vcmask 64512
    %v373 = vsel %vm371, %v153, 0
    %v376 = vsel %vm371, %v249, 0
    %378 = vmatprep.subr.mxu0 0.0
    %379 = vmatpush1.xpose.msra.mxu0 0.0
    %380 = vmatprep.subr.mxu0 0.0
    %381 = vmatpush1.xpose.msra.mxu0 0.0
    %382 = vmatprep.subr.mxu0 0.0
    %383 = vmatpush1.xpose.msra.mxu0 0.0
    %384 = vmatprep.subr.mxu0 0.0
    %385 = vmatpush1.xpose.msra.mxu0 0.0
    %386 = vmatprep.subr.mxu0 0.0
    %387 = vmatpush1.xpose.msra.mxu0 0.0
    %388 = vmatprep.subr.mxu0 0.0
    %389 = vmatpush1.xpose.msra.mxu0 0.0
    %390 = vmatprep.subr.mxu0 0.0
    %391 = vmatpush1.xpose.msra.mxu0 0.0
    %392 = vmatprep.subr.mxu0 0.0
    %393 = vmatpush1.xpose.msra.mxu0 0.0
    %394 = vmatprep.subr.mxu0 0.0
    %395 = vmatpush1.xpose.msra.mxu0 0.0
    %396 = vmatprep.subr.mxu0 0.0
    %397 = vmatpush1.xpose.msra.mxu0 0.0
    %398 = vmatprep.subr.mxu0 0.0
    %399 = vmatpush1.xpose.msra.mxu0 0.0
    %400 = vmatprep.subr.mxu0 0.0
    %401 = vmatpush1.xpose.msra.mxu0 0.0
    %402 = vmatprep.subr.mxu0 0.0
    %403 = vmatpush1.xpose.msra.mxu0 0.0
    %404 = vmatprep.subr.mxu0 0.0
    %405 = vmatpush1.xpose.msra.mxu0 0.0
    %406 = vmatprep.subr.mxu0 0.0
    %407 = vmatpush1.xpose.msra.mxu0 0.0
    %408 = vmatprep.subr.mxu0 0.0
    %409 = vmatpush1.xpose.msra.mxu0 %v376
    %410 = vmatprep.subr.mxu0 0.0
    %411 = vmatpush2.xpose.msra.mxu0 0.0
    %412 = vmatprep.subr.mxu0 0.0
    %413 = vmatpush2.xpose.msra.mxu0 0.0
    %414 = vmatprep.subr.mxu0 0.0
    %415 = vmatpush2.xpose.msra.mxu0 0.0
    %416 = vmatprep.subr.mxu0 0.0
    %417 = vmatpush2.xpose.msra.mxu0 0.0
    %418 = vmatprep.subr.mxu0 0.0
    %419 = vmatpush2.xpose.msra.mxu0 0.0
    %420 = vmatprep.subr.mxu0 0.0
    %421 = vmatpush2.xpose.msra.mxu0 0.0
    %422 = vmatprep.subr.mxu0 0.0
    %423 = vmatpush2.xpose.msra.mxu0 0.0
    %424 = vmatprep.subr.mxu0 0.0
    %425 = vmatpush2.xpose.msra.mxu0 0.0
    %426 = vmatprep.subr.mxu0 0.0
    %427 = vmatpush2.xpose.msra.mxu0 0.0
    %428 = vmatprep.subr.mxu0 0.0
    %429 = vmatpush2.xpose.msra.mxu0 0.0
    %430 = vmatprep.subr.mxu0 0.0
    %431 = vmatpush2.xpose.msra.mxu0 0.0
    %432 = vmatprep.subr.mxu0 0.0
    %433 = vmatpush2.xpose.msra.mxu0 0.0
    %434 = vmatprep.subr.mxu0 0.0
    %435 = vmatpush2.xpose.msra.mxu0 0.0
    %436 = vmatprep.subr.mxu0 0.0
    %437 = vmatpush2.xpose.msra.mxu0 0.0
    %438 = vmatprep.subr.mxu0 0.0
    %439 = vmatpush2.xpose.msra.mxu0 0.0
    %440 = vmatprep.subr.mxu0 0.0
    %441 = vmatpush2.xpose.msra.mxu0 0.0
    %442 = vmatprep.mubr.f32.mxu0 0.0
    %443 = vmatmul.mubr.f32.gmra.mxu0 %v373
    %v444 = vpop.f32.mrf.mxu0
    %v445 = vadd.f32 0.0, %v444
    %v446 = vpop.f32.mrf.mxu0
    %447 = vdwg.mxu0
    %v449 = vsel %vm371, %v158, 0
    %v452 = vsel %vm371, %v254, 0
    %454 = vmatprep.subr.mxu0 0.0
    %455 = vmatpush1.xpose.msra.mxu0 0.0
    %456 = vmatprep.subr.mxu0 0.0
    %457 = vmatpush1.xpose.msra.mxu0 0.0
    %458 = vmatprep.subr.mxu0 0.0
    %459 = vmatpush1.xpose.msra.mxu0 0.0
    %460 = vmatprep.subr.mxu0 0.0
    %461 = vmatpush1.xpose.msra.mxu0 0.0
    %462 = vmatprep.subr.mxu0 0.0
    %463 = vmatpush1.xpose.msra.mxu0 0.0
    %464 = vmatprep.subr.mxu0 0.0
    %465 = vmatpush1.xpose.msra.mxu0 0.0
    %466 = vmatprep.subr.mxu0 0.0
    %467 = vmatpush1.xpose.msra.mxu0 0.0
    %468 = vmatprep.subr.mxu0 0.0
    %469 = vmatpush1.xpose.msra.mxu0 0.0
    %470 = vmatprep.subr.mxu0 0.0
    %471 = vmatpush1.xpose.msra.mxu0 0.0
    %472 = vmatprep.subr.mxu0 0.0
    %473 = vmatpush1.xpose.msra.mxu0 0.0
    %474 = vmatprep.subr.mxu0 0.0
    %475 = vmatpush1.xpose.msra.mxu0 0.0
    %476 = vmatprep.subr.mxu0 0.0
    %477 = vmatpush1.xpose.msra.mxu0 0.0
    %478 = vmatprep.subr.mxu0 0.0
    %479 = vmatpush1.xpose.msra.mxu0 0.0
    %480 = vmatprep.subr.mxu0 0.0
    %481 = vmatpush1.xpose.msra.mxu0 0.0
    %482 = vmatprep.subr.mxu0 0.0
    %483 = vmatpush1.xpose.msra.mxu0 0.0
    %484 = vmatprep.subr.mxu0 0.0
    %485 = vmatpush1.xpose.msra.mxu0 %v452
    %486 = vmatprep.subr.mxu0 0.0
    %487 = vmatpush2.xpose.msra.mxu0 0.0
    %488 = vmatprep.subr.mxu0 0.0
    %489 = vmatpush2.xpose.msra.mxu0 0.0
    %490 = vmatprep.subr.mxu0 0.0
    %491 = vmatpush2.xpose.msra.mxu0 0.0
    %492 = vmatprep.subr.mxu0 0.0
    %493 = vmatpush2.xpose.msra.mxu0 0.0
    %494 = vmatprep.subr.mxu0 0.0
    %495 = vmatpush2.xpose.msra.mxu0 0.0
    %496 = vmatprep.subr.mxu0 0.0
    %497 = vmatpush2.xpose.msra.mxu0 0.0
    %498 = vmatprep.subr.mxu0 0.0
    %499 = vmatpush2.xpose.msra.mxu0 0.0
    %500 = vmatprep.subr.mxu0 0.0
    %501 = vmatpush2.xpose.msra.mxu0 0.0
    %502 = vmatprep.subr.mxu0 0.0
    %503 = vmatpush2.xpose.msra.mxu0 0.0
    %504 = vmatprep.subr.mxu0 0.0
    %505 = vmatpush2.xpose.msra.mxu0 0.0
    %506 = vmatprep.subr.mxu0 0.0
    %507 = vmatpush2.xpose.msra.mxu0 0.0
    %508 = vmatprep.subr.mxu0 0.0
    %509 = vmatpush2.xpose.msra.mxu0 0.0
    %510 = vmatprep.subr.mxu0 0.0
    %511 = vmatpush2.xpose.msra.mxu0 0.0
    %512 = vmatprep.subr.mxu0 0.0
    %513 = vmatpush2.xpose.msra.mxu0 0.0
    %514 = vmatprep.subr.mxu0 0.0
    %515 = vmatpush2.xpose.msra.mxu0 0.0
    %516 = vmatprep.subr.mxu0 0.0
    %517 = vmatpush2.xpose.msra.mxu0 0.0
    %518 = vmatprep.mubr.f32.mxu0 0.0
    %519 = vmatmul.mubr.f32.gmra.mxu0 %v449
    %v520 = vpop.f32.mrf.mxu0
    %v521 = vadd.f32 0.0, %v520
    %v522 = vpop.f32.mrf.mxu0
    %523 = vdwg.mxu0
    %v525 = vsel %vm371, %v163, 0
    %v528 = vsel %vm371, %v259, 0
    %530 = vmatprep.subr.mxu0 0.0
    %531 = vmatpush1.xpose.msra.mxu0 0.0
    %532 = vmatprep.subr.mxu0 0.0
    %533 = vmatpush1.xpose.msra.mxu0 0.0
    %534 = vmatprep.subr.mxu0 0.0
    %535 = vmatpush1.xpose.msra.mxu0 0.0
    %536 = vmatprep.subr.mxu0 0.0
    %537 = vmatpush1.xpose.msra.mxu0 0.0
    %538 = vmatprep.subr.mxu0 0.0
    %539 = vmatpush1.xpose.msra.mxu0 0.0
    %540 = vmatprep.subr.mxu0 0.0
    %541 = vmatpush1.xpose.msra.mxu0 0.0
    %542 = vmatprep.subr.mxu0 0.0
    %543 = vmatpush1.xpose.msra.mxu0 0.0
    %544 = vmatprep.subr.mxu0 0.0
    %545 = vmatpush1.xpose.msra.mxu0 0.0
    %546 = vmatprep.subr.mxu0 0.0
    %547 = vmatpush1.xpose.msra.mxu0 0.0
    %548 = vmatprep.subr.mxu0 0.0
    %549 = vmatpush1.xpose.msra.mxu0 0.0
    %550 = vmatprep.subr.mxu0 0.0
    %551 = vmatpush1.xpose.msra.mxu0 0.0
    %552 = vmatprep.subr.mxu0 0.0
    %553 = vmatpush1.xpose.msra.mxu0 0.0
    %554 = vmatprep.subr.mxu0 0.0
    %555 = vmatpush1.xpose.msra.mxu0 0.0
    %556 = vmatprep.subr.mxu0 0.0
    %557 = vmatpush1.xpose.msra.mxu0 0.0
    %558 = vmatprep.subr.mxu0 0.0
    %559 = vmatpush1.xpose.msra.mxu0 0.0
    %560 = vmatprep.subr.mxu0 0.0
    %561 = vmatpush1.xpose.msra.mxu0 %v528
    %562 = vmatprep.subr.mxu0 0.0
    %563 = vmatpush2.xpose.msra.mxu0 0.0
    %564 = vmatprep.subr.mxu0 0.0
    %565 = vmatpush2.xpose.msra.mxu0 0.0
    %566 = vmatprep.subr.mxu0 0.0
    %567 = vmatpush2.xpose.msra.mxu0 0.0
    %568 = vmatprep.subr.mxu0 0.0
    %569 = vmatpush2.xpose.msra.mxu0 0.0
    %570 = vmatprep.subr.mxu0 0.0
    %571 = vmatpush2.xpose.msra.mxu0 0.0
    %572 = vmatprep.subr.mxu0 0.0
    %573 = vmatpush2.xpose.msra.mxu0 0.0
    %574 = vmatprep.subr.mxu0 0.0
    %575 = vmatpush2.xpose.msra.mxu0 0.0
    %576 = vmatprep.subr.mxu0 0.0
    %577 = vmatpush2.xpose.msra.mxu0 0.0
    %578 = vmatprep.subr.mxu0 0.0
    %579 = vmatpush2.xpose.msra.mxu0 0.0
    %580 = vmatprep.subr.mxu0 0.0
    %581 = vmatpush2.xpose.msra.mxu0 0.0
    %582 = vmatprep.subr.mxu0 0.0
    %583 = vmatpush2.xpose.msra.mxu0 0.0
    %584 = vmatprep.subr.mxu0 0.0
    %585 = vmatpush2.xpose.msra.mxu0 0.0
    %586 = vmatprep.subr.mxu0 0.0
    %587 = vmatpush2.xpose.msra.mxu0 0.0
    %588 = vmatprep.subr.mxu0 0.0
    %589 = vmatpush2.xpose.msra.mxu0 0.0
    %590 = vmatprep.subr.mxu0 0.0
    %591 = vmatpush2.xpose.msra.mxu0 0.0
    %592 = vmatprep.subr.mxu0 0.0
    %593 = vmatpush2.xpose.msra.mxu0 0.0
    %594 = vmatprep.mubr.f32.mxu0 0.0
    %595 = vmatmul.mubr.f32.gmra.mxu0 %v525
    %v596 = vpop.f32.mrf.mxu0
    %v597 = vadd.f32 0.0, %v596
    %v598 = vpop.f32.mrf.mxu0
    %599 = vdwg.mxu0
    %v601 = vsel %vm371, %v168, 0
    %v604 = vsel %vm371, %v264, 0
    %606 = vmatprep.subr.mxu0 0.0
    %607 = vmatpush1.xpose.msra.mxu0 0.0
    %608 = vmatprep.subr.mxu0 0.0
    %609 = vmatpush1.xpose.msra.mxu0 0.0
    %610 = vmatprep.subr.mxu0 0.0
    %611 = vmatpush1.xpose.msra.mxu0 0.0
    %612 = vmatprep.subr.mxu0 0.0
    %613 = vmatpush1.xpose.msra.mxu0 0.0
    %614 = vmatprep.subr.mxu0 0.0
    %615 = vmatpush1.xpose.msra.mxu0 0.0
    %616 = vmatprep.subr.mxu0 0.0
    %617 = vmatpush1.xpose.msra.mxu0 0.0
    %618 = vmatprep.subr.mxu0 0.0
    %619 = vmatpush1.xpose.msra.mxu0 0.0
    %620 = vmatprep.subr.mxu0 0.0
    %621 = vmatpush1.xpose.msra.mxu0 0.0
    %622 = vmatprep.subr.mxu0 0.0
    %623 = vmatpush1.xpose.msra.mxu0 0.0
    %624 = vmatprep.subr.mxu0 0.0
    %625 = vmatpush1.xpose.msra.mxu0 0.0
    %626 = vmatprep.subr.mxu0 0.0
    %627 = vmatpush1.xpose.msra.mxu0 0.0
    %628 = vmatprep.subr.mxu0 0.0
    %629 = vmatpush1.xpose.msra.mxu0 0.0
    %630 = vmatprep.subr.mxu0 0.0
    %631 = vmatpush1.xpose.msra.mxu0 0.0
    %632 = vmatprep.subr.mxu0 0.0
    %633 = vmatpush1.xpose.msra.mxu0 0.0
    %634 = vmatprep.subr.mxu0 0.0
    %635 = vmatpush1.xpose.msra.mxu0 0.0
    %636 = vmatprep.subr.mxu0 0.0
    %637 = vmatpush1.xpose.msra.mxu0 %v604
    %638 = vmatprep.subr.mxu0 0.0
    %639 = vmatpush2.xpose.msra.mxu0 0.0
    %640 = vmatprep.subr.mxu0 0.0
    %641 = vmatpush2.xpose.msra.mxu0 0.0
    %642 = vmatprep.subr.mxu0 0.0
    %643 = vmatpush2.xpose.msra.mxu0 0.0
    %644 = vmatprep.subr.mxu0 0.0
    %645 = vmatpush2.xpose.msra.mxu0 0.0
    %646 = vmatprep.subr.mxu0 0.0
    %647 = vmatpush2.xpose.msra.mxu0 0.0
    %648 = vmatprep.subr.mxu0 0.0
    %649 = vmatpush2.xpose.msra.mxu0 0.0
    %650 = vmatprep.subr.mxu0 0.0
    %651 = vmatpush2.xpose.msra.mxu0 0.0
    %652 = vmatprep.subr.mxu0 0.0
    %653 = vmatpush2.xpose.msra.mxu0 0.0
    %654 = vmatprep.subr.mxu0 0.0
    %655 = vmatpush2.xpose.msra.mxu0 0.0
    %656 = vmatprep.subr.mxu0 0.0
    %657 = vmatpush2.xpose.msra.mxu0 0.0
    %658 = vmatprep.subr.mxu0 0.0
    %659 = vmatpush2.xpose.msra.mxu0 0.0
    %660 = vmatprep.subr.mxu0 0.0
    %661 = vmatpush2.xpose.msra.mxu0 0.0
    %662 = vmatprep.subr.mxu0 0.0
    %663 = vmatpush2.xpose.msra.mxu0 0.0
    %664 = vmatprep.subr.mxu0 0.0
    %665 = vmatpush2.xpose.msra.mxu0 0.0
    %666 = vmatprep.subr.mxu0 0.0
    %667 = vmatpush2.xpose.msra.mxu0 0.0
    %668 = vmatprep.subr.mxu0 0.0
    %669 = vmatpush2.xpose.msra.mxu0 0.0
    %670 = vmatprep.mubr.f32.mxu0 0.0
    %671 = vmatmul.mubr.f32.gmra.mxu0 %v601
    %v672 = vpop.f32.mrf.mxu0
    %v673 = vadd.f32 0.0, %v672
    %v674 = vpop.f32.mrf.mxu0
    %675 = vdwg.mxu0
    %v676 = vsel %vm371, %v445, -inf
    %677 = vmax.xlane.f32.xlu0 %v676
    %v678 = vpop.xlane.xlu0 %677
    %v679 = vsel %vm371, %v521, -inf
    %680 = vmax.xlane.f32.xlu0 %v679
    %v681 = vpop.xlane.xlu0 %680
    %v682 = vsel %vm371, %v597, -inf
    %683 = vmax.xlane.f32.xlu0 %v682
    %v684 = vpop.xlane.xlu0 %683
    %v685 = vsel %vm371, %v673, -inf
    %686 = vmax.xlane.f32.xlu0 %v685
    %v687 = vpop.xlane.xlu0 %686
    %v688 = vsub.f32 %v445, %v678
    %v689 = vsub.f32 %v521, %v681
    %v690 = vsub.f32 %v597, %v684
    %v691 = vsub.f32 %v673, %v687
    %v692 = vmul.f32 %v688, 1.442695
    %v693 = vpow.pop %v692
    %v694 = vmul.f32 %v689, 1.442695
    %v695 = vpow.pop %v694
    %v696 = vmul.f32 %v690, 1.442695
    %v697 = vpow.pop %v696
    %v698 = vmul.f32 %v691, 1.442695
    %v699 = vpow.pop %v698
    %v700 = vsel %vm371, %v693, 0.0
    %701 = vadd.xlane.f32.xlu0 %v700
    %v702 = vpop.xlane.xlu0 %701
    %v703 = vsel %vm371, %v695, 0.0
    %704 = vadd.xlane.f32.xlu0 %v703
    %v705 = vpop.xlane.xlu0 %704
    %v706 = vsel %vm371, %v697, 0.0
    %707 = vadd.xlane.f32.xlu0 %v706
    %v708 = vpop.xlane.xlu0 %707
    %v709 = vsel %vm371, %v699, 0.0
    %710 = vadd.xlane.f32.xlu0 %v709
    %v711 = vpop.xlane.xlu0 %710
    %v712 = vrcp.pop %v702
    %v713 = vrcp.pop %v705
    %v714 = vrcp.pop %v708
    %v715 = vrcp.pop %v711
    %v716 = vmul.f32 %v693, %v712
    %v717 = vmul.f32 %v695, %v713
    %v718 = vmul.f32 %v697, %v714
    %v719 = vmul.f32 %v699, %v715
    %v721 = vsel %vm371, %v716, 0
    %723 = vmatprep.subr.mxu0 0.0
    %724 = vmatpush1.msra.mxu0 0.0
    %725 = vmatprep.subr.mxu0 0.0
    %726 = vmatpush1.msra.mxu0 0.0
    %727 = vmatprep.subr.mxu0 0.0
    %728 = vmatpush1.msra.mxu0 0.0
    %729 = vmatprep.subr.mxu0 0.0
    %730 = vmatpush1.msra.mxu0 0.0
    %731 = vmatprep.subr.mxu0 0.0
    %732 = vmatpush1.msra.mxu0 0.0
    %733 = vmatprep.subr.mxu0 0.0
    %734 = vmatpush1.msra.mxu0 0.0
    %735 = vmatprep.subr.mxu0 0.0
    %736 = vmatpush1.msra.mxu0 0.0
    %737 = vmatprep.subr.mxu0 0.0
    %738 = vmatpush1.msra.mxu0 0.0
    %739 = vmatprep.subr.mxu0 0.0
    %740 = vmatpush1.msra.mxu0 0.0
    %741 = vmatprep.subr.mxu0 0.0
    %742 = vmatpush1.msra.mxu0 0.0
    %743 = vmatprep.subr.mxu0 0.0
    %744 = vmatpush1.msra.mxu0 0.0
    %745 = vmatprep.subr.mxu0 0.0
    %746 = vmatpush1.msra.mxu0 0.0
    %747 = vmatprep.subr.mxu0 0.0
    %748 = vmatpush1.msra.mxu0 0.0
    %749 = vmatprep.subr.mxu0 0.0
    %750 = vmatpush1.msra.mxu0 0.0
    %751 = vmatprep.subr.mxu0 0.0
    %752 = vmatpush1.msra.mxu0 0.0
    %753 = vmatprep.subr.mxu0 0.0
    %754 = vmatpush1.msra.mxu0 %v345
    %755 = vmatprep.subr.mxu0 0.0
    %756 = vmatpush2.msra.mxu0 0.0
    %757 = vmatprep.subr.mxu0 0.0
    %758 = vmatpush2.msra.mxu0 0.0
    %759 = vmatprep.subr.mxu0 0.0
    %760 = vmatpush2.msra.mxu0 0.0
    %761 = vmatprep.subr.mxu0 0.0
    %762 = vmatpush2.msra.mxu0 0.0
    %763 = vmatprep.subr.mxu0 0.0
    %764 = vmatpush2.msra.mxu0 0.0
    %765 = vmatprep.subr.mxu0 0.0
    %766 = vmatpush2.msra.mxu0 0.0
    %767 = vmatprep.subr.mxu0 0.0
    %768 = vmatpush2.msra.mxu0 0.0
    %769 = vmatprep.subr.mxu0 0.0
    %770 = vmatpush2.msra.mxu0 0.0
    %771 = vmatprep.subr.mxu0 0.0
    %772 = vmatpush2.msra.mxu0 0.0
    %773 = vmatprep.subr.mxu0 0.0
    %774 = vmatpush2.msra.mxu0 0.0
    %775 = vmatprep.subr.mxu0 0.0
    %776 = vmatpush2.msra.mxu0 0.0
    %777 = vmatprep.subr.mxu0 0.0
    %778 = vmatpush2.msra.mxu0 0.0
    %779 = vmatprep.subr.mxu0 0.0
    %780 = vmatpush2.msra.mxu0 0.0
    %781 = vmatprep.subr.mxu0 0.0
    %782 = vmatpush2.msra.mxu0 0.0
    %783 = vmatprep.subr.mxu0 0.0
    %784 = vmatpush2.msra.mxu0 0.0
    %785 = vmatprep.subr.mxu0 0.0
    %786 = vmatpush2.msra.mxu0 0.0
    %787 = vmatprep.mubr.f32.mxu0 0.0
    %788 = vmatmul.mubr.f32.gmra.mxu0 %v721
    %v789 = vpop.f32.mrf.mxu0
    %v790 = vadd.f32 0.0, %v789
    %v791 = vpop.f32.mrf.mxu0
    %792 = vdwg.mxu0
    %v794 = vsel %vm371, %v717, 0
    %796 = vmatprep.subr.mxu0 0.0
    %797 = vmatpush1.msra.mxu0 0.0
    %798 = vmatprep.subr.mxu0 0.0
    %799 = vmatpush1.msra.mxu0 0.0
    %800 = vmatprep.subr.mxu0 0.0
    %801 = vmatpush1.msra.mxu0 0.0
    %802 = vmatprep.subr.mxu0 0.0
    %803 = vmatpush1.msra.mxu0 0.0
    %804 = vmatprep.subr.mxu0 0.0
    %805 = vmatpush1.msra.mxu0 0.0
    %806 = vmatprep.subr.mxu0 0.0
    %807 = vmatpush1.msra.mxu0 0.0
    %808 = vmatprep.subr.mxu0 0.0
    %809 = vmatpush1.msra.mxu0 0.0
    %810 = vmatprep.subr.mxu0 0.0
    %811 = vmatpush1.msra.mxu0 0.0
    %812 = vmatprep.subr.mxu0 0.0
    %813 = vmatpush1.msra.mxu0 0.0
    %814 = vmatprep.subr.mxu0 0.0
    %815 = vmatpush1.msra.mxu0 0.0
    %816 = vmatprep.subr.mxu0 0.0
    %817 = vmatpush1.msra.mxu0 0.0
    %818 = vmatprep.subr.mxu0 0.0
    %819 = vmatpush1.msra.mxu0 0.0
    %820 = vmatprep.subr.mxu0 0.0
    %821 = vmatpush1.msra.mxu0 0.0
    %822 = vmatprep.subr.mxu0 0.0
    %823 = vmatpush1.msra.mxu0 0.0
    %824 = vmatprep.subr.mxu0 0.0
    %825 = vmatpush1.msra.mxu0 0.0
    %826 = vmatprep.subr.mxu0 0.0
    %827 = vmatpush1.msra.mxu0 %v350
    %828 = vmatprep.subr.mxu0 0.0
    %829 = vmatpush2.msra.mxu0 0.0
    %830 = vmatprep.subr.mxu0 0.0
    %831 = vmatpush2.msra.mxu0 0.0
    %832 = vmatprep.subr.mxu0 0.0
    %833 = vmatpush2.msra.mxu0 0.0
    %834 = vmatprep.subr.mxu0 0.0
    %835 = vmatpush2.msra.mxu0 0.0
    %836 = vmatprep.subr.mxu0 0.0
    %837 = vmatpush2.msra.mxu0 0.0
    %838 = vmatprep.subr.mxu0 0.0
    %839 = vmatpush2.msra.mxu0 0.0
    %840 = vmatprep.subr.mxu0 0.0
    %841 = vmatpush2.msra.mxu0 0.0
    %842 = vmatprep.subr.mxu0 0.0
    %843 = vmatpush2.msra.mxu0 0.0
    %844 = vmatprep.subr.mxu0 0.0
    %845 = vmatpush2.msra.mxu0 0.0
    %846 = vmatprep.subr.mxu0 0.0
    %847 = vmatpush2.msra.mxu0 0.0
    %848 = vmatprep.subr.mxu0 0.0
    %849 = vmatpush2.msra.mxu0 0.0
    %850 = vmatprep.subr.mxu0 0.0
    %851 = vmatpush2.msra.mxu0 0.0
    %852 = vmatprep.subr.mxu0 0.0
    %853 = vmatpush2.msra.mxu0 0.0
    %854 = vmatprep.subr.mxu0 0.0
    %855 = vmatpush2.msra.mxu0 0.0
    %856 = vmatprep.subr.mxu0 0.0
    %857 = vmatpush2.msra.mxu0 0.0
    %858 = vmatprep.subr.mxu0 0.0
    %859 = vmatpush2.msra.mxu0 0.0
    %860 = vmatprep.mubr.f32.mxu0 0.0
    %861 = vmatmul.mubr.f32.gmra.mxu0 %v794
    %v862 = vpop.f32.mrf.mxu0
    %v863 = vadd.f32 0.0, %v862
    %v864 = vpop.f32.mrf.mxu0
    %865 = vdwg.mxu0
    %v867 = vsel %vm371, %v718, 0
    %869 = vmatprep.subr.mxu0 0.0
    %870 = vmatpush1.msra.mxu0 0.0
    %871 = vmatprep.subr.mxu0 0.0
    %872 = vmatpush1.msra.mxu0 0.0
    %873 = vmatprep.subr.mxu0 0.0
    %874 = vmatpush1.msra.mxu0 0.0
    %875 = vmatprep.subr.mxu0 0.0
    %876 = vmatpush1.msra.mxu0 0.0
    %877 = vmatprep.subr.mxu0 0.0
    %878 = vmatpush1.msra.mxu0 0.0
    %879 = vmatprep.subr.mxu0 0.0
    %880 = vmatpush1.msra.mxu0 0.0
    %881 = vmatprep.subr.mxu0 0.0
    %882 = vmatpush1.msra.mxu0 0.0
    %883 = vmatprep.subr.mxu0 0.0
    %884 = vmatpush1.msra.mxu0 0.0
    %885 = vmatprep.subr.mxu0 0.0
    %886 = vmatpush1.msra.mxu0 0.0
    %887 = vmatprep.subr.mxu0 0.0
    %888 = vmatpush1.msra.mxu0 0.0
    %889 = vmatprep.subr.mxu0 0.0
    %890 = vmatpush1.msra.mxu0 0.0
    %891 = vmatprep.subr.mxu0 0.0
    %892 = vmatpush1.msra.mxu0 0.0
    %893 = vmatprep.subr.mxu0 0.0
    %894 = vmatpush1.msra.mxu0 0.0
    %895 = vmatprep.subr.mxu0 0.0
    %896 = vmatpush1.msra.mxu0 0.0
    %897 = vmatprep.subr.mxu0 0.0
    %898 = vmatpush1.msra.mxu0 0.0
    %899 = vmatprep.subr.mxu0 0.0
    %900 = vmatpush1.msra.mxu0 %v355
    %901 = vmatprep.subr.mxu0 0.0
    %902 = vmatpush2.msra.mxu0 0.0
    %903 = vmatprep.subr.mxu0 0.0
    %904 = vmatpush2.msra.mxu0 0.0
    %905 = vmatprep.subr.mxu0 0.0
    %906 = vmatpush2.msra.mxu0 0.0
    %907 = vmatprep.subr.mxu0 0.0
    %908 = vmatpush2.msra.mxu0 0.0
    %909 = vmatprep.subr.mxu0 0.0
    %910 = vmatpush2.msra.mxu0 0.0
    %911 = vmatprep.subr.mxu0 0.0
    %912 = vmatpush2.msra.mxu0 0.0
    %913 = vmatprep.subr.mxu0 0.0
    %914 = vmatpush2.msra.mxu0 0.0
    %915 = vmatprep.subr.mxu0 0.0
    %916 = vmatpush2.msra.mxu0 0.0
    %917 = vmatprep.subr.mxu0 0.0
    %918 = vmatpush2.msra.mxu0 0.0
    %919 = vmatprep.subr.mxu0 0.0
    %920 = vmatpush2.msra.mxu0 0.0
    %921 = vmatprep.subr.mxu0 0.0
    %922 = vmatpush2.msra.mxu0 0.0
    %923 = vmatprep.subr.mxu0 0.0
    %924 = vmatpush2.msra.mxu0 0.0
    %925 = vmatprep.subr.mxu0 0.0
    %926 = vmatpush2.msra.mxu0 0.0
    %927 = vmatprep.subr.mxu0 0.0
    %928 = vmatpush2.msra.mxu0 0.0
    %929 = vmatprep.subr.mxu0 0.0
    %930 = vmatpush2.msra.mxu0 0.0
    %931 = vmatprep.subr.mxu0 0.0
    %932 = vmatpush2.msra.mxu0 0.0
    %933 = vmatprep.mubr.f32.mxu0 0.0
    %934 = vmatmul.mubr.f32.gmra.mxu0 %v867
    %v935 = vpop.f32.mrf.mxu0
    %v936 = vadd.f32 0.0, %v935
    %v937 = vpop.f32.mrf.mxu0
    %938 = vdwg.mxu0
    %v940 = vsel %vm371, %v719, 0
    %942 = vmatprep.subr.mxu0 0.0
    %943 = vmatpush1.msra.mxu0 0.0
    %944 = vmatprep.subr.mxu0 0.0
    %945 = vmatpush1.msra.mxu0 0.0
    %946 = vmatprep.subr.mxu0 0.0
    %947 = vmatpush1.msra.mxu0 0.0
    %948 = vmatprep.subr.mxu0 0.0
    %949 = vmatpush1.msra.mxu0 0.0
    %950 = vmatprep.subr.mxu0 0.0
    %951 = vmatpush1.msra.mxu0 0.0
    %952 = vmatprep.subr.mxu0 0.0
    %953 = vmatpush1.msra.mxu0 0.0
    %954 = vmatprep.subr.mxu0 0.0
    %955 = vmatpush1.msra.mxu0 0.0
    %956 = vmatprep.subr.mxu0 0.0
    %957 = vmatpush1.msra.mxu0 0.0
    %958 = vmatprep.subr.mxu0 0.0
    %959 = vmatpush1.msra.mxu0 0.0
    %960 = vmatprep.subr.mxu0 0.0
    %961 = vmatpush1.msra.mxu0 0.0
    %962 = vmatprep.subr.mxu0 0.0
    %963 = vmatpush1.msra.mxu0 0.0
    %964 = vmatprep.subr.mxu0 0.0
    %965 = vmatpush1.msra.mxu0 0.0
    %966 = vmatprep.subr.mxu0 0.0
    %967 = vmatpush1.msra.mxu0 0.0
    %968 = vmatprep.subr.mxu0 0.0
    %969 = vmatpush1.msra.mxu0 0.0
    %970 = vmatprep.subr.mxu0 0.0
    %971 = vmatpush1.msra.mxu0 0.0
    %972 = vmatprep.subr.mxu0 0.0
    %973 = vmatpush1.msra.mxu0 %v360
    %974 = vmatprep.subr.mxu0 0.0
    %975 = vmatpush2.msra.mxu0 0.0
    %976 = vmatprep.subr.mxu0 0.0
    %977 = vmatpush2.msra.mxu0 0.0
    %978 = vmatprep.subr.mxu0 0.0
    %979 = vmatpush2.msra.mxu0 0.0
    %980 = vmatprep.subr.mxu0 0.0
    %981 = vmatpush2.msra.mxu0 0.0
    %982 = vmatprep.subr.mxu0 0.0
    %983 = vmatpush2.msra.mxu0 0.0
    %984 = vmatprep.subr.mxu0 0.0
    %985 = vmatpush2.msra.mxu0 0.0
    %986 = vmatprep.subr.mxu0 0.0
    %987 = vmatpush2.msra.mxu0 0.0
    %988 = vmatprep.subr.mxu0 0.0
    %989 = vmatpush2.msra.mxu0 0.0
    %990 = vmatprep.subr.mxu0 0.0
    %991 = vmatpush2.msra.mxu0 0.0
    %992 = vmatprep.subr.mxu0 0.0
    %993 = vmatpush2.msra.mxu0 0.0
    %994 = vmatprep.subr.mxu0 0.0
    %995 = vmatpush2.msra.mxu0 0.0
    %996 = vmatprep.subr.mxu0 0.0
    %997 = vmatpush2.msra.mxu0 0.0
    %998 = vmatprep.subr.mxu0 0.0
    %999 = vmatpush2.msra.mxu0 0.0
    %1000 = vmatprep.subr.mxu0 0.0
    %1001 = vmatpush2.msra.mxu0 0.0
    %1002 = vmatprep.subr.mxu0 0.0
    %1003 = vmatpush2.msra.mxu0 0.0
    %1004 = vmatprep.subr.mxu0 0.0
    %1005 = vmatpush2.msra.mxu0 0.0
    %1006 = vmatprep.mubr.f32.mxu0 0.0
    %1007 = vmatmul.mubr.f32.gmra.mxu0 %v940
    %v1008 = vpop.f32.mrf.mxu0
    %v1009 = vadd.f32 0.0, %v1008
    %v1010 = vpop.f32.mrf.mxu0
    %1011 = vdwg.mxu0
    %v1012 = vld [vmem:[%s7] sm:$0xff]
    %v1014 = vsel %vm371, %v790, 0
    %v1017 = vsel %vm371, %v863, 0
    %v1020 = vsel %vm371, %v936, 0
    %v1023 = vsel %vm371, %v1009, 0
    %1025 = vmatprep.subr.mxu0 0.0
    %1026 = vmatpush1.msra.mxu0 0.0
    %1027 = vmatprep.subr.mxu0 0.0
    %1028 = vmatpush1.msra.mxu0 0.0
    %1029 = vmatprep.subr.mxu0 0.0
    %1030 = vmatpush1.msra.mxu0 0.0
    %1031 = vmatprep.subr.mxu0 0.0
    %1032 = vmatpush1.msra.mxu0 0.0
    %1033 = vmatprep.subr.mxu0 0.0
    %1034 = vmatpush1.msra.mxu0 0.0
    %1035 = vmatprep.subr.mxu0 0.0
    %1036 = vmatpush1.msra.mxu0 0.0
    %1037 = vmatprep.subr.mxu0 0.0
    %1038 = vmatpush1.msra.mxu0 0.0
    %1039 = vmatprep.subr.mxu0 0.0
    %1040 = vmatpush1.msra.mxu0 0.0
    %1041 = vmatprep.subr.mxu0 0.0
    %1042 = vmatpush1.msra.mxu0 0.0
    %1043 = vmatprep.subr.mxu0 0.0
    %1044 = vmatpush1.msra.mxu0 0.0
    %1045 = vmatprep.subr.mxu0 0.0
    %1046 = vmatpush1.msra.mxu0 0.0
    %1047 = vmatprep.subr.mxu0 0.0
    %1048 = vmatpush1.msra.mxu0 0.0
    %1049 = vmatprep.subr.mxu0 0.0
    %1050 = vmatpush1.msra.mxu0 0.0
    %1051 = vmatprep.subr.mxu0 0.0
    %1052 = vmatpush1.msra.mxu0 0.0
    %1053 = vmatprep.subr.mxu0 0.0
    %1054 = vmatpush1.msra.mxu0 0.0
    %1055 = vmatprep.subr.mxu0 0.0
    %1056 = vmatpush1.msra.mxu0 %v1012
    %1057 = vmatprep.subr.mxu0 0.0
    %1058 = vmatpush2.msra.mxu0 0.0
    %1059 = vmatprep.subr.mxu0 0.0
    %1060 = vmatpush2.msra.mxu0 0.0
    %1061 = vmatprep.subr.mxu0 0.0
    %1062 = vmatpush2.msra.mxu0 0.0
    %1063 = vmatprep.subr.mxu0 0.0
    %1064 = vmatpush2.msra.mxu0 0.0
    %1065 = vmatprep.subr.mxu0 0.0
    %1066 = vmatpush2.msra.mxu0 0.0
    %1067 = vmatprep.subr.mxu0 0.0
    %1068 = vmatpush2.msra.mxu0 0.0
    %1069 = vmatprep.subr.mxu0 0.0
    %1070 = vmatpush2.msra.mxu0 0.0
    %1071 = vmatprep.subr.mxu0 0.0
    %1072 = vmatpush2.msra.mxu0 0.0
    %1073 = vmatprep.subr.mxu0 0.0
    %1074 = vmatpush2.msra.mxu0 0.0
    %1075 = vmatprep.subr.mxu0 0.0
    %1076 = vmatpush2.msra.mxu0 0.0
    %1077 = vmatprep.subr.mxu0 0.0
    %1078 = vmatpush2.msra.mxu0 0.0
    %1079 = vmatprep.subr.mxu0 0.0
    %1080 = vmatpush2.msra.mxu0 0.0
    %1081 = vmatprep.subr.mxu0 0.0
    %1082 = vmatpush2.msra.mxu0 0.0
    %1083 = vmatprep.subr.mxu0 0.0
    %1084 = vmatpush2.msra.mxu0 0.0
    %1085 = vmatprep.subr.mxu0 0.0
    %1086 = vmatpush2.msra.mxu0 0.0
    %1087 = vmatprep.subr.mxu0 0.0
    %1088 = vmatpush2.msra.mxu0 0.0
    %1089 = vmatprep.mubr.f32.mxu0 0.0
    %1090 = vmatmul.mubr.f32.gmra.mxu0 %v1014
    %v1091 = vpop.f32.mrf.mxu0
    %v1092 = vadd.f32 0.0, %v1091
    %v1093 = vpop.f32.mrf.mxu0
    %1094 = vmatprep.mubr.f32.mxu0 0.0
    %1095 = vmatmul.mubr.f32.gmra.mxu0 %v1017
    %v1096 = vpop.f32.mrf.mxu0
    %v1097 = vadd.f32 0.0, %v1096
    %v1098 = vpop.f32.mrf.mxu0
    %1099 = vmatprep.mubr.f32.mxu0 0.0
    %1100 = vmatmul.mubr.f32.gmra.mxu0 %v1020
    %v1101 = vpop.f32.mrf.mxu0
    %v1102 = vadd.f32 0.0, %v1101
    %v1103 = vpop.f32.mrf.mxu0
    %1104 = vmatprep.mubr.f32.mxu0 0.0
    %1105 = vmatmul.mubr.f32.gmra.mxu0 %v1023
    %v1106 = vpop.f32.mrf.mxu0
    %v1107 = vadd.f32 0.0, %v1106
    %v1108 = vpop.f32.mrf.mxu0
    %1109 = vdwg.mxu0
    %v1110 = vadd.f32 %v370, %v1092
    %v1111 = vadd.f32 %v370, %v1097
    %v1112 = vadd.f32 %v370, %v1102
    %v1113 = vadd.f32 %v370, %v1107
    %1114 = vrot.lane.b32.xlu0 %v153, 120
    %v1115 = vpop.permute.xlu0 %1114
    %1116 = vrot.lane.b32.xlu0 %v249, 120
    %v1117 = vpop.permute.xlu0 %1116
    %v1118 = vsel %vm371, %v1115, 0
    %v1120 = vsel %vm371, %v1117, 0
    %1122 = vmatprep.subr.mxu0 0.0
    %1123 = vmatpush1.xpose.msra.mxu0 0.0
    %1124 = vmatprep.subr.mxu0 0.0
    %1125 = vmatpush1.xpose.msra.mxu0 0.0
    %1126 = vmatprep.subr.mxu0 0.0
    %1127 = vmatpush1.xpose.msra.mxu0 0.0
    %1128 = vmatprep.subr.mxu0 0.0
    %1129 = vmatpush1.xpose.msra.mxu0 0.0
    %1130 = vmatprep.subr.mxu0 0.0
    %1131 = vmatpush1.xpose.msra.mxu0 0.0
    %1132 = vmatprep.subr.mxu0 0.0
    %1133 = vmatpush1.xpose.msra.mxu0 0.0
    %1134 = vmatprep.subr.mxu0 0.0
    %1135 = vmatpush1.xpose.msra.mxu0 0.0
    %1136 = vmatprep.subr.mxu0 0.0
    %1137 = vmatpush1.xpose.msra.mxu0 0.0
    %1138 = vmatprep.subr.mxu0 0.0
    %1139 = vmatpush1.xpose.msra.mxu0 0.0
    %1140 = vmatprep.subr.mxu0 0.0
    %1141 = vmatpush1.xpose.msra.mxu0 0.0
    %1142 = vmatprep.subr.mxu0 0.0
    %1143 = vmatpush1.xpose.msra.mxu0 0.0
    %1144 = vmatprep.subr.mxu0 0.0
    %1145 = vmatpush1.xpose.msra.mxu0 0.0
    %1146 = vmatprep.subr.mxu0 0.0
    %1147 = vmatpush1.xpose.msra.mxu0 0.0
    %1148 = vmatprep.subr.mxu0 0.0
    %1149 = vmatpush1.xpose.msra.mxu0 0.0
    %1150 = vmatprep.subr.mxu0 0.0
    %1151 = vmatpush1.xpose.msra.mxu0 0.0
    %1152 = vmatprep.subr.mxu0 0.0
    %1153 = vmatpush1.xpose.msra.mxu0 %v1120
    %1154 = vmatprep.subr.mxu0 0.0
    %1155 = vmatpush2.xpose.msra.mxu0 0.0
    %1156 = vmatprep.subr.mxu0 0.0
    %1157 = vmatpush2.xpose.msra.mxu0 0.0
    %1158 = vmatprep.subr.mxu0 0.0
    %1159 = vmatpush2.xpose.msra.mxu0 0.0
    %1160 = vmatprep.subr.mxu0 0.0
    %1161 = vmatpush2.xpose.msra.mxu0 0.0
    %1162 = vmatprep.subr.mxu0 0.0
    %1163 = vmatpush2.xpose.msra.mxu0 0.0
    %1164 = vmatprep.subr.mxu0 0.0
    %1165 = vmatpush2.xpose.msra.mxu0 0.0
    %1166 = vmatprep.subr.mxu0 0.0
    %1167 = vmatpush2.xpose.msra.mxu0 0.0
    %1168 = vmatprep.subr.mxu0 0.0
    %1169 = vmatpush2.xpose.msra.mxu0 0.0
    %1170 = vmatprep.subr.mxu0 0.0
    %1171 = vmatpush2.xpose.msra.mxu0 0.0
    %1172 = vmatprep.subr.mxu0 0.0
    %1173 = vmatpush2.xpose.msra.mxu0 0.0
    %1174 = vmatprep.subr.mxu0 0.0
    %1175 = vmatpush2.xpose.msra.mxu0 0.0
    %1176 = vmatprep.subr.mxu0 0.0
    %1177 = vmatpush2.xpose.msra.mxu0 0.0
    %1178 = vmatprep.subr.mxu0 0.0
    %1179 = vmatpush2.xpose.msra.mxu0 0.0
    %1180 = vmatprep.subr.mxu0 0.0
    %1181 = vmatpush2.xpose.msra.mxu0 0.0
    %1182 = vmatprep.subr.mxu0 0.0
    %1183 = vmatpush2.xpose.msra.mxu0 0.0
    %1184 = vmatprep.subr.mxu0 0.0
    %1185 = vmatpush2.xpose.msra.mxu0 0.0
    %1186 = vmatprep.mubr.f32.mxu0 0.0
    %1187 = vmatmul.mubr.f32.gmra.mxu0 %v1118
    %v1188 = vpop.f32.mrf.mxu0
    %v1189 = vadd.f32 0.0, %v1188
    %v1190 = vpop.f32.mrf.mxu0
    %1191 = vdwg.mxu0
    %1192 = vrot.lane.b32.xlu0 %v158, 120
    %v1193 = vpop.permute.xlu0 %1192
    %1194 = vrot.lane.b32.xlu0 %v254, 120
    %v1195 = vpop.permute.xlu0 %1194
    %v1196 = vsel %vm371, %v1193, 0
    %v1198 = vsel %vm371, %v1195, 0
    %1200 = vmatprep.subr.mxu0 0.0
    %1201 = vmatpush1.xpose.msra.mxu0 0.0
    %1202 = vmatprep.subr.mxu0 0.0
    %1203 = vmatpush1.xpose.msra.mxu0 0.0
    %1204 = vmatprep.subr.mxu0 0.0
    %1205 = vmatpush1.xpose.msra.mxu0 0.0
    %1206 = vmatprep.subr.mxu0 0.0
    %1207 = vmatpush1.xpose.msra.mxu0 0.0
    %1208 = vmatprep.subr.mxu0 0.0
    %1209 = vmatpush1.xpose.msra.mxu0 0.0
    %1210 = vmatprep.subr.mxu0 0.0
    %1211 = vmatpush1.xpose.msra.mxu0 0.0
    %1212 = vmatprep.subr.mxu0 0.0
    %1213 = vmatpush1.xpose.msra.mxu0 0.0
    %1214 = vmatprep.subr.mxu0 0.0
    %1215 = vmatpush1.xpose.msra.mxu0 0.0
    %1216 = vmatprep.subr.mxu0 0.0
    %1217 = vmatpush1.xpose.msra.mxu0 0.0
    %1218 = vmatprep.subr.mxu0 0.0
    %1219 = vmatpush1.xpose.msra.mxu0 0.0
    %1220 = vmatprep.subr.mxu0 0.0
    %1221 = vmatpush1.xpose.msra.mxu0 0.0
    %1222 = vmatprep.subr.mxu0 0.0
    %1223 = vmatpush1.xpose.msra.mxu0 0.0
    %1224 = vmatprep.subr.mxu0 0.0
    %1225 = vmatpush1.xpose.msra.mxu0 0.0
    %1226 = vmatprep.subr.mxu0 0.0
    %1227 = vmatpush1.xpose.msra.mxu0 0.0
    %1228 = vmatprep.subr.mxu0 0.0
    %1229 = vmatpush1.xpose.msra.mxu0 0.0
    %1230 = vmatprep.subr.mxu0 0.0
    %1231 = vmatpush1.xpose.msra.mxu0 %v1198
    %1232 = vmatprep.subr.mxu0 0.0
    %1233 = vmatpush2.xpose.msra.mxu0 0.0
    %1234 = vmatprep.subr.mxu0 0.0
    %1235 = vmatpush2.xpose.msra.mxu0 0.0
    %1236 = vmatprep.subr.mxu0 0.0
    %1237 = vmatpush2.xpose.msra.mxu0 0.0
    %1238 = vmatprep.subr.mxu0 0.0
    %1239 = vmatpush2.xpose.msra.mxu0 0.0
    %1240 = vmatprep.subr.mxu0 0.0
    %1241 = vmatpush2.xpose.msra.mxu0 0.0
    %1242 = vmatprep.subr.mxu0 0.0
    %1243 = vmatpush2.xpose.msra.mxu0 0.0
    %1244 = vmatprep.subr.mxu0 0.0
    %1245 = vmatpush2.xpose.msra.mxu0 0.0
    %1246 = vmatprep.subr.mxu0 0.0
    %1247 = vmatpush2.xpose.msra.mxu0 0.0
    %1248 = vmatprep.subr.mxu0 0.0
    %1249 = vmatpush2.xpose.msra.mxu0 0.0
    %1250 = vmatprep.subr.mxu0 0.0
    %1251 = vmatpush2.xpose.msra.mxu0 0.0
    %1252 = vmatprep.subr.mxu0 0.0
    %1253 = vmatpush2.xpose.msra.mxu0 0.0
    %1254 = vmatprep.subr.mxu0 0.0
    %1255 = vmatpush2.xpose.msra.mxu0 0.0
    %1256 = vmatprep.subr.mxu0 0.0
    %1257 = vmatpush2.xpose.msra.mxu0 0.0
    %1258 = vmatprep.subr.mxu0 0.0
    %1259 = vmatpush2.xpose.msra.mxu0 0.0
    %1260 = vmatprep.subr.mxu0 0.0
    %1261 = vmatpush2.xpose.msra.mxu0 0.0
    %1262 = vmatprep.subr.mxu0 0.0
    %1263 = vmatpush2.xpose.msra.mxu0 0.0
    %1264 = vmatprep.mubr.f32.mxu0 0.0
    %1265 = vmatmul.mubr.f32.gmra.mxu0 %v1196
    %v1266 = vpop.f32.mrf.mxu0
    %v1267 = vadd.f32 0.0, %v1266
    %v1268 = vpop.f32.mrf.mxu0
    %1269 = vdwg.mxu0
    %1270 = vrot.lane.b32.xlu0 %v163, 120
    %v1271 = vpop.permute.xlu0 %1270
    %1272 = vrot.lane.b32.xlu0 %v259, 120
    %v1273 = vpop.permute.xlu0 %1272
    %v1274 = vsel %vm371, %v1271, 0
    %v1276 = vsel %vm371, %v1273, 0
    %1278 = vmatprep.subr.mxu0 0.0
    %1279 = vmatpush1.xpose.msra.mxu0 0.0
    %1280 = vmatprep.subr.mxu0 0.0
    %1281 = vmatpush1.xpose.msra.mxu0 0.0
    %1282 = vmatprep.subr.mxu0 0.0
    %1283 = vmatpush1.xpose.msra.mxu0 0.0
    %1284 = vmatprep.subr.mxu0 0.0
    %1285 = vmatpush1.xpose.msra.mxu0 0.0
    %1286 = vmatprep.subr.mxu0 0.0
    %1287 = vmatpush1.xpose.msra.mxu0 0.0
    %1288 = vmatprep.subr.mxu0 0.0
    %1289 = vmatpush1.xpose.msra.mxu0 0.0
    %1290 = vmatprep.subr.mxu0 0.0
    %1291 = vmatpush1.xpose.msra.mxu0 0.0
    %1292 = vmatprep.subr.mxu0 0.0
    %1293 = vmatpush1.xpose.msra.mxu0 0.0
    %1294 = vmatprep.subr.mxu0 0.0
    %1295 = vmatpush1.xpose.msra.mxu0 0.0
    %1296 = vmatprep.subr.mxu0 0.0
    %1297 = vmatpush1.xpose.msra.mxu0 0.0
    %1298 = vmatprep.subr.mxu0 0.0
    %1299 = vmatpush1.xpose.msra.mxu0 0.0
    %1300 = vmatprep.subr.mxu0 0.0
    %1301 = vmatpush1.xpose.msra.mxu0 0.0
    %1302 = vmatprep.subr.mxu0 0.0
    %1303 = vmatpush1.xpose.msra.mxu0 0.0
    %1304 = vmatprep.subr.mxu0 0.0
    %1305 = vmatpush1.xpose.msra.mxu0 0.0
    %1306 = vmatprep.subr.mxu0 0.0
    %1307 = vmatpush1.xpose.msra.mxu0 0.0
    %1308 = vmatprep.subr.mxu0 0.0
    %1309 = vmatpush1.xpose.msra.mxu0 %v1276
    %1310 = vmatprep.subr.mxu0 0.0
    %1311 = vmatpush2.xpose.msra.mxu0 0.0
    %1312 = vmatprep.subr.mxu0 0.0
    %1313 = vmatpush2.xpose.msra.mxu0 0.0
    %1314 = vmatprep.subr.mxu0 0.0
    %1315 = vmatpush2.xpose.msra.mxu0 0.0
    %1316 = vmatprep.subr.mxu0 0.0
    %1317 = vmatpush2.xpose.msra.mxu0 0.0
    %1318 = vmatprep.subr.mxu0 0.0
    %1319 = vmatpush2.xpose.msra.mxu0 0.0
    %1320 = vmatprep.subr.mxu0 0.0
    %1321 = vmatpush2.xpose.msra.mxu0 0.0
    %1322 = vmatprep.subr.mxu0 0.0
    %1323 = vmatpush2.xpose.msra.mxu0 0.0
    %1324 = vmatprep.subr.mxu0 0.0
    %1325 = vmatpush2.xpose.msra.mxu0 0.0
    %1326 = vmatprep.subr.mxu0 0.0
    %1327 = vmatpush2.xpose.msra.mxu0 0.0
    %1328 = vmatprep.subr.mxu0 0.0
    %1329 = vmatpush2.xpose.msra.mxu0 0.0
    %1330 = vmatprep.subr.mxu0 0.0
    %1331 = vmatpush2.xpose.msra.mxu0 0.0
    %1332 = vmatprep.subr.mxu0 0.0
    %1333 = vmatpush2.xpose.msra.mxu0 0.0
    %1334 = vmatprep.subr.mxu0 0.0
    %1335 = vmatpush2.xpose.msra.mxu0 0.0
    %1336 = vmatprep.subr.mxu0 0.0
    %1337 = vmatpush2.xpose.msra.mxu0 0.0
    %1338 = vmatprep.subr.mxu0 0.0
    %1339 = vmatpush2.xpose.msra.mxu0 0.0
    %1340 = vmatprep.subr.mxu0 0.0
    %1341 = vmatpush2.xpose.msra.mxu0 0.0
    %1342 = vmatprep.mubr.f32.mxu0 0.0
    %1343 = vmatmul.mubr.f32.gmra.mxu0 %v1274
    %v1344 = vpop.f32.mrf.mxu0
    %v1345 = vadd.f32 0.0, %v1344
    %v1346 = vpop.f32.mrf.mxu0
    %1347 = vdwg.mxu0
    %1348 = vrot.lane.b32.xlu0 %v168, 120
    %v1349 = vpop.permute.xlu0 %1348
    %1350 = vrot.lane.b32.xlu0 %v264, 120
    %v1351 = vpop.permute.xlu0 %1350
    %v1352 = vsel %vm371, %v1349, 0
    %v1354 = vsel %vm371, %v1351, 0
    %1356 = vmatprep.subr.mxu0 0.0
    %1357 = vmatpush1.xpose.msra.mxu0 0.0
    %1358 = vmatprep.subr.mxu0 0.0
    %1359 = vmatpush1.xpose.msra.mxu0 0.0
    %1360 = vmatprep.subr.mxu0 0.0
    %1361 = vmatpush1.xpose.msra.mxu0 0.0
    %1362 = vmatprep.subr.mxu0 0.0
    %1363 = vmatpush1.xpose.msra.mxu0 0.0
    %1364 = vmatprep.subr.mxu0 0.0
    %1365 = vmatpush1.xpose.msra.mxu0 0.0
    %1366 = vmatprep.subr.mxu0 0.0
    %1367 = vmatpush1.xpose.msra.mxu0 0.0
    %1368 = vmatprep.subr.mxu0 0.0
    %1369 = vmatpush1.xpose.msra.mxu0 0.0
    %1370 = vmatprep.subr.mxu0 0.0
    %1371 = vmatpush1.xpose.msra.mxu0 0.0
    %1372 = vmatprep.subr.mxu0 0.0
    %1373 = vmatpush1.xpose.msra.mxu0 0.0
    %1374 = vmatprep.subr.mxu0 0.0
    %1375 = vmatpush1.xpose.msra.mxu0 0.0
    %1376 = vmatprep.subr.mxu0 0.0
    %1377 = vmatpush1.xpose.msra.mxu0 0.0
    %1378 = vmatprep.subr.mxu0 0.0
    %1379 = vmatpush1.xpose.msra.mxu0 0.0
    %1380 = vmatprep.subr.mxu0 0.0
    %1381 = vmatpush1.xpose.msra.mxu0 0.0
    %1382 = vmatprep.subr.mxu0 0.0
    %1383 = vmatpush1.xpose.msra.mxu0 0.0
    %1384 = vmatprep.subr.mxu0 0.0
    %1385 = vmatpush1.xpose.msra.mxu0 0.0
    %1386 = vmatprep.subr.mxu0 0.0
    %1387 = vmatpush1.xpose.msra.mxu0 %v1354
    %1388 = vmatprep.subr.mxu0 0.0
    %1389 = vmatpush2.xpose.msra.mxu0 0.0
    %1390 = vmatprep.subr.mxu0 0.0
    %1391 = vmatpush2.xpose.msra.mxu0 0.0
    %1392 = vmatprep.subr.mxu0 0.0
    %1393 = vmatpush2.xpose.msra.mxu0 0.0
    %1394 = vmatprep.subr.mxu0 0.0
    %1395 = vmatpush2.xpose.msra.mxu0 0.0
    %1396 = vmatprep.subr.mxu0 0.0
    %1397 = vmatpush2.xpose.msra.mxu0 0.0
    %1398 = vmatprep.subr.mxu0 0.0
    %1399 = vmatpush2.xpose.msra.mxu0 0.0
    %1400 = vmatprep.subr.mxu0 0.0
    %1401 = vmatpush2.xpose.msra.mxu0 0.0
    %1402 = vmatprep.subr.mxu0 0.0
    %1403 = vmatpush2.xpose.msra.mxu0 0.0
    %1404 = vmatprep.subr.mxu0 0.0
    %1405 = vmatpush2.xpose.msra.mxu0 0.0
    %1406 = vmatprep.subr.mxu0 0.0
    %1407 = vmatpush2.xpose.msra.mxu0 0.0
    %1408 = vmatprep.subr.mxu0 0.0
    %1409 = vmatpush2.xpose.msra.mxu0 0.0
    %1410 = vmatprep.subr.mxu0 0.0
    %1411 = vmatpush2.xpose.msra.mxu0 0.0
    %1412 = vmatprep.subr.mxu0 0.0
    %1413 = vmatpush2.xpose.msra.mxu0 0.0
    %1414 = vmatprep.subr.mxu0 0.0
    %1415 = vmatpush2.xpose.msra.mxu0 0.0
    %1416 = vmatprep.subr.mxu0 0.0
    %1417 = vmatpush2.xpose.msra.mxu0 0.0
    %1418 = vmatprep.subr.mxu0 0.0
    %1419 = vmatpush2.xpose.msra.mxu0 0.0
    %1420 = vmatprep.mubr.f32.mxu0 0.0
    %1421 = vmatmul.mubr.f32.gmra.mxu0 %v1352
    %v1422 = vpop.f32.mrf.mxu0
    %v1423 = vadd.f32 0.0, %v1422
    %v1424 = vpop.f32.mrf.mxu0
    %1425 = vdwg.mxu0
    %v1426 = vsel %vm371, %v1189, -inf
    %1427 = vmax.xlane.f32.xlu0 %v1426
    %v1428 = vpop.xlane.xlu0 %1427
    %v1429 = vsel %vm371, %v1267, -inf
    %1430 = vmax.xlane.f32.xlu0 %v1429
    %v1431 = vpop.xlane.xlu0 %1430
    %v1432 = vsel %vm371, %v1345, -inf
    %1433 = vmax.xlane.f32.xlu0 %v1432
    %v1434 = vpop.xlane.xlu0 %1433
    %v1435 = vsel %vm371, %v1423, -inf
    %1436 = vmax.xlane.f32.xlu0 %v1435
    %v1437 = vpop.xlane.xlu0 %1436
    %v1438 = vsub.f32 %v1189, %v1428
    %v1439 = vsub.f32 %v1267, %v1431
    %v1440 = vsub.f32 %v1345, %v1434
    %v1441 = vsub.f32 %v1423, %v1437
    %v1442 = vmul.f32 %v1438, 1.442695
    %v1443 = vpow.pop %v1442
    %v1444 = vmul.f32 %v1439, 1.442695
    %v1445 = vpow.pop %v1444
    %v1446 = vmul.f32 %v1440, 1.442695
    %v1447 = vpow.pop %v1446
    %v1448 = vmul.f32 %v1441, 1.442695
    %v1449 = vpow.pop %v1448
    %v1450 = vsel %vm371, %v1443, 0.0
    %1451 = vadd.xlane.f32.xlu0 %v1450
    %v1452 = vpop.xlane.xlu0 %1451
    %v1453 = vsel %vm371, %v1445, 0.0
    %1454 = vadd.xlane.f32.xlu0 %v1453
    %v1455 = vpop.xlane.xlu0 %1454
    %v1456 = vsel %vm371, %v1447, 0.0
    %1457 = vadd.xlane.f32.xlu0 %v1456
    %v1458 = vpop.xlane.xlu0 %1457
    %v1459 = vsel %vm371, %v1449, 0.0
    %1460 = vadd.xlane.f32.xlu0 %v1459
    %v1461 = vpop.xlane.xlu0 %1460
    %v1462 = vrcp.pop %v1452
    %v1463 = vrcp.pop %v1455
    %v1464 = vrcp.pop %v1458
    %v1465 = vrcp.pop %v1461
    %v1466 = vmul.f32 %v1443, %v1462
    %v1467 = vmul.f32 %v1445, %v1463
    %v1468 = vmul.f32 %v1447, %v1464
    %v1469 = vmul.f32 %v1449, %v1465
    %1471 = vrot.lane.b32.xlu0 %v345, 120
    %v1472 = vpop.permute.xlu0 %1471
    %v1475 = vsel %vm371, %v1466, 0
    %1477 = vmatprep.subr.mxu0 0.0
    %1478 = vmatpush1.msra.mxu0 0.0
    %1479 = vmatprep.subr.mxu0 0.0
    %1480 = vmatpush1.msra.mxu0 0.0
    %1481 = vmatprep.subr.mxu0 0.0
    %1482 = vmatpush1.msra.mxu0 0.0
    %1483 = vmatprep.subr.mxu0 0.0
    %1484 = vmatpush1.msra.mxu0 0.0
    %1485 = vmatprep.subr.mxu0 0.0
    %1486 = vmatpush1.msra.mxu0 0.0
    %1487 = vmatprep.subr.mxu0 0.0
    %1488 = vmatpush1.msra.mxu0 0.0
    %1489 = vmatprep.subr.mxu0 0.0
    %1490 = vmatpush1.msra.mxu0 0.0
    %1491 = vmatprep.subr.mxu0 0.0
    %1492 = vmatpush1.msra.mxu0 0.0
    %1493 = vmatprep.subr.mxu0 0.0
    %1494 = vmatpush1.msra.mxu0 0.0
    %1495 = vmatprep.subr.mxu0 0.0
    %1496 = vmatpush1.msra.mxu0 0.0
    %1497 = vmatprep.subr.mxu0 0.0
    %1498 = vmatpush1.msra.mxu0 0.0
    %1499 = vmatprep.subr.mxu0 0.0
    %1500 = vmatpush1.msra.mxu0 0.0
    %1501 = vmatprep.subr.mxu0 0.0
    %1502 = vmatpush1.msra.mxu0 0.0
    %1503 = vmatprep.subr.mxu0 0.0
    %1504 = vmatpush1.msra.mxu0 0.0
    %1505 = vmatprep.subr.mxu0 0.0
    %1506 = vmatpush1.msra.mxu0 0.0
    %1507 = vmatprep.subr.mxu0 0.0
    %1508 = vmatpush1.msra.mxu0 %v1472
    %1509 = vmatprep.subr.mxu0 0.0
    %1510 = vmatpush2.msra.mxu0 0.0
    %1511 = vmatprep.subr.mxu0 0.0
    %1512 = vmatpush2.msra.mxu0 0.0
    %1513 = vmatprep.subr.mxu0 0.0
    %1514 = vmatpush2.msra.mxu0 0.0
    %1515 = vmatprep.subr.mxu0 0.0
    %1516 = vmatpush2.msra.mxu0 0.0
    %1517 = vmatprep.subr.mxu0 0.0
    %1518 = vmatpush2.msra.mxu0 0.0
    %1519 = vmatprep.subr.mxu0 0.0
    %1520 = vmatpush2.msra.mxu0 0.0
    %1521 = vmatprep.subr.mxu0 0.0
    %1522 = vmatpush2.msra.mxu0 0.0
    %1523 = vmatprep.subr.mxu0 0.0
    %1524 = vmatpush2.msra.mxu0 0.0
    %1525 = vmatprep.subr.mxu0 0.0
    %1526 = vmatpush2.msra.mxu0 0.0
    %1527 = vmatprep.subr.mxu0 0.0
    %1528 = vmatpush2.msra.mxu0 0.0
    %1529 = vmatprep.subr.mxu0 0.0
    %1530 = vmatpush2.msra.mxu0 0.0
    %1531 = vmatprep.subr.mxu0 0.0
    %1532 = vmatpush2.msra.mxu0 0.0
    %1533 = vmatprep.subr.mxu0 0.0
    %1534 = vmatpush2.msra.mxu0 0.0
    %1535 = vmatprep.subr.mxu0 0.0
    %1536 = vmatpush2.msra.mxu0 0.0
    %1537 = vmatprep.subr.mxu0 0.0
    %1538 = vmatpush2.msra.mxu0 0.0
    %1539 = vmatprep.subr.mxu0 0.0
    %1540 = vmatpush2.msra.mxu0 0.0
    %1541 = vmatprep.mubr.f32.mxu0 0.0
    %1542 = vmatmul.mubr.f32.gmra.mxu0 %v1475
    %v1543 = vpop.f32.mrf.mxu0
    %v1544 = vadd.f32 0.0, %v1543
    %v1545 = vpop.f32.mrf.mxu0
    %1546 = vdwg.mxu0
    %1548 = vrot.lane.b32.xlu0 %v350, 120
    %v1549 = vpop.permute.xlu0 %1548
    %v1552 = vsel %vm371, %v1467, 0
    %1554 = vmatprep.subr.mxu0 0.0
    %1555 = vmatpush1.msra.mxu0 0.0
    %1556 = vmatprep.subr.mxu0 0.0
    %1557 = vmatpush1.msra.mxu0 0.0
    %1558 = vmatprep.subr.mxu0 0.0
    %1559 = vmatpush1.msra.mxu0 0.0
    %1560 = vmatprep.subr.mxu0 0.0
    %1561 = vmatpush1.msra.mxu0 0.0
    %1562 = vmatprep.subr.mxu0 0.0
    %1563 = vmatpush1.msra.mxu0 0.0
    %1564 = vmatprep.subr.mxu0 0.0
    %1565 = vmatpush1.msra.mxu0 0.0
    %1566 = vmatprep.subr.mxu0 0.0
    %1567 = vmatpush1.msra.mxu0 0.0
    %1568 = vmatprep.subr.mxu0 0.0
    %1569 = vmatpush1.msra.mxu0 0.0
    %1570 = vmatprep.subr.mxu0 0.0
    %1571 = vmatpush1.msra.mxu0 0.0
    %1572 = vmatprep.subr.mxu0 0.0
    %1573 = vmatpush1.msra.mxu0 0.0
    %1574 = vmatprep.subr.mxu0 0.0
    %1575 = vmatpush1.msra.mxu0 0.0
    %1576 = vmatprep.subr.mxu0 0.0
    %1577 = vmatpush1.msra.mxu0 0.0
    %1578 = vmatprep.subr.mxu0 0.0
    %1579 = vmatpush1.msra.mxu0 0.0
    %1580 = vmatprep.subr.mxu0 0.0
    %1581 = vmatpush1.msra.mxu0 0.0
    %1582 = vmatprep.subr.mxu0 0.0
    %1583 = vmatpush1.msra.mxu0 0.0
    %1584 = vmatprep.subr.mxu0 0.0
    %1585 = vmatpush1.msra.mxu0 %v1549
    %1586 = vmatprep.subr.mxu0 0.0
    %1587 = vmatpush2.msra.mxu0 0.0
    %1588 = vmatprep.subr.mxu0 0.0
    %1589 = vmatpush2.msra.mxu0 0.0
    %1590 = vmatprep.subr.mxu0 0.0
    %1591 = vmatpush2.msra.mxu0 0.0
    %1592 = vmatprep.subr.mxu0 0.0
    %1593 = vmatpush2.msra.mxu0 0.0
    %1594 = vmatprep.subr.mxu0 0.0
    %1595 = vmatpush2.msra.mxu0 0.0
    %1596 = vmatprep.subr.mxu0 0.0
    %1597 = vmatpush2.msra.mxu0 0.0
    %1598 = vmatprep.subr.mxu0 0.0
    %1599 = vmatpush2.msra.mxu0 0.0
    %1600 = vmatprep.subr.mxu0 0.0
    %1601 = vmatpush2.msra.mxu0 0.0
    %1602 = vmatprep.subr.mxu0 0.0
    %1603 = vmatpush2.msra.mxu0 0.0
    %1604 = vmatprep.subr.mxu0 0.0
    %1605 = vmatpush2.msra.mxu0 0.0
    %1606 = vmatprep.subr.mxu0 0.0
    %1607 = vmatpush2.msra.mxu0 0.0
    %1608 = vmatprep.subr.mxu0 0.0
    %1609 = vmatpush2.msra.mxu0 0.0
    %1610 = vmatprep.subr.mxu0 0.0
    %1611 = vmatpush2.msra.mxu0 0.0
    %1612 = vmatprep.subr.mxu0 0.0
    %1613 = vmatpush2.msra.mxu0 0.0
    %1614 = vmatprep.subr.mxu0 0.0
    %1615 = vmatpush2.msra.mxu0 0.0
    %1616 = vmatprep.subr.mxu0 0.0
    %1617 = vmatpush2.msra.mxu0 0.0
    %1618 = vmatprep.mubr.f32.mxu0 0.0
    %1619 = vmatmul.mubr.f32.gmra.mxu0 %v1552
    %v1620 = vpop.f32.mrf.mxu0
    %v1621 = vadd.f32 0.0, %v1620
    %v1622 = vpop.f32.mrf.mxu0
    %1623 = vdwg.mxu0
    %1625 = vrot.lane.b32.xlu0 %v355, 120
    %v1626 = vpop.permute.xlu0 %1625
    %v1629 = vsel %vm371, %v1468, 0
    %1631 = vmatprep.subr.mxu0 0.0
    %1632 = vmatpush1.msra.mxu0 0.0
    %1633 = vmatprep.subr.mxu0 0.0
    %1634 = vmatpush1.msra.mxu0 0.0
    %1635 = vmatprep.subr.mxu0 0.0
    %1636 = vmatpush1.msra.mxu0 0.0
    %1637 = vmatprep.subr.mxu0 0.0
    %1638 = vmatpush1.msra.mxu0 0.0
    %1639 = vmatprep.subr.mxu0 0.0
    %1640 = vmatpush1.msra.mxu0 0.0
    %1641 = vmatprep.subr.mxu0 0.0
    %1642 = vmatpush1.msra.mxu0 0.0
    %1643 = vmatprep.subr.mxu0 0.0
    %1644 = vmatpush1.msra.mxu0 0.0
    %1645 = vmatprep.subr.mxu0 0.0
    %1646 = vmatpush1.msra.mxu0 0.0
    %1647 = vmatprep.subr.mxu0 0.0
    %1648 = vmatpush1.msra.mxu0 0.0
    %1649 = vmatprep.subr.mxu0 0.0
    %1650 = vmatpush1.msra.mxu0 0.0
    %1651 = vmatprep.subr.mxu0 0.0
    %1652 = vmatpush1.msra.mxu0 0.0
    %1653 = vmatprep.subr.mxu0 0.0
    %1654 = vmatpush1.msra.mxu0 0.0
    %1655 = vmatprep.subr.mxu0 0.0
    %1656 = vmatpush1.msra.mxu0 0.0
    %1657 = vmatprep.subr.mxu0 0.0
    %1658 = vmatpush1.msra.mxu0 0.0
    %1659 = vmatprep.subr.mxu0 0.0
    %1660 = vmatpush1.msra.mxu0 0.0
    %1661 = vmatprep.subr.mxu0 0.0
    %1662 = vmatpush1.msra.mxu0 %v1626
    %1663 = vmatprep.subr.mxu0 0.0
    %1664 = vmatpush2.msra.mxu0 0.0
    %1665 = vmatprep.subr.mxu0 0.0
    %1666 = vmatpush2.msra.mxu0 0.0
    %1667 = vmatprep.subr.mxu0 0.0
    %1668 = vmatpush2.msra.mxu0 0.0
    %1669 = vmatprep.subr.mxu0 0.0
    %1670 = vmatpush2.msra.mxu0 0.0
    %1671 = vmatprep.subr.mxu0 0.0
    %1672 = vmatpush2.msra.mxu0 0.0
    %1673 = vmatprep.subr.mxu0 0.0
    %1674 = vmatpush2.msra.mxu0 0.0
    %1675 = vmatprep.subr.mxu0 0.0
    %1676 = vmatpush2.msra.mxu0 0.0
    %1677 = vmatprep.subr.mxu0 0.0
    %1678 = vmatpush2.msra.mxu0 0.0
    %1679 = vmatprep.subr.mxu0 0.0
    %1680 = vmatpush2.msra.mxu0 0.0
    %1681 = vmatprep.subr.mxu0 0.0
    %1682 = vmatpush2.msra.mxu0 0.0
    %1683 = vmatprep.subr.mxu0 0.0
    %1684 = vmatpush2.msra.mxu0 0.0
    %1685 = vmatprep.subr.mxu0 0.0
    %1686 = vmatpush2.msra.mxu0 0.0
    %1687 = vmatprep.subr.mxu0 0.0
    %1688 = vmatpush2.msra.mxu0 0.0
    %1689 = vmatprep.subr.mxu0 0.0
    %1690 = vmatpush2.msra.mxu0 0.0
    %1691 = vmatprep.subr.mxu0 0.0
    %1692 = vmatpush2.msra.mxu0 0.0
    %1693 = vmatprep.subr.mxu0 0.0
    %1694 = vmatpush2.msra.mxu0 0.0
    %1695 = vmatprep.mubr.f32.mxu0 0.0
    %1696 = vmatmul.mubr.f32.gmra.mxu0 %v1629
    %v1697 = vpop.f32.mrf.mxu0
    %v1698 = vadd.f32 0.0, %v1697
    %v1699 = vpop.f32.mrf.mxu0
    %1700 = vdwg.mxu0
    %1702 = vrot.lane.b32.xlu0 %v360, 120
    %v1703 = vpop.permute.xlu0 %1702
    %v1706 = vsel %vm371, %v1469, 0
    %1708 = vmatprep.subr.mxu0 0.0
    %1709 = vmatpush1.msra.mxu0 0.0
    %1710 = vmatprep.subr.mxu0 0.0
    %1711 = vmatpush1.msra.mxu0 0.0
    %1712 = vmatprep.subr.mxu0 0.0
    %1713 = vmatpush1.msra.mxu0 0.0
    %1714 = vmatprep.subr.mxu0 0.0
    %1715 = vmatpush1.msra.mxu0 0.0
    %1716 = vmatprep.subr.mxu0 0.0
    %1717 = vmatpush1.msra.mxu0 0.0
    %1718 = vmatprep.subr.mxu0 0.0
    %1719 = vmatpush1.msra.mxu0 0.0
    %1720 = vmatprep.subr.mxu0 0.0
    %1721 = vmatpush1.msra.mxu0 0.0
    %1722 = vmatprep.subr.mxu0 0.0
    %1723 = vmatpush1.msra.mxu0 0.0
    %1724 = vmatprep.subr.mxu0 0.0
    %1725 = vmatpush1.msra.mxu0 0.0
    %1726 = vmatprep.subr.mxu0 0.0
    %1727 = vmatpush1.msra.mxu0 0.0
    %1728 = vmatprep.subr.mxu0 0.0
    %1729 = vmatpush1.msra.mxu0 0.0
    %1730 = vmatprep.subr.mxu0 0.0
    %1731 = vmatpush1.msra.mxu0 0.0
    %1732 = vmatprep.subr.mxu0 0.0
    %1733 = vmatpush1.msra.mxu0 0.0
    %1734 = vmatprep.subr.mxu0 0.0
    %1735 = vmatpush1.msra.mxu0 0.0
    %1736 = vmatprep.subr.mxu0 0.0
    %1737 = vmatpush1.msra.mxu0 0.0
    %1738 = vmatprep.subr.mxu0 0.0
    %1739 = vmatpush1.msra.mxu0 %v1703
    %1740 = vmatprep.subr.mxu0 0.0
    %1741 = vmatpush2.msra.mxu0 0.0
    %1742 = vmatprep.subr.mxu0 0.0
    %1743 = vmatpush2.msra.mxu0 0.0
    %1744 = vmatprep.subr.mxu0 0.0
    %1745 = vmatpush2.msra.mxu0 0.0
    %1746 = vmatprep.subr.mxu0 0.0
    %1747 = vmatpush2.msra.mxu0 0.0
    %1748 = vmatprep.subr.mxu0 0.0
    %1749 = vmatpush2.msra.mxu0 0.0
    %1750 = vmatprep.subr.mxu0 0.0
    %1751 = vmatpush2.msra.mxu0 0.0
    %1752 = vmatprep.subr.mxu0 0.0
    %1753 = vmatpush2.msra.mxu0 0.0
    %1754 = vmatprep.subr.mxu0 0.0
    %1755 = vmatpush2.msra.mxu0 0.0
    %1756 = vmatprep.subr.mxu0 0.0
    %1757 = vmatpush2.msra.mxu0 0.0
    %1758 = vmatprep.subr.mxu0 0.0
    %1759 = vmatpush2.msra.mxu0 0.0
    %1760 = vmatprep.subr.mxu0 0.0
    %1761 = vmatpush2.msra.mxu0 0.0
    %1762 = vmatprep.subr.mxu0 0.0
    %1763 = vmatpush2.msra.mxu0 0.0
    %1764 = vmatprep.subr.mxu0 0.0
    %1765 = vmatpush2.msra.mxu0 0.0
    %1766 = vmatprep.subr.mxu0 0.0
    %1767 = vmatpush2.msra.mxu0 0.0
    %1768 = vmatprep.subr.mxu0 0.0
    %1769 = vmatpush2.msra.mxu0 0.0
    %1770 = vmatprep.subr.mxu0 0.0
    %1771 = vmatpush2.msra.mxu0 0.0
    %1772 = vmatprep.mubr.f32.mxu0 0.0
    %1773 = vmatmul.mubr.f32.gmra.mxu0 %v1706
    %v1774 = vpop.f32.mrf.mxu0
    %v1775 = vadd.f32 0.0, %v1774
    %v1776 = vpop.f32.mrf.mxu0
    %1777 = vdwg.mxu0
    %v1778 = vld [vmem:[%s7 + $0x8] sm:$0xff]
    %v1780 = vsel %vm371, %v1544, 0
    %v1783 = vsel %vm371, %v1621, 0
    %v1786 = vsel %vm371, %v1698, 0
    %v1789 = vsel %vm371, %v1775, 0
    %1791 = vmatprep.subr.mxu0 0.0
    %1792 = vmatpush1.msra.mxu0 0.0
    %1793 = vmatprep.subr.mxu0 0.0
    %1794 = vmatpush1.msra.mxu0 0.0
    %1795 = vmatprep.subr.mxu0 0.0
    %1796 = vmatpush1.msra.mxu0 0.0
    %1797 = vmatprep.subr.mxu0 0.0
    %1798 = vmatpush1.msra.mxu0 0.0
    %1799 = vmatprep.subr.mxu0 0.0
    %1800 = vmatpush1.msra.mxu0 0.0
    %1801 = vmatprep.subr.mxu0 0.0
    %1802 = vmatpush1.msra.mxu0 0.0
    %1803 = vmatprep.subr.mxu0 0.0
    %1804 = vmatpush1.msra.mxu0 0.0
    %1805 = vmatprep.subr.mxu0 0.0
    %1806 = vmatpush1.msra.mxu0 0.0
    %1807 = vmatprep.subr.mxu0 0.0
    %1808 = vmatpush1.msra.mxu0 0.0
    %1809 = vmatprep.subr.mxu0 0.0
    %1810 = vmatpush1.msra.mxu0 0.0
    %1811 = vmatprep.subr.mxu0 0.0
    %1812 = vmatpush1.msra.mxu0 0.0
    %1813 = vmatprep.subr.mxu0 0.0
    %1814 = vmatpush1.msra.mxu0 0.0
    %1815 = vmatprep.subr.mxu0 0.0
    %1816 = vmatpush1.msra.mxu0 0.0
    %1817 = vmatprep.subr.mxu0 0.0
    %1818 = vmatpush1.msra.mxu0 0.0
    %1819 = vmatprep.subr.mxu0 0.0
    %1820 = vmatpush1.msra.mxu0 0.0
    %1821 = vmatprep.subr.mxu0 0.0
    %1822 = vmatpush1.msra.mxu0 %v1778
    %1823 = vmatprep.subr.mxu0 0.0
    %1824 = vmatpush2.msra.mxu0 0.0
    %1825 = vmatprep.subr.mxu0 0.0
    %1826 = vmatpush2.msra.mxu0 0.0
    %1827 = vmatprep.subr.mxu0 0.0
    %1828 = vmatpush2.msra.mxu0 0.0
    %1829 = vmatprep.subr.mxu0 0.0
    %1830 = vmatpush2.msra.mxu0 0.0
    %1831 = vmatprep.subr.mxu0 0.0
    %1832 = vmatpush2.msra.mxu0 0.0
    %1833 = vmatprep.subr.mxu0 0.0
    %1834 = vmatpush2.msra.mxu0 0.0
    %1835 = vmatprep.subr.mxu0 0.0
    %1836 = vmatpush2.msra.mxu0 0.0
    %1837 = vmatprep.subr.mxu0 0.0
    %1838 = vmatpush2.msra.mxu0 0.0
    %1839 = vmatprep.subr.mxu0 0.0
    %1840 = vmatpush2.msra.mxu0 0.0
    %1841 = vmatprep.subr.mxu0 0.0
    %1842 = vmatpush2.msra.mxu0 0.0
    %1843 = vmatprep.subr.mxu0 0.0
    %1844 = vmatpush2.msra.mxu0 0.0
    %1845 = vmatprep.subr.mxu0 0.0
    %1846 = vmatpush2.msra.mxu0 0.0
    %1847 = vmatprep.subr.mxu0 0.0
    %1848 = vmatpush2.msra.mxu0 0.0
    %1849 = vmatprep.subr.mxu0 0.0
    %1850 = vmatpush2.msra.mxu0 0.0
    %1851 = vmatprep.subr.mxu0 0.0
    %1852 = vmatpush2.msra.mxu0 0.0
    %1853 = vmatprep.subr.mxu0 0.0
    %1854 = vmatpush2.msra.mxu0 0.0
    %1855 = vmatprep.mubr.f32.mxu0 0.0
    %1856 = vmatmul.mubr.f32.gmra.mxu0 %v1780
    %v1857 = vpop.f32.mrf.mxu0
    %v1858 = vadd.f32 0.0, %v1857
    %v1859 = vpop.f32.mrf.mxu0
    %1860 = vmatprep.mubr.f32.mxu0 0.0
    %1861 = vmatmul.mubr.f32.gmra.mxu0 %v1783
    %v1862 = vpop.f32.mrf.mxu0
    %v1863 = vadd.f32 0.0, %v1862
    %v1864 = vpop.f32.mrf.mxu0
    %1865 = vmatprep.mubr.f32.mxu0 0.0
    %1866 = vmatmul.mubr.f32.gmra.mxu0 %v1786
    %v1867 = vpop.f32.mrf.mxu0
    %v1868 = vadd.f32 0.0, %v1867
    %v1869 = vpop.f32.mrf.mxu0
    %1870 = vmatprep.mubr.f32.mxu0 0.0
    %1871 = vmatmul.mubr.f32.gmra.mxu0 %v1789
    %v1872 = vpop.f32.mrf.mxu0
    %v1873 = vadd.f32 0.0, %v1872
    %v1874 = vpop.f32.mrf.mxu0
    %1875 = vdwg.mxu0
    %v1876 = vadd.f32 %v1110, %v1858
    %v1877 = vadd.f32 %v1111, %v1863
    %v1878 = vadd.f32 %v1112, %v1868
    %v1879 = vadd.f32 %v1113, %v1873
    %1880 = vrot.lane.b32.xlu0 %v153, 112
    %v1881 = vpop.permute.xlu0 %1880
    %1882 = vrot.lane.b32.xlu0 %v249, 112
    %v1883 = vpop.permute.xlu0 %1882
    %v1884 = vsel %vm371, %v1881, 0
    %v1886 = vsel %vm371, %v1883, 0
    %1888 = vmatprep.subr.mxu0 0.0
    %1889 = vmatpush1.xpose.msra.mxu0 0.0
    %1890 = vmatprep.subr.mxu0 0.0
    %1891 = vmatpush1.xpose.msra.mxu0 0.0
    %1892 = vmatprep.subr.mxu0 0.0
    %1893 = vmatpush1.xpose.msra.mxu0 0.0
    %1894 = vmatprep.subr.mxu0 0.0
    %1895 = vmatpush1.xpose.msra.mxu0 0.0
    %1896 = vmatprep.subr.mxu0 0.0
    %1897 = vmatpush1.xpose.msra.mxu0 0.0
    %1898 = vmatprep.subr.mxu0 0.0
    %1899 = vmatpush1.xpose.msra.mxu0 0.0
    %1900 = vmatprep.subr.mxu0 0.0
    %1901 = vmatpush1.xpose.msra.mxu0 0.0
    %1902 = vmatprep.subr.mxu0 0.0
    %1903 = vmatpush1.xpose.msra.mxu0 0.0
    %1904 = vmatprep.subr.mxu0 0.0
    %1905 = vmatpush1.xpose.msra.mxu0 0.0
    %1906 = vmatprep.subr.mxu0 0.0
    %1907 = vmatpush1.xpose.msra.mxu0 0.0
    %1908 = vmatprep.subr.mxu0 0.0
    %1909 = vmatpush1.xpose.msra.mxu0 0.0
    %1910 = vmatprep.subr.mxu0 0.0
    %1911 = vmatpush1.xpose.msra.mxu0 0.0
    %1912 = vmatprep.subr.mxu0 0.0
    %1913 = vmatpush1.xpose.msra.mxu0 0.0
    %1914 = vmatprep.subr.mxu0 0.0
    %1915 = vmatpush1.xpose.msra.mxu0 0.0
    %1916 = vmatprep.subr.mxu0 0.0
    %1917 = vmatpush1.xpose.msra.mxu0 0.0
    %1918 = vmatprep.subr.mxu0 0.0
    %1919 = vmatpush1.xpose.msra.mxu0 %v1886
    %1920 = vmatprep.subr.mxu0 0.0
    %1921 = vmatpush2.xpose.msra.mxu0 0.0
    %1922 = vmatprep.subr.mxu0 0.0
    %1923 = vmatpush2.xpose.msra.mxu0 0.0
    %1924 = vmatprep.subr.mxu0 0.0
    %1925 = vmatpush2.xpose.msra.mxu0 0.0
    %1926 = vmatprep.subr.mxu0 0.0
    %1927 = vmatpush2.xpose.msra.mxu0 0.0
    %1928 = vmatprep.subr.mxu0 0.0
    %1929 = vmatpush2.xpose.msra.mxu0 0.0
    %1930 = vmatprep.subr.mxu0 0.0
    %1931 = vmatpush2.xpose.msra.mxu0 0.0
    %1932 = vmatprep.subr.mxu0 0.0
    %1933 = vmatpush2.xpose.msra.mxu0 0.0
    %1934 = vmatprep.subr.mxu0 0.0
    %1935 = vmatpush2.xpose.msra.mxu0 0.0
    %1936 = vmatprep.subr.mxu0 0.0
    %1937 = vmatpush2.xpose.msra.mxu0 0.0
    %1938 = vmatprep.subr.mxu0 0.0
    %1939 = vmatpush2.xpose.msra.mxu0 0.0
    %1940 = vmatprep.subr.mxu0 0.0
    %1941 = vmatpush2.xpose.msra.mxu0 0.0
    %1942 = vmatprep.subr.mxu0 0.0
    %1943 = vmatpush2.xpose.msra.mxu0 0.0
    %1944 = vmatprep.subr.mxu0 0.0
    %1945 = vmatpush2.xpose.msra.mxu0 0.0
    %1946 = vmatprep.subr.mxu0 0.0
    %1947 = vmatpush2.xpose.msra.mxu0 0.0
    %1948 = vmatprep.subr.mxu0 0.0
    %1949 = vmatpush2.xpose.msra.mxu0 0.0
    %1950 = vmatprep.subr.mxu0 0.0
    %1951 = vmatpush2.xpose.msra.mxu0 0.0
    %1952 = vmatprep.mubr.f32.mxu0 0.0
    %1953 = vmatmul.mubr.f32.gmra.mxu0 %v1884
    %v1954 = vpop.f32.mrf.mxu0
    %v1955 = vadd.f32 0.0, %v1954
    %v1956 = vpop.f32.mrf.mxu0
    %1957 = vdwg.mxu0
    %1958 = vrot.lane.b32.xlu0 %v158, 112
    %v1959 = vpop.permute.xlu0 %1958
    %1960 = vrot.lane.b32.xlu0 %v254, 112
    %v1961 = vpop.permute.xlu0 %1960
    %v1962 = vsel %vm371, %v1959, 0
    %v1964 = vsel %vm371, %v1961, 0
    %1966 = vmatprep.subr.mxu0 0.0
    %1967 = vmatpush1.xpose.msra.mxu0 0.0
    %1968 = vmatprep.subr.mxu0 0.0
    %1969 = vmatpush1.xpose.msra.mxu0 0.0
    %1970 = vmatprep.subr.mxu0 0.0
    %1971 = vmatpush1.xpose.msra.mxu0 0.0
    %1972 = vmatprep.subr.mxu0 0.0
    %1973 = vmatpush1.xpose.msra.mxu0 0.0
    %1974 = vmatprep.subr.mxu0 0.0
    %1975 = vmatpush1.xpose.msra.mxu0 0.0
    %1976 = vmatprep.subr.mxu0 0.0
    %1977 = vmatpush1.xpose.msra.mxu0 0.0
    %1978 = vmatprep.subr.mxu0 0.0
    %1979 = vmatpush1.xpose.msra.mxu0 0.0
    %1980 = vmatprep.subr.mxu0 0.0
    %1981 = vmatpush1.xpose.msra.mxu0 0.0
    %1982 = vmatprep.subr.mxu0 0.0
    %1983 = vmatpush1.xpose.msra.mxu0 0.0
    %1984 = vmatprep.subr.mxu0 0.0
    %1985 = vmatpush1.xpose.msra.mxu0 0.0
    %1986 = vmatprep.subr.mxu0 0.0
    %1987 = vmatpush1.xpose.msra.mxu0 0.0
    %1988 = vmatprep.subr.mxu0 0.0
    %1989 = vmatpush1.xpose.msra.mxu0 0.0
    %1990 = vmatprep.subr.mxu0 0.0
    %1991 = vmatpush1.xpose.msra.mxu0 0.0
    %1992 = vmatprep.subr.mxu0 0.0
    %1993 = vmatpush1.xpose.msra.mxu0 0.0
    %1994 = vmatprep.subr.mxu0 0.0
    %1995 = vmatpush1.xpose.msra.mxu0 0.0
    %1996 = vmatprep.subr.mxu0 0.0
    %1997 = vmatpush1.xpose.msra.mxu0 %v1964
    %1998 = vmatprep.subr.mxu0 0.0
    %1999 = vmatpush2.xpose.msra.mxu0 0.0
    %2000 = vmatprep.subr.mxu0 0.0
    %2001 = vmatpush2.xpose.msra.mxu0 0.0
    %2002 = vmatprep.subr.mxu0 0.0
    %2003 = vmatpush2.xpose.msra.mxu0 0.0
    %2004 = vmatprep.subr.mxu0 0.0
    %2005 = vmatpush2.xpose.msra.mxu0 0.0
    %2006 = vmatprep.subr.mxu0 0.0
    %2007 = vmatpush2.xpose.msra.mxu0 0.0
    %2008 = vmatprep.subr.mxu0 0.0
    %2009 = vmatpush2.xpose.msra.mxu0 0.0
    %2010 = vmatprep.subr.mxu0 0.0
    %2011 = vmatpush2.xpose.msra.mxu0 0.0
    %2012 = vmatprep.subr.mxu0 0.0
    %2013 = vmatpush2.xpose.msra.mxu0 0.0
    %2014 = vmatprep.subr.mxu0 0.0
    %2015 = vmatpush2.xpose.msra.mxu0 0.0
    %2016 = vmatprep.subr.mxu0 0.0
    %2017 = vmatpush2.xpose.msra.mxu0 0.0
    %2018 = vmatprep.subr.mxu0 0.0
    %2019 = vmatpush2.xpose.msra.mxu0 0.0
    %2020 = vmatprep.subr.mxu0 0.0
    %2021 = vmatpush2.xpose.msra.mxu0 0.0
    %2022 = vmatprep.subr.mxu0 0.0
    %2023 = vmatpush2.xpose.msra.mxu0 0.0
    %2024 = vmatprep.subr.mxu0 0.0
    %2025 = vmatpush2.xpose.msra.mxu0 0.0
    %2026 = vmatprep.subr.mxu0 0.0
    %2027 = vmatpush2.xpose.msra.mxu0 0.0
    %2028 = vmatprep.subr.mxu0 0.0
    %2029 = vmatpush2.xpose.msra.mxu0 0.0
    %2030 = vmatprep.mubr.f32.mxu0 0.0
    %2031 = vmatmul.mubr.f32.gmra.mxu0 %v1962
    %v2032 = vpop.f32.mrf.mxu0
    %v2033 = vadd.f32 0.0, %v2032
    %v2034 = vpop.f32.mrf.mxu0
    %2035 = vdwg.mxu0
    %2036 = vrot.lane.b32.xlu0 %v163, 112
    %v2037 = vpop.permute.xlu0 %2036
    %2038 = vrot.lane.b32.xlu0 %v259, 112
    %v2039 = vpop.permute.xlu0 %2038
    %v2040 = vsel %vm371, %v2037, 0
    %v2042 = vsel %vm371, %v2039, 0
    %2044 = vmatprep.subr.mxu0 0.0
    %2045 = vmatpush1.xpose.msra.mxu0 0.0
    %2046 = vmatprep.subr.mxu0 0.0
    %2047 = vmatpush1.xpose.msra.mxu0 0.0
    %2048 = vmatprep.subr.mxu0 0.0
    %2049 = vmatpush1.xpose.msra.mxu0 0.0
    %2050 = vmatprep.subr.mxu0 0.0
    %2051 = vmatpush1.xpose.msra.mxu0 0.0
    %2052 = vmatprep.subr.mxu0 0.0
    %2053 = vmatpush1.xpose.msra.mxu0 0.0
    %2054 = vmatprep.subr.mxu0 0.0
    %2055 = vmatpush1.xpose.msra.mxu0 0.0
    %2056 = vmatprep.subr.mxu0 0.0
    %2057 = vmatpush1.xpose.msra.mxu0 0.0
    %2058 = vmatprep.subr.mxu0 0.0
    %2059 = vmatpush1.xpose.msra.mxu0 0.0
    %2060 = vmatprep.subr.mxu0 0.0
    %2061 = vmatpush1.xpose.msra.mxu0 0.0
    %2062 = vmatprep.subr.mxu0 0.0
    %2063 = vmatpush1.xpose.msra.mxu0 0.0
    %2064 = vmatprep.subr.mxu0 0.0
    %2065 = vmatpush1.xpose.msra.mxu0 0.0
    %2066 = vmatprep.subr.mxu0 0.0
    %2067 = vmatpush1.xpose.msra.mxu0 0.0
    %2068 = vmatprep.subr.mxu0 0.0
    %2069 = vmatpush1.xpose.msra.mxu0 0.0
    %2070 = vmatprep.subr.mxu0 0.0
    %2071 = vmatpush1.xpose.msra.mxu0 0.0
    %2072 = vmatprep.subr.mxu0 0.0
    %2073 = vmatpush1.xpose.msra.mxu0 0.0
    %2074 = vmatprep.subr.mxu0 0.0
    %2075 = vmatpush1.xpose.msra.mxu0 %v2042
    %2076 = vmatprep.subr.mxu0 0.0
    %2077 = vmatpush2.xpose.msra.mxu0 0.0
    %2078 = vmatprep.subr.mxu0 0.0
    %2079 = vmatpush2.xpose.msra.mxu0 0.0
    %2080 = vmatprep.subr.mxu0 0.0
    %2081 = vmatpush2.xpose.msra.mxu0 0.0
    %2082 = vmatprep.subr.mxu0 0.0
    %2083 = vmatpush2.xpose.msra.mxu0 0.0
    %2084 = vmatprep.subr.mxu0 0.0
    %2085 = vmatpush2.xpose.msra.mxu0 0.0
    %2086 = vmatprep.subr.mxu0 0.0
    %2087 = vmatpush2.xpose.msra.mxu0 0.0
    %2088 = vmatprep.subr.mxu0 0.0
    %2089 = vmatpush2.xpose.msra.mxu0 0.0
    %2090 = vmatprep.subr.mxu0 0.0
    %2091 = vmatpush2.xpose.msra.mxu0 0.0
    %2092 = vmatprep.subr.mxu0 0.0
    %2093 = vmatpush2.xpose.msra.mxu0 0.0
    %2094 = vmatprep.subr.mxu0 0.0
    %2095 = vmatpush2.xpose.msra.mxu0 0.0
    %2096 = vmatprep.subr.mxu0 0.0
    %2097 = vmatpush2.xpose.msra.mxu0 0.0
    %2098 = vmatprep.subr.mxu0 0.0
    %2099 = vmatpush2.xpose.msra.mxu0 0.0
    %2100 = vmatprep.subr.mxu0 0.0
    %2101 = vmatpush2.xpose.msra.mxu0 0.0
    %2102 = vmatprep.subr.mxu0 0.0
    %2103 = vmatpush2.xpose.msra.mxu0 0.0
    %2104 = vmatprep.subr.mxu0 0.0
    %2105 = vmatpush2.xpose.msra.mxu0 0.0
    %2106 = vmatprep.subr.mxu0 0.0
    %2107 = vmatpush2.xpose.msra.mxu0 0.0
    %2108 = vmatprep.mubr.f32.mxu0 0.0
    %2109 = vmatmul.mubr.f32.gmra.mxu0 %v2040
    %v2110 = vpop.f32.mrf.mxu0
    %v2111 = vadd.f32 0.0, %v2110
    %v2112 = vpop.f32.mrf.mxu0
    %2113 = vdwg.mxu0
    %2114 = vrot.lane.b32.xlu0 %v168, 112
    %v2115 = vpop.permute.xlu0 %2114
    %2116 = vrot.lane.b32.xlu0 %v264, 112
    %v2117 = vpop.permute.xlu0 %2116
    %v2118 = vsel %vm371, %v2115, 0
    %v2120 = vsel %vm371, %v2117, 0
    %2122 = vmatprep.subr.mxu0 0.0
    %2123 = vmatpush1.xpose.msra.mxu0 0.0
    %2124 = vmatprep.subr.mxu0 0.0
    %2125 = vmatpush1.xpose.msra.mxu0 0.0
    %2126 = vmatprep.subr.mxu0 0.0
    %2127 = vmatpush1.xpose.msra.mxu0 0.0
    %2128 = vmatprep.subr.mxu0 0.0
    %2129 = vmatpush1.xpose.msra.mxu0 0.0
    %2130 = vmatprep.subr.mxu0 0.0
    %2131 = vmatpush1.xpose.msra.mxu0 0.0
    %2132 = vmatprep.subr.mxu0 0.0
    %2133 = vmatpush1.xpose.msra.mxu0 0.0
    %2134 = vmatprep.subr.mxu0 0.0
    %2135 = vmatpush1.xpose.msra.mxu0 0.0
    %2136 = vmatprep.subr.mxu0 0.0
    %2137 = vmatpush1.xpose.msra.mxu0 0.0
    %2138 = vmatprep.subr.mxu0 0.0
    %2139 = vmatpush1.xpose.msra.mxu0 0.0
    %2140 = vmatprep.subr.mxu0 0.0
    %2141 = vmatpush1.xpose.msra.mxu0 0.0
    %2142 = vmatprep.subr.mxu0 0.0
    %2143 = vmatpush1.xpose.msra.mxu0 0.0
    %2144 = vmatprep.subr.mxu0 0.0
    %2145 = vmatpush1.xpose.msra.mxu0 0.0
    %2146 = vmatprep.subr.mxu0 0.0
    %2147 = vmatpush1.xpose.msra.mxu0 0.0
    %2148 = vmatprep.subr.mxu0 0.0
    %2149 = vmatpush1.xpose.msra.mxu0 0.0
    %2150 = vmatprep.subr.mxu0 0.0
    %2151 = vmatpush1.xpose.msra.mxu0 0.0
    %2152 = vmatprep.subr.mxu0 0.0
    %2153 = vmatpush1.xpose.msra.mxu0 %v2120
    %2154 = vmatprep.subr.mxu0 0.0
    %2155 = vmatpush2.xpose.msra.mxu0 0.0
    %2156 = vmatprep.subr.mxu0 0.0
    %2157 = vmatpush2.xpose.msra.mxu0 0.0
    %2158 = vmatprep.subr.mxu0 0.0
    %2159 = vmatpush2.xpose.msra.mxu0 0.0
    %2160 = vmatprep.subr.mxu0 0.0
    %2161 = vmatpush2.xpose.msra.mxu0 0.0
    %2162 = vmatprep.subr.mxu0 0.0
    %2163 = vmatpush2.xpose.msra.mxu0 0.0
    %2164 = vmatprep.subr.mxu0 0.0
    %2165 = vmatpush2.xpose.msra.mxu0 0.0
    %2166 = vmatprep.subr.mxu0 0.0
    %2167 = vmatpush2.xpose.msra.mxu0 0.0
    %2168 = vmatprep.subr.mxu0 0.0
    %2169 = vmatpush2.xpose.msra.mxu0 0.0
    %2170 = vmatprep.subr.mxu0 0.0
    %2171 = vmatpush2.xpose.msra.mxu0 0.0
    %2172 = vmatprep.subr.mxu0 0.0
    %2173 = vmatpush2.xpose.msra.mxu0 0.0
    %2174 = vmatprep.subr.mxu0 0.0
    %2175 = vmatpush2.xpose.msra.mxu0 0.0
    %2176 = vmatprep.subr.mxu0 0.0
    %2177 = vmatpush2.xpose.msra.mxu0 0.0
    %2178 = vmatprep.subr.mxu0 0.0
    %2179 = vmatpush2.xpose.msra.mxu0 0.0
    %2180 = vmatprep.subr.mxu0 0.0
    %2181 = vmatpush2.xpose.msra.mxu0 0.0
    %2182 = vmatprep.subr.mxu0 0.0
    %2183 = vmatpush2.xpose.msra.mxu0 0.0
    %2184 = vmatprep.subr.mxu0 0.0
    %2185 = vmatpush2.xpose.msra.mxu0 0.0
    %2186 = vmatprep.mubr.f32.mxu0 0.0
    %2187 = vmatmul.mubr.f32.gmra.mxu0 %v2118
    %v2188 = vpop.f32.mrf.mxu0
    %v2189 = vadd.f32 0.0, %v2188
    %v2190 = vpop.f32.mrf.mxu0
    %2191 = vdwg.mxu0
    %v2192 = vsel %vm371, %v1955, -inf
    %2193 = vmax.xlane.f32.xlu0 %v2192
    %v2194 = vpop.xlane.xlu0 %2193
    %v2195 = vsel %vm371, %v2033, -inf
    %2196 = vmax.xlane.f32.xlu0 %v2195
    %v2197 = vpop.xlane.xlu0 %2196
    %v2198 = vsel %vm371, %v2111, -inf
    %2199 = vmax.xlane.f32.xlu0 %v2198
    %v2200 = vpop.xlane.xlu0 %2199
    %v2201 = vsel %vm371, %v2189, -inf
    %2202 = vmax.xlane.f32.xlu0 %v2201
    %v2203 = vpop.xlane.xlu0 %2202
    %v2204 = vsub.f32 %v1955, %v2194
    %v2205 = vsub.f32 %v2033, %v2197
    %v2206 = vsub.f32 %v2111, %v2200
    %v2207 = vsub.f32 %v2189, %v2203
    %v2208 = vmul.f32 %v2204, 1.442695
    %v2209 = vpow.pop %v2208
    %v2210 = vmul.f32 %v2205, 1.442695
    %v2211 = vpow.pop %v2210
    %v2212 = vmul.f32 %v2206, 1.442695
    %v2213 = vpow.pop %v2212
    %v2214 = vmul.f32 %v2207, 1.442695
    %v2215 = vpow.pop %v2214
    %v2216 = vsel %vm371, %v2209, 0.0
    %2217 = vadd.xlane.f32.xlu0 %v2216
    %v2218 = vpop.xlane.xlu0 %2217
    %v2219 = vsel %vm371, %v2211, 0.0
    %2220 = vadd.xlane.f32.xlu0 %v2219
    %v2221 = vpop.xlane.xlu0 %2220
    %v2222 = vsel %vm371, %v2213, 0.0
    %2223 = vadd.xlane.f32.xlu0 %v2222
    %v2224 = vpop.xlane.xlu0 %2223
    %v2225 = vsel %vm371, %v2215, 0.0
    %2226 = vadd.xlane.f32.xlu0 %v2225
    %v2227 = vpop.xlane.xlu0 %2226
    %v2228 = vrcp.pop %v2218
    %v2229 = vrcp.pop %v2221
    %v2230 = vrcp.pop %v2224
    %v2231 = vrcp.pop %v2227
    %v2232 = vmul.f32 %v2209, %v2228
    %v2233 = vmul.f32 %v2211, %v2229
    %v2234 = vmul.f32 %v2213, %v2230
    %v2235 = vmul.f32 %v2215, %v2231
    %2236 = vrot.lane.b32.xlu0 %v345, 112
    %v2237 = vpop.permute.xlu0 %2236
    %v2240 = vsel %vm371, %v2232, 0
    %2242 = vmatprep.subr.mxu0 0.0
    %2243 = vmatpush1.msra.mxu0 0.0
    %2244 = vmatprep.subr.mxu0 0.0
    %2245 = vmatpush1.msra.mxu0 0.0
    %2246 = vmatprep.subr.mxu0 0.0
    %2247 = vmatpush1.msra.mxu0 0.0
    %2248 = vmatprep.subr.mxu0 0.0
    %2249 = vmatpush1.msra.mxu0 0.0
    %2250 = vmatprep.subr.mxu0 0.0
    %2251 = vmatpush1.msra.mxu0 0.0
    %2252 = vmatprep.subr.mxu0 0.0
    %2253 = vmatpush1.msra.mxu0 0.0
    %2254 = vmatprep.subr.mxu0 0.0
    %2255 = vmatpush1.msra.mxu0 0.0
    %2256 = vmatprep.subr.mxu0 0.0
    %2257 = vmatpush1.msra.mxu0 0.0
    %2258 = vmatprep.subr.mxu0 0.0
    %2259 = vmatpush1.msra.mxu0 0.0
    %2260 = vmatprep.subr.mxu0 0.0
    %2261 = vmatpush1.msra.mxu0 0.0
    %2262 = vmatprep.subr.mxu0 0.0
    %2263 = vmatpush1.msra.mxu0 0.0
    %2264 = vmatprep.subr.mxu0 0.0
    %2265 = vmatpush1.msra.mxu0 0.0
    %2266 = vmatprep.subr.mxu0 0.0
    %2267 = vmatpush1.msra.mxu0 0.0
    %2268 = vmatprep.subr.mxu0 0.0
    %2269 = vmatpush1.msra.mxu0 0.0
    %2270 = vmatprep.subr.mxu0 0.0
    %2271 = vmatpush1.msra.mxu0 0.0
    %2272 = vmatprep.subr.mxu0 0.0
    %2273 = vmatpush1.msra.mxu0 %v2237
    %2274 = vmatprep.subr.mxu0 0.0
    %2275 = vmatpush2.msra.mxu0 0.0
    %2276 = vmatprep.subr.mxu0 0.0
    %2277 = vmatpush2.msra.mxu0 0.0
    %2278 = vmatprep.subr.mxu0 0.0
    %2279 = vmatpush2.msra.mxu0 0.0
    %2280 = vmatprep.subr.mxu0 0.0
    %2281 = vmatpush2.msra.mxu0 0.0
    %2282 = vmatprep.subr.mxu0 0.0
    %2283 = vmatpush2.msra.mxu0 0.0
    %2284 = vmatprep.subr.mxu0 0.0
    %2285 = vmatpush2.msra.mxu0 0.0
    %2286 = vmatprep.subr.mxu0 0.0
    %2287 = vmatpush2.msra.mxu0 0.0
    %2288 = vmatprep.subr.mxu0 0.0
    %2289 = vmatpush2.msra.mxu0 0.0
    %2290 = vmatprep.subr.mxu0 0.0
    %2291 = vmatpush2.msra.mxu0 0.0
    %2292 = vmatprep.subr.mxu0 0.0
    %2293 = vmatpush2.msra.mxu0 0.0
    %2294 = vmatprep.subr.mxu0 0.0
    %2295 = vmatpush2.msra.mxu0 0.0
    %2296 = vmatprep.subr.mxu0 0.0
    %2297 = vmatpush2.msra.mxu0 0.0
    %2298 = vmatprep.subr.mxu0 0.0
    %2299 = vmatpush2.msra.mxu0 0.0
    %2300 = vmatprep.subr.mxu0 0.0
    %2301 = vmatpush2.msra.mxu0 0.0
    %2302 = vmatprep.subr.mxu0 0.0
    %2303 = vmatpush2.msra.mxu0 0.0
    %2304 = vmatprep.subr.mxu0 0.0
    %2305 = vmatpush2.msra.mxu0 0.0
    %2306 = vmatprep.mubr.f32.mxu0 0.0
    %2307 = vmatmul.mubr.f32.gmra.mxu0 %v2240
    %v2308 = vpop.f32.mrf.mxu0
    %v2309 = vadd.f32 0.0, %v2308
    %v2310 = vpop.f32.mrf.mxu0
    %2311 = vdwg.mxu0
    %2312 = vrot.lane.b32.xlu0 %v350, 112
    %v2313 = vpop.permute.xlu0 %2312
    %v2316 = vsel %vm371, %v2233, 0
    %2318 = vmatprep.subr.mxu0 0.0
    %2319 = vmatpush1.msra.mxu0 0.0
    %2320 = vmatprep.subr.mxu0 0.0
    %2321 = vmatpush1.msra.mxu0 0.0
    %2322 = vmatprep.subr.mxu0 0.0
    %2323 = vmatpush1.msra.mxu0 0.0
    %2324 = vmatprep.subr.mxu0 0.0
    %2325 = vmatpush1.msra.mxu0 0.0
    %2326 = vmatprep.subr.mxu0 0.0
    %2327 = vmatpush1.msra.mxu0 0.0
    %2328 = vmatprep.subr.mxu0 0.0
    %2329 = vmatpush1.msra.mxu0 0.0
    %2330 = vmatprep.subr.mxu0 0.0
    %2331 = vmatpush1.msra.mxu0 0.0
    %2332 = vmatprep.subr.mxu0 0.0
    %2333 = vmatpush1.msra.mxu0 0.0
    %2334 = vmatprep.subr.mxu0 0.0
    %2335 = vmatpush1.msra.mxu0 0.0
    %2336 = vmatprep.subr.mxu0 0.0
    %2337 = vmatpush1.msra.mxu0 0.0
    %2338 = vmatprep.subr.mxu0 0.0
    %2339 = vmatpush1.msra.mxu0 0.0
    %2340 = vmatprep.subr.mxu0 0.0
    %2341 = vmatpush1.msra.mxu0 0.0
    %2342 = vmatprep.subr.mxu0 0.0
    %2343 = vmatpush1.msra.mxu0 0.0
    %2344 = vmatprep.subr.mxu0 0.0
    %2345 = vmatpush1.msra.mxu0 0.0
    %2346 = vmatprep.subr.mxu0 0.0
    %2347 = vmatpush1.msra.mxu0 0.0
    %2348 = vmatprep.subr.mxu0 0.0
    %2349 = vmatpush1.msra.mxu0 %v2313
    %2350 = vmatprep.subr.mxu0 0.0
    %2351 = vmatpush2.msra.mxu0 0.0
    %2352 = vmatprep.subr.mxu0 0.0
    %2353 = vmatpush2.msra.mxu0 0.0
    %2354 = vmatprep.subr.mxu0 0.0
    %2355 = vmatpush2.msra.mxu0 0.0
    %2356 = vmatprep.subr.mxu0 0.0
    %2357 = vmatpush2.msra.mxu0 0.0
    %2358 = vmatprep.subr.mxu0 0.0
    %2359 = vmatpush2.msra.mxu0 0.0
    %2360 = vmatprep.subr.mxu0 0.0
    %2361 = vmatpush2.msra.mxu0 0.0
    %2362 = vmatprep.subr.mxu0 0.0
    %2363 = vmatpush2.msra.mxu0 0.0
    %2364 = vmatprep.subr.mxu0 0.0
    %2365 = vmatpush2.msra.mxu0 0.0
    %2366 = vmatprep.subr.mxu0 0.0
    %2367 = vmatpush2.msra.mxu0 0.0
    %2368 = vmatprep.subr.mxu0 0.0
    %2369 = vmatpush2.msra.mxu0 0.0
    %2370 = vmatprep.subr.mxu0 0.0
    %2371 = vmatpush2.msra.mxu0 0.0
    %2372 = vmatprep.subr.mxu0 0.0
    %2373 = vmatpush2.msra.mxu0 0.0
    %2374 = vmatprep.subr.mxu0 0.0
    %2375 = vmatpush2.msra.mxu0 0.0
    %2376 = vmatprep.subr.mxu0 0.0
    %2377 = vmatpush2.msra.mxu0 0.0
    %2378 = vmatprep.subr.mxu0 0.0
    %2379 = vmatpush2.msra.mxu0 0.0
    %2380 = vmatprep.subr.mxu0 0.0
    %2381 = vmatpush2.msra.mxu0 0.0
    %2382 = vmatprep.mubr.f32.mxu0 0.0
    %2383 = vmatmul.mubr.f32.gmra.mxu0 %v2316
    %v2384 = vpop.f32.mrf.mxu0
    %v2385 = vadd.f32 0.0, %v2384
    %v2386 = vpop.f32.mrf.mxu0
    %2387 = vdwg.mxu0
    %2388 = vrot.lane.b32.xlu0 %v355, 112
    %v2389 = vpop.permute.xlu0 %2388
    %v2392 = vsel %vm371, %v2234, 0
    %2394 = vmatprep.subr.mxu0 0.0
    %2395 = vmatpush1.msra.mxu0 0.0
    %2396 = vmatprep.subr.mxu0 0.0
    %2397 = vmatpush1.msra.mxu0 0.0
    %2398 = vmatprep.subr.mxu0 0.0
    %2399 = vmatpush1.msra.mxu0 0.0
    %2400 = vmatprep.subr.mxu0 0.0
    %2401 = vmatpush1.msra.mxu0 0.0
    %2402 = vmatprep.subr.mxu0 0.0
    %2403 = vmatpush1.msra.mxu0 0.0
    %2404 = vmatprep.subr.mxu0 0.0
    %2405 = vmatpush1.msra.mxu0 0.0
    %2406 = vmatprep.subr.mxu0 0.0
    %2407 = vmatpush1.msra.mxu0 0.0
    %2408 = vmatprep.subr.mxu0 0.0
    %2409 = vmatpush1.msra.mxu0 0.0
    %2410 = vmatprep.subr.mxu0 0.0
    %2411 = vmatpush1.msra.mxu0 0.0
    %2412 = vmatprep.subr.mxu0 0.0
    %2413 = vmatpush1.msra.mxu0 0.0
    %2414 = vmatprep.subr.mxu0 0.0
    %2415 = vmatpush1.msra.mxu0 0.0
    %2416 = vmatprep.subr.mxu0 0.0
    %2417 = vmatpush1.msra.mxu0 0.0
    %2418 = vmatprep.subr.mxu0 0.0
    %2419 = vmatpush1.msra.mxu0 0.0
    %2420 = vmatprep.subr.mxu0 0.0
    %2421 = vmatpush1.msra.mxu0 0.0
    %2422 = vmatprep.subr.mxu0 0.0
    %2423 = vmatpush1.msra.mxu0 0.0
    %2424 = vmatprep.subr.mxu0 0.0
    %2425 = vmatpush1.msra.mxu0 %v2389
    %2426 = vmatprep.subr.mxu0 0.0
    %2427 = vmatpush2.msra.mxu0 0.0
    %2428 = vmatprep.subr.mxu0 0.0
    %2429 = vmatpush2.msra.mxu0 0.0
    %2430 = vmatprep.subr.mxu0 0.0
    %2431 = vmatpush2.msra.mxu0 0.0
    %2432 = vmatprep.subr.mxu0 0.0
    %2433 = vmatpush2.msra.mxu0 0.0
    %2434 = vmatprep.subr.mxu0 0.0
    %2435 = vmatpush2.msra.mxu0 0.0
    %2436 = vmatprep.subr.mxu0 0.0
    %2437 = vmatpush2.msra.mxu0 0.0
    %2438 = vmatprep.subr.mxu0 0.0
    %2439 = vmatpush2.msra.mxu0 0.0
    %2440 = vmatprep.subr.mxu0 0.0
    %2441 = vmatpush2.msra.mxu0 0.0
    %2442 = vmatprep.subr.mxu0 0.0
    %2443 = vmatpush2.msra.mxu0 0.0
    %2444 = vmatprep.subr.mxu0 0.0
    %2445 = vmatpush2.msra.mxu0 0.0
    %2446 = vmatprep.subr.mxu0 0.0
    %2447 = vmatpush2.msra.mxu0 0.0
    %2448 = vmatprep.subr.mxu0 0.0
    %2449 = vmatpush2.msra.mxu0 0.0
    %2450 = vmatprep.subr.mxu0 0.0
    %2451 = vmatpush2.msra.mxu0 0.0
    %2452 = vmatprep.subr.mxu0 0.0
    %2453 = vmatpush2.msra.mxu0 0.0
    %2454 = vmatprep.subr.mxu0 0.0
    %2455 = vmatpush2.msra.mxu0 0.0
    %2456 = vmatprep.subr.mxu0 0.0
    %2457 = vmatpush2.msra.mxu0 0.0
    %2458 = vmatprep.mubr.f32.mxu0 0.0
    %2459 = vmatmul.mubr.f32.gmra.mxu0 %v2392
    %v2460 = vpop.f32.mrf.mxu0
    %v2461 = vadd.f32 0.0, %v2460
    %v2462 = vpop.f32.mrf.mxu0
    %2463 = vdwg.mxu0
    %2464 = vrot.lane.b32.xlu0 %v360, 112
    %v2465 = vpop.permute.xlu0 %2464
    %v2468 = vsel %vm371, %v2235, 0
    %2470 = vmatprep.subr.mxu0 0.0
    %2471 = vmatpush1.msra.mxu0 0.0
    %2472 = vmatprep.subr.mxu0 0.0
    %2473 = vmatpush1.msra.mxu0 0.0
    %2474 = vmatprep.subr.mxu0 0.0
    %2475 = vmatpush1.msra.mxu0 0.0
    %2476 = vmatprep.subr.mxu0 0.0
    %2477 = vmatpush1.msra.mxu0 0.0
    %2478 = vmatprep.subr.mxu0 0.0
    %2479 = vmatpush1.msra.mxu0 0.0
    %2480 = vmatprep.subr.mxu0 0.0
    %2481 = vmatpush1.msra.mxu0 0.0
    %2482 = vmatprep.subr.mxu0 0.0
    %2483 = vmatpush1.msra.mxu0 0.0
    %2484 = vmatprep.subr.mxu0 0.0
    %2485 = vmatpush1.msra.mxu0 0.0
    %2486 = vmatprep.subr.mxu0 0.0
    %2487 = vmatpush1.msra.mxu0 0.0
    %2488 = vmatprep.subr.mxu0 0.0
    %2489 = vmatpush1.msra.mxu0 0.0
    %2490 = vmatprep.subr.mxu0 0.0
    %2491 = vmatpush1.msra.mxu0 0.0
    %2492 = vmatprep.subr.mxu0 0.0
    %2493 = vmatpush1.msra.mxu0 0.0
    %2494 = vmatprep.subr.mxu0 0.0
    %2495 = vmatpush1.msra.mxu0 0.0
    %2496 = vmatprep.subr.mxu0 0.0
    %2497 = vmatpush1.msra.mxu0 0.0
    %2498 = vmatprep.subr.mxu0 0.0
    %2499 = vmatpush1.msra.mxu0 0.0
    %2500 = vmatprep.subr.mxu0 0.0
    %2501 = vmatpush1.msra.mxu0 %v2465
    %2502 = vmatprep.subr.mxu0 0.0
    %2503 = vmatpush2.msra.mxu0 0.0
    %2504 = vmatprep.subr.mxu0 0.0
    %2505 = vmatpush2.msra.mxu0 0.0
    %2506 = vmatprep.subr.mxu0 0.0
    %2507 = vmatpush2.msra.mxu0 0.0
    %2508 = vmatprep.subr.mxu0 0.0
    %2509 = vmatpush2.msra.mxu0 0.0
    %2510 = vmatprep.subr.mxu0 0.0
    %2511 = vmatpush2.msra.mxu0 0.0
    %2512 = vmatprep.subr.mxu0 0.0
    %2513 = vmatpush2.msra.mxu0 0.0
    %2514 = vmatprep.subr.mxu0 0.0
    %2515 = vmatpush2.msra.mxu0 0.0
    %2516 = vmatprep.subr.mxu0 0.0
    %2517 = vmatpush2.msra.mxu0 0.0
    %2518 = vmatprep.subr.mxu0 0.0
    %2519 = vmatpush2.msra.mxu0 0.0
    %2520 = vmatprep.subr.mxu0 0.0
    %2521 = vmatpush2.msra.mxu0 0.0
    %2522 = vmatprep.subr.mxu0 0.0
    %2523 = vmatpush2.msra.mxu0 0.0
    %2524 = vmatprep.subr.mxu0 0.0
    %2525 = vmatpush2.msra.mxu0 0.0
    %2526 = vmatprep.subr.mxu0 0.0
    %2527 = vmatpush2.msra.mxu0 0.0
    %2528 = vmatprep.subr.mxu0 0.0
    %2529 = vmatpush2.msra.mxu0 0.0
    %2530 = vmatprep.subr.mxu0 0.0
    %2531 = vmatpush2.msra.mxu0 0.0
    %2532 = vmatprep.subr.mxu0 0.0
    %2533 = vmatpush2.msra.mxu0 0.0
    %2534 = vmatprep.mubr.f32.mxu0 0.0
    %2535 = vmatmul.mubr.f32.gmra.mxu0 %v2468
    %v2536 = vpop.f32.mrf.mxu0
    %v2537 = vadd.f32 0.0, %v2536
    %v2538 = vpop.f32.mrf.mxu0
    %2539 = vdwg.mxu0
    %v2540 = vld [vmem:[%s7 + $0x10] sm:$0xff]
    %v2542 = vsel %vm371, %v2309, 0
    %v2545 = vsel %vm371, %v2385, 0
    %v2548 = vsel %vm371, %v2461, 0
    %v2551 = vsel %vm371, %v2537, 0
    %2553 = vmatprep.subr.mxu0 0.0
    %2554 = vmatpush1.msra.mxu0 0.0
    %2555 = vmatprep.subr.mxu0 0.0
    %2556 = vmatpush1.msra.mxu0 0.0
    %2557 = vmatprep.subr.mxu0 0.0
    %2558 = vmatpush1.msra.mxu0 0.0
    %2559 = vmatprep.subr.mxu0 0.0
    %2560 = vmatpush1.msra.mxu0 0.0
    %2561 = vmatprep.subr.mxu0 0.0
    %2562 = vmatpush1.msra.mxu0 0.0
    %2563 = vmatprep.subr.mxu0 0.0
    %2564 = vmatpush1.msra.mxu0 0.0
    %2565 = vmatprep.subr.mxu0 0.0
    %2566 = vmatpush1.msra.mxu0 0.0
    %2567 = vmatprep.subr.mxu0 0.0
    %2568 = vmatpush1.msra.mxu0 0.0
    %2569 = vmatprep.subr.mxu0 0.0
    %2570 = vmatpush1.msra.mxu0 0.0
    %2571 = vmatprep.subr.mxu0 0.0
    %2572 = vmatpush1.msra.mxu0 0.0
    %2573 = vmatprep.subr.mxu0 0.0
    %2574 = vmatpush1.msra.mxu0 0.0
    %2575 = vmatprep.subr.mxu0 0.0
    %2576 = vmatpush1.msra.mxu0 0.0
    %2577 = vmatprep.subr.mxu0 0.0
    %2578 = vmatpush1.msra.mxu0 0.0
    %2579 = vmatprep.subr.mxu0 0.0
    %2580 = vmatpush1.msra.mxu0 0.0
    %2581 = vmatprep.subr.mxu0 0.0
    %2582 = vmatpush1.msra.mxu0 0.0
    %2583 = vmatprep.subr.mxu0 0.0
    %2584 = vmatpush1.msra.mxu0 %v2540
    %2585 = vmatprep.subr.mxu0 0.0
    %2586 = vmatpush2.msra.mxu0 0.0
    %2587 = vmatprep.subr.mxu0 0.0
    %2588 = vmatpush2.msra.mxu0 0.0
    %2589 = vmatprep.subr.mxu0 0.0
    %2590 = vmatpush2.msra.mxu0 0.0
    %2591 = vmatprep.subr.mxu0 0.0
    %2592 = vmatpush2.msra.mxu0 0.0
    %2593 = vmatprep.subr.mxu0 0.0
    %2594 = vmatpush2.msra.mxu0 0.0
    %2595 = vmatprep.subr.mxu0 0.0
    %2596 = vmatpush2.msra.mxu0 0.0
    %2597 = vmatprep.subr.mxu0 0.0
    %2598 = vmatpush2.msra.mxu0 0.0
    %2599 = vmatprep.subr.mxu0 0.0
    %2600 = vmatpush2.msra.mxu0 0.0
    %2601 = vmatprep.subr.mxu0 0.0
    %2602 = vmatpush2.msra.mxu0 0.0
    %2603 = vmatprep.subr.mxu0 0.0
    %2604 = vmatpush2.msra.mxu0 0.0
    %2605 = vmatprep.subr.mxu0 0.0
    %2606 = vmatpush2.msra.mxu0 0.0
    %2607 = vmatprep.subr.mxu0 0.0
    %2608 = vmatpush2.msra.mxu0 0.0
    %2609 = vmatprep.subr.mxu0 0.0
    %2610 = vmatpush2.msra.mxu0 0.0
    %2611 = vmatprep.subr.mxu0 0.0
    %2612 = vmatpush2.msra.mxu0 0.0
    %2613 = vmatprep.subr.mxu0 0.0
    %2614 = vmatpush2.msra.mxu0 0.0
    %2615 = vmatprep.subr.mxu0 0.0
    %2616 = vmatpush2.msra.mxu0 0.0
    %2617 = vmatprep.mubr.f32.mxu0 0.0
    %2618 = vmatmul.mubr.f32.gmra.mxu0 %v2542
    %v2619 = vpop.f32.mrf.mxu0
    %v2620 = vadd.f32 0.0, %v2619
    %v2621 = vpop.f32.mrf.mxu0
    %2622 = vmatprep.mubr.f32.mxu0 0.0
    %2623 = vmatmul.mubr.f32.gmra.mxu0 %v2545
    %v2624 = vpop.f32.mrf.mxu0
    %v2625 = vadd.f32 0.0, %v2624
    %v2626 = vpop.f32.mrf.mxu0
    %2627 = vmatprep.mubr.f32.mxu0 0.0
    %2628 = vmatmul.mubr.f32.gmra.mxu0 %v2548
    %v2629 = vpop.f32.mrf.mxu0
    %v2630 = vadd.f32 0.0, %v2629
    %v2631 = vpop.f32.mrf.mxu0
    %2632 = vmatprep.mubr.f32.mxu0 0.0
    %2633 = vmatmul.mubr.f32.gmra.mxu0 %v2551
    %v2634 = vpop.f32.mrf.mxu0
    %v2635 = vadd.f32 0.0, %v2634
    %v2636 = vpop.f32.mrf.mxu0
    %2637 = vdwg.mxu0
    %v2638 = vadd.f32 %v1876, %v2620
    %v2639 = vadd.f32 %v1877, %v2625
    %v2640 = vadd.f32 %v1878, %v2630
    %v2641 = vadd.f32 %v1879, %v2635
    %2642 = vrot.lane.b32.xlu0 %v153, 104
    %v2643 = vpop.permute.xlu0 %2642
    %2644 = vrot.lane.b32.xlu0 %v249, 104
    %v2645 = vpop.permute.xlu0 %2644
    %v2646 = vsel %vm371, %v2643, 0
    %v2648 = vsel %vm371, %v2645, 0
    %2650 = vmatprep.subr.mxu0 0.0
    %2651 = vmatpush1.xpose.msra.mxu0 0.0
    %2652 = vmatprep.subr.mxu0 0.0
    %2653 = vmatpush1.xpose.msra.mxu0 0.0
    %2654 = vmatprep.subr.mxu0 0.0
    %2655 = vmatpush1.xpose.msra.mxu0 0.0
    %2656 = vmatprep.subr.mxu0 0.0
    %2657 = vmatpush1.xpose.msra.mxu0 0.0
    %2658 = vmatprep.subr.mxu0 0.0
    %2659 = vmatpush1.xpose.msra.mxu0 0.0
    %2660 = vmatprep.subr.mxu0 0.0
    %2661 = vmatpush1.xpose.msra.mxu0 0.0
    %2662 = vmatprep.subr.mxu0 0.0
    %2663 = vmatpush1.xpose.msra.mxu0 0.0
    %2664 = vmatprep.subr.mxu0 0.0
    %2665 = vmatpush1.xpose.msra.mxu0 0.0
    %2666 = vmatprep.subr.mxu0 0.0
    %2667 = vmatpush1.xpose.msra.mxu0 0.0
    %2668 = vmatprep.subr.mxu0 0.0
    %2669 = vmatpush1.xpose.msra.mxu0 0.0
    %2670 = vmatprep.subr.mxu0 0.0
    %2671 = vmatpush1.xpose.msra.mxu0 0.0
    %2672 = vmatprep.subr.mxu0 0.0
    %2673 = vmatpush1.xpose.msra.mxu0 0.0
    %2674 = vmatprep.subr.mxu0 0.0
    %2675 = vmatpush1.xpose.msra.mxu0 0.0
    %2676 = vmatprep.subr.mxu0 0.0
    %2677 = vmatpush1.xpose.msra.mxu0 0.0
    %2678 = vmatprep.subr.mxu0 0.0
    %2679 = vmatpush1.xpose.msra.mxu0 0.0
    %2680 = vmatprep.subr.mxu0 0.0
    %2681 = vmatpush1.xpose.msra.mxu0 %v2648
    %2682 = vmatprep.subr.mxu0 0.0
    %2683 = vmatpush2.xpose.msra.mxu0 0.0
    %2684 = vmatprep.subr.mxu0 0.0
    %2685 = vmatpush2.xpose.msra.mxu0 0.0
    %2686 = vmatprep.subr.mxu0 0.0
    %2687 = vmatpush2.xpose.msra.mxu0 0.0
    %2688 = vmatprep.subr.mxu0 0.0
    %2689 = vmatpush2.xpose.msra.mxu0 0.0
    %2690 = vmatprep.subr.mxu0 0.0
    %2691 = vmatpush2.xpose.msra.mxu0 0.0
    %2692 = vmatprep.subr.mxu0 0.0
    %2693 = vmatpush2.xpose.msra.mxu0 0.0
    %2694 = vmatprep.subr.mxu0 0.0
    %2695 = vmatpush2.xpose.msra.mxu0 0.0
    %2696 = vmatprep.subr.mxu0 0.0
    %2697 = vmatpush2.xpose.msra.mxu0 0.0
    %2698 = vmatprep.subr.mxu0 0.0
    %2699 = vmatpush2.xpose.msra.mxu0 0.0
    %2700 = vmatprep.subr.mxu0 0.0
    %2701 = vmatpush2.xpose.msra.mxu0 0.0
    %2702 = vmatprep.subr.mxu0 0.0
    %2703 = vmatpush2.xpose.msra.mxu0 0.0
    %2704 = vmatprep.subr.mxu0 0.0
    %2705 = vmatpush2.xpose.msra.mxu0 0.0
    %2706 = vmatprep.subr.mxu0 0.0
    %2707 = vmatpush2.xpose.msra.mxu0 0.0
    %2708 = vmatprep.subr.mxu0 0.0
    %2709 = vmatpush2.xpose.msra.mxu0 0.0
    %2710 = vmatprep.subr.mxu0 0.0
    %2711 = vmatpush2.xpose.msra.mxu0 0.0
    %2712 = vmatprep.subr.mxu0 0.0
    %2713 = vmatpush2.xpose.msra.mxu0 0.0
    %2714 = vmatprep.mubr.f32.mxu0 0.0
    %2715 = vmatmul.mubr.f32.gmra.mxu0 %v2646
    %v2716 = vpop.f32.mrf.mxu0
    %v2717 = vadd.f32 0.0, %v2716
    %v2718 = vpop.f32.mrf.mxu0
    %2719 = vdwg.mxu0
    %2720 = vrot.lane.b32.xlu0 %v158, 104
    %v2721 = vpop.permute.xlu0 %2720
    %2722 = vrot.lane.b32.xlu0 %v254, 104
    %v2723 = vpop.permute.xlu0 %2722
    %v2724 = vsel %vm371, %v2721, 0
    %v2726 = vsel %vm371, %v2723, 0
    %2728 = vmatprep.subr.mxu0 0.0
    %2729 = vmatpush1.xpose.msra.mxu0 0.0
    %2730 = vmatprep.subr.mxu0 0.0
    %2731 = vmatpush1.xpose.msra.mxu0 0.0
    %2732 = vmatprep.subr.mxu0 0.0
    %2733 = vmatpush1.xpose.msra.mxu0 0.0
    %2734 = vmatprep.subr.mxu0 0.0
    %2735 = vmatpush1.xpose.msra.mxu0 0.0
    %2736 = vmatprep.subr.mxu0 0.0
    %2737 = vmatpush1.xpose.msra.mxu0 0.0
    %2738 = vmatprep.subr.mxu0 0.0
    %2739 = vmatpush1.xpose.msra.mxu0 0.0
    %2740 = vmatprep.subr.mxu0 0.0
    %2741 = vmatpush1.xpose.msra.mxu0 0.0
    %2742 = vmatprep.subr.mxu0 0.0
    %2743 = vmatpush1.xpose.msra.mxu0 0.0
    %2744 = vmatprep.subr.mxu0 0.0
    %2745 = vmatpush1.xpose.msra.mxu0 0.0
    %2746 = vmatprep.subr.mxu0 0.0
    %2747 = vmatpush1.xpose.msra.mxu0 0.0
    %2748 = vmatprep.subr.mxu0 0.0
    %2749 = vmatpush1.xpose.msra.mxu0 0.0
    %2750 = vmatprep.subr.mxu0 0.0
    %2751 = vmatpush1.xpose.msra.mxu0 0.0
    %2752 = vmatprep.subr.mxu0 0.0
    %2753 = vmatpush1.xpose.msra.mxu0 0.0
    %2754 = vmatprep.subr.mxu0 0.0
    %2755 = vmatpush1.xpose.msra.mxu0 0.0
    %2756 = vmatprep.subr.mxu0 0.0
    %2757 = vmatpush1.xpose.msra.mxu0 0.0
    %2758 = vmatprep.subr.mxu0 0.0
    %2759 = vmatpush1.xpose.msra.mxu0 %v2726
    %2760 = vmatprep.subr.mxu0 0.0
    %2761 = vmatpush2.xpose.msra.mxu0 0.0
    %2762 = vmatprep.subr.mxu0 0.0
    %2763 = vmatpush2.xpose.msra.mxu0 0.0
    %2764 = vmatprep.subr.mxu0 0.0
    %2765 = vmatpush2.xpose.msra.mxu0 0.0
    %2766 = vmatprep.subr.mxu0 0.0
    %2767 = vmatpush2.xpose.msra.mxu0 0.0
    %2768 = vmatprep.subr.mxu0 0.0
    %2769 = vmatpush2.xpose.msra.mxu0 0.0
    %2770 = vmatprep.subr.mxu0 0.0
    %2771 = vmatpush2.xpose.msra.mxu0 0.0
    %2772 = vmatprep.subr.mxu0 0.0
    %2773 = vmatpush2.xpose.msra.mxu0 0.0
    %2774 = vmatprep.subr.mxu0 0.0
    %2775 = vmatpush2.xpose.msra.mxu0 0.0
    %2776 = vmatprep.subr.mxu0 0.0
    %2777 = vmatpush2.xpose.msra.mxu0 0.0
    %2778 = vmatprep.subr.mxu0 0.0
    %2779 = vmatpush2.xpose.msra.mxu0 0.0
    %2780 = vmatprep.subr.mxu0 0.0
    %2781 = vmatpush2.xpose.msra.mxu0 0.0
    %2782 = vmatprep.subr.mxu0 0.0
    %2783 = vmatpush2.xpose.msra.mxu0 0.0
    %2784 = vmatprep.subr.mxu0 0.0
    %2785 = vmatpush2.xpose.msra.mxu0 0.0
    %2786 = vmatprep.subr.mxu0 0.0
    %2787 = vmatpush2.xpose.msra.mxu0 0.0
    %2788 = vmatprep.subr.mxu0 0.0
    %2789 = vmatpush2.xpose.msra.mxu0 0.0
    %2790 = vmatprep.subr.mxu0 0.0
    %2791 = vmatpush2.xpose.msra.mxu0 0.0
    %2792 = vmatprep.mubr.f32.mxu0 0.0
    %2793 = vmatmul.mubr.f32.gmra.mxu0 %v2724
    %v2794 = vpop.f32.mrf.mxu0
    %v2795 = vadd.f32 0.0, %v2794
    %v2796 = vpop.f32.mrf.mxu0
    %2797 = vdwg.mxu0
    %2798 = vrot.lane.b32.xlu0 %v163, 104
    %v2799 = vpop.permute.xlu0 %2798
    %2800 = vrot.lane.b32.xlu0 %v259, 104
    %v2801 = vpop.permute.xlu0 %2800
    %v2802 = vsel %vm371, %v2799, 0
    %v2804 = vsel %vm371, %v2801, 0
    %2806 = vmatprep.subr.mxu0 0.0
    %2807 = vmatpush1.xpose.msra.mxu0 0.0
    %2808 = vmatprep.subr.mxu0 0.0
    %2809 = vmatpush1.xpose.msra.mxu0 0.0
    %2810 = vmatprep.subr.mxu0 0.0
    %2811 = vmatpush1.xpose.msra.mxu0 0.0
    %2812 = vmatprep.subr.mxu0 0.0
    %2813 = vmatpush1.xpose.msra.mxu0 0.0
    %2814 = vmatprep.subr.mxu0 0.0
    %2815 = vmatpush1.xpose.msra.mxu0 0.0
    %2816 = vmatprep.subr.mxu0 0.0
    %2817 = vmatpush1.xpose.msra.mxu0 0.0
    %2818 = vmatprep.subr.mxu0 0.0
    %2819 = vmatpush1.xpose.msra.mxu0 0.0
    %2820 = vmatprep.subr.mxu0 0.0
    %2821 = vmatpush1.xpose.msra.mxu0 0.0
    %2822 = vmatprep.subr.mxu0 0.0
    %2823 = vmatpush1.xpose.msra.mxu0 0.0
    %2824 = vmatprep.subr.mxu0 0.0
    %2825 = vmatpush1.xpose.msra.mxu0 0.0
    %2826 = vmatprep.subr.mxu0 0.0
    %2827 = vmatpush1.xpose.msra.mxu0 0.0
    %2828 = vmatprep.subr.mxu0 0.0
    %2829 = vmatpush1.xpose.msra.mxu0 0.0
    %2830 = vmatprep.subr.mxu0 0.0
    %2831 = vmatpush1.xpose.msra.mxu0 0.0
    %2832 = vmatprep.subr.mxu0 0.0
    %2833 = vmatpush1.xpose.msra.mxu0 0.0
    %2834 = vmatprep.subr.mxu0 0.0
    %2835 = vmatpush1.xpose.msra.mxu0 0.0
    %2836 = vmatprep.subr.mxu0 0.0
    %2837 = vmatpush1.xpose.msra.mxu0 %v2804
    %2838 = vmatprep.subr.mxu0 0.0
    %2839 = vmatpush2.xpose.msra.mxu0 0.0
    %2840 = vmatprep.subr.mxu0 0.0
    %2841 = vmatpush2.xpose.msra.mxu0 0.0
    %2842 = vmatprep.subr.mxu0 0.0
    %2843 = vmatpush2.xpose.msra.mxu0 0.0
    %2844 = vmatprep.subr.mxu0 0.0
    %2845 = vmatpush2.xpose.msra.mxu0 0.0
    %2846 = vmatprep.subr.mxu0 0.0
    %2847 = vmatpush2.xpose.msra.mxu0 0.0
    %2848 = vmatprep.subr.mxu0 0.0
    %2849 = vmatpush2.xpose.msra.mxu0 0.0
    %2850 = vmatprep.subr.mxu0 0.0
    %2851 = vmatpush2.xpose.msra.mxu0 0.0
    %2852 = vmatprep.subr.mxu0 0.0
    %2853 = vmatpush2.xpose.msra.mxu0 0.0
    %2854 = vmatprep.subr.mxu0 0.0
    %2855 = vmatpush2.xpose.msra.mxu0 0.0
    %2856 = vmatprep.subr.mxu0 0.0
    %2857 = vmatpush2.xpose.msra.mxu0 0.0
    %2858 = vmatprep.subr.mxu0 0.0
    %2859 = vmatpush2.xpose.msra.mxu0 0.0
    %2860 = vmatprep.subr.mxu0 0.0
    %2861 = vmatpush2.xpose.msra.mxu0 0.0
    %2862 = vmatprep.subr.mxu0 0.0
    %2863 = vmatpush2.xpose.msra.mxu0 0.0
    %2864 = vmatprep.subr.mxu0 0.0
    %2865 = vmatpush2.xpose.msra.mxu0 0.0
    %2866 = vmatprep.subr.mxu0 0.0
    %2867 = vmatpush2.xpose.msra.mxu0 0.0
    %2868 = vmatprep.subr.mxu0 0.0
    %2869 = vmatpush2.xpose.msra.mxu0 0.0
    %2870 = vmatprep.mubr.f32.mxu0 0.0
    %2871 = vmatmul.mubr.f32.gmra.mxu0 %v2802
    %v2872 = vpop.f32.mrf.mxu0
    %v2873 = vadd.f32 0.0, %v2872
    %v2874 = vpop.f32.mrf.mxu0
    %2875 = vdwg.mxu0
    %2876 = vrot.lane.b32.xlu0 %v168, 104
    %v2877 = vpop.permute.xlu0 %2876
    %2878 = vrot.lane.b32.xlu0 %v264, 104
    %v2879 = vpop.permute.xlu0 %2878
    %v2880 = vsel %vm371, %v2877, 0
    %v2882 = vsel %vm371, %v2879, 0
    %2884 = vmatprep.subr.mxu0 0.0
    %2885 = vmatpush1.xpose.msra.mxu0 0.0
    %2886 = vmatprep.subr.mxu0 0.0
    %2887 = vmatpush1.xpose.msra.mxu0 0.0
    %2888 = vmatprep.subr.mxu0 0.0
    %2889 = vmatpush1.xpose.msra.mxu0 0.0
    %2890 = vmatprep.subr.mxu0 0.0
    %2891 = vmatpush1.xpose.msra.mxu0 0.0
    %2892 = vmatprep.subr.mxu0 0.0
    %2893 = vmatpush1.xpose.msra.mxu0 0.0
    %2894 = vmatprep.subr.mxu0 0.0
    %2895 = vmatpush1.xpose.msra.mxu0 0.0
    %2896 = vmatprep.subr.mxu0 0.0
    %2897 = vmatpush1.xpose.msra.mxu0 0.0
    %2898 = vmatprep.subr.mxu0 0.0
    %2899 = vmatpush1.xpose.msra.mxu0 0.0
    %2900 = vmatprep.subr.mxu0 0.0
    %2901 = vmatpush1.xpose.msra.mxu0 0.0
    %2902 = vmatprep.subr.mxu0 0.0
    %2903 = vmatpush1.xpose.msra.mxu0 0.0
    %2904 = vmatprep.subr.mxu0 0.0
    %2905 = vmatpush1.xpose.msra.mxu0 0.0
    %2906 = vmatprep.subr.mxu0 0.0
    %2907 = vmatpush1.xpose.msra.mxu0 0.0
    %2908 = vmatprep.subr.mxu0 0.0
    %2909 = vmatpush1.xpose.msra.mxu0 0.0
    %2910 = vmatprep.subr.mxu0 0.0
    %2911 = vmatpush1.xpose.msra.mxu0 0.0
    %2912 = vmatprep.subr.mxu0 0.0
    %2913 = vmatpush1.xpose.msra.mxu0 0.0
    %2914 = vmatprep.subr.mxu0 0.0
    %2915 = vmatpush1.xpose.msra.mxu0 %v2882
    %2916 = vmatprep.subr.mxu0 0.0
    %2917 = vmatpush2.xpose.msra.mxu0 0.0
    %2918 = vmatprep.subr.mxu0 0.0
    %2919 = vmatpush2.xpose.msra.mxu0 0.0
    %2920 = vmatprep.subr.mxu0 0.0
    %2921 = vmatpush2.xpose.msra.mxu0 0.0
    %2922 = vmatprep.subr.mxu0 0.0
    %2923 = vmatpush2.xpose.msra.mxu0 0.0
    %2924 = vmatprep.subr.mxu0 0.0
    %2925 = vmatpush2.xpose.msra.mxu0 0.0
    %2926 = vmatprep.subr.mxu0 0.0
    %2927 = vmatpush2.xpose.msra.mxu0 0.0
    %2928 = vmatprep.subr.mxu0 0.0
    %2929 = vmatpush2.xpose.msra.mxu0 0.0
    %2930 = vmatprep.subr.mxu0 0.0
    %2931 = vmatpush2.xpose.msra.mxu0 0.0
    %2932 = vmatprep.subr.mxu0 0.0
    %2933 = vmatpush2.xpose.msra.mxu0 0.0
    %2934 = vmatprep.subr.mxu0 0.0
    %2935 = vmatpush2.xpose.msra.mxu0 0.0
    %2936 = vmatprep.subr.mxu0 0.0
    %2937 = vmatpush2.xpose.msra.mxu0 0.0
    %2938 = vmatprep.subr.mxu0 0.0
    %2939 = vmatpush2.xpose.msra.mxu0 0.0
    %2940 = vmatprep.subr.mxu0 0.0
    %2941 = vmatpush2.xpose.msra.mxu0 0.0
    %2942 = vmatprep.subr.mxu0 0.0
    %2943 = vmatpush2.xpose.msra.mxu0 0.0
    %2944 = vmatprep.subr.mxu0 0.0
    %2945 = vmatpush2.xpose.msra.mxu0 0.0
    %2946 = vmatprep.subr.mxu0 0.0
    %2947 = vmatpush2.xpose.msra.mxu0 0.0
    %2948 = vmatprep.mubr.f32.mxu0 0.0
    %2949 = vmatmul.mubr.f32.gmra.mxu0 %v2880
    %v2950 = vpop.f32.mrf.mxu0
    %v2951 = vadd.f32 0.0, %v2950
    %v2952 = vpop.f32.mrf.mxu0
    %2953 = vdwg.mxu0
    %v2954 = vsel %vm371, %v2717, -inf
    %2955 = vmax.xlane.f32.xlu0 %v2954
    %v2956 = vpop.xlane.xlu0 %2955
    %v2957 = vsel %vm371, %v2795, -inf
    %2958 = vmax.xlane.f32.xlu0 %v2957
    %v2959 = vpop.xlane.xlu0 %2958
    %v2960 = vsel %vm371, %v2873, -inf
    %2961 = vmax.xlane.f32.xlu0 %v2960
    %v2962 = vpop.xlane.xlu0 %2961
    %v2963 = vsel %vm371, %v2951, -inf
    %2964 = vmax.xlane.f32.xlu0 %v2963
    %v2965 = vpop.xlane.xlu0 %2964
    %v2966 = vsub.f32 %v2717, %v2956
    %v2967 = vsub.f32 %v2795, %v2959
    %v2968 = vsub.f32 %v2873, %v2962
    %v2969 = vsub.f32 %v2951, %v2965
    %v2970 = vmul.f32 %v2966, 1.442695
    %v2971 = vpow.pop %v2970
    %v2972 = vmul.f32 %v2967, 1.442695
    %v2973 = vpow.pop %v2972
    %v2974 = vmul.f32 %v2968, 1.442695
    %v2975 = vpow.pop %v2974
    %v2976 = vmul.f32 %v2969, 1.442695
    %v2977 = vpow.pop %v2976
    %v2978 = vsel %vm371, %v2971, 0.0
    %2979 = vadd.xlane.f32.xlu0 %v2978
    %v2980 = vpop.xlane.xlu0 %2979
    %v2981 = vsel %vm371, %v2973, 0.0
    %2982 = vadd.xlane.f32.xlu0 %v2981
    %v2983 = vpop.xlane.xlu0 %2982
    %v2984 = vsel %vm371, %v2975, 0.0
    %2985 = vadd.xlane.f32.xlu0 %v2984
    %v2986 = vpop.xlane.xlu0 %2985
    %v2987 = vsel %vm371, %v2977, 0.0
    %2988 = vadd.xlane.f32.xlu0 %v2987
    %v2989 = vpop.xlane.xlu0 %2988
    %v2990 = vrcp.pop %v2980
    %v2991 = vrcp.pop %v2983
    %v2992 = vrcp.pop %v2986
    %v2993 = vrcp.pop %v2989
    %v2994 = vmul.f32 %v2971, %v2990
    %v2995 = vmul.f32 %v2973, %v2991
    %v2996 = vmul.f32 %v2975, %v2992
    %v2997 = vmul.f32 %v2977, %v2993
    %2998 = vrot.lane.b32.xlu0 %v345, 104
    %v2999 = vpop.permute.xlu0 %2998
    %v3002 = vsel %vm371, %v2994, 0
    %3004 = vmatprep.subr.mxu0 0.0
    %3005 = vmatpush1.msra.mxu0 0.0
    %3006 = vmatprep.subr.mxu0 0.0
    %3007 = vmatpush1.msra.mxu0 0.0
    %3008 = vmatprep.subr.mxu0 0.0
    %3009 = vmatpush1.msra.mxu0 0.0
    %3010 = vmatprep.subr.mxu0 0.0
    %3011 = vmatpush1.msra.mxu0 0.0
    %3012 = vmatprep.subr.mxu0 0.0
    %3013 = vmatpush1.msra.mxu0 0.0
    %3014 = vmatprep.subr.mxu0 0.0
    %3015 = vmatpush1.msra.mxu0 0.0
    %3016 = vmatprep.subr.mxu0 0.0
    %3017 = vmatpush1.msra.mxu0 0.0
    %3018 = vmatprep.subr.mxu0 0.0
    %3019 = vmatpush1.msra.mxu0 0.0
    %3020 = vmatprep.subr.mxu0 0.0
    %3021 = vmatpush1.msra.mxu0 0.0
    %3022 = vmatprep.subr.mxu0 0.0
    %3023 = vmatpush1.msra.mxu0 0.0
    %3024 = vmatprep.subr.mxu0 0.0
    %3025 = vmatpush1.msra.mxu0 0.0
    %3026 = vmatprep.subr.mxu0 0.0
    %3027 = vmatpush1.msra.mxu0 0.0
    %3028 = vmatprep.subr.mxu0 0.0
    %3029 = vmatpush1.msra.mxu0 0.0
    %3030 = vmatprep.subr.mxu0 0.0
    %3031 = vmatpush1.msra.mxu0 0.0
    %3032 = vmatprep.subr.mxu0 0.0
    %3033 = vmatpush1.msra.mxu0 0.0
    %3034 = vmatprep.subr.mxu0 0.0
    %3035 = vmatpush1.msra.mxu0 %v2999
    %3036 = vmatprep.subr.mxu0 0.0
    %3037 = vmatpush2.msra.mxu0 0.0
    %3038 = vmatprep.subr.mxu0 0.0
    %3039 = vmatpush2.msra.mxu0 0.0
    %3040 = vmatprep.subr.mxu0 0.0
    %3041 = vmatpush2.msra.mxu0 0.0
    %3042 = vmatprep.subr.mxu0 0.0
    %3043 = vmatpush2.msra.mxu0 0.0
    %3044 = vmatprep.subr.mxu0 0.0
    %3045 = vmatpush2.msra.mxu0 0.0
    %3046 = vmatprep.subr.mxu0 0.0
    %3047 = vmatpush2.msra.mxu0 0.0
    %3048 = vmatprep.subr.mxu0 0.0
    %3049 = vmatpush2.msra.mxu0 0.0
    %3050 = vmatprep.subr.mxu0 0.0
    %3051 = vmatpush2.msra.mxu0 0.0
    %3052 = vmatprep.subr.mxu0 0.0
    %3053 = vmatpush2.msra.mxu0 0.0
    %3054 = vmatprep.subr.mxu0 0.0
    %3055 = vmatpush2.msra.mxu0 0.0
    %3056 = vmatprep.subr.mxu0 0.0
    %3057 = vmatpush2.msra.mxu0 0.0
    %3058 = vmatprep.subr.mxu0 0.0
    %3059 = vmatpush2.msra.mxu0 0.0
    %3060 = vmatprep.subr.mxu0 0.0
    %3061 = vmatpush2.msra.mxu0 0.0
    %3062 = vmatprep.subr.mxu0 0.0
    %3063 = vmatpush2.msra.mxu0 0.0
    %3064 = vmatprep.subr.mxu0 0.0
    %3065 = vmatpush2.msra.mxu0 0.0
    %3066 = vmatprep.subr.mxu0 0.0
    %3067 = vmatpush2.msra.mxu0 0.0
    %3068 = vmatprep.mubr.f32.mxu0 0.0
    %3069 = vmatmul.mubr.f32.gmra.mxu0 %v3002
    %v3070 = vpop.f32.mrf.mxu0
    %v3071 = vadd.f32 0.0, %v3070
    %v3072 = vpop.f32.mrf.mxu0
    %3073 = vdwg.mxu0
    %3074 = vrot.lane.b32.xlu0 %v350, 104
    %v3075 = vpop.permute.xlu0 %3074
    %v3078 = vsel %vm371, %v2995, 0
    %3080 = vmatprep.subr.mxu0 0.0
    %3081 = vmatpush1.msra.mxu0 0.0
    %3082 = vmatprep.subr.mxu0 0.0
    %3083 = vmatpush1.msra.mxu0 0.0
    %3084 = vmatprep.subr.mxu0 0.0
    %3085 = vmatpush1.msra.mxu0 0.0
    %3086 = vmatprep.subr.mxu0 0.0
    %3087 = vmatpush1.msra.mxu0 0.0
    %3088 = vmatprep.subr.mxu0 0.0
    %3089 = vmatpush1.msra.mxu0 0.0
    %3090 = vmatprep.subr.mxu0 0.0
    %3091 = vmatpush1.msra.mxu0 0.0
    %3092 = vmatprep.subr.mxu0 0.0
    %3093 = vmatpush1.msra.mxu0 0.0
    %3094 = vmatprep.subr.mxu0 0.0
    %3095 = vmatpush1.msra.mxu0 0.0
    %3096 = vmatprep.subr.mxu0 0.0
    %3097 = vmatpush1.msra.mxu0 0.0
    %3098 = vmatprep.subr.mxu0 0.0
    %3099 = vmatpush1.msra.mxu0 0.0
    %3100 = vmatprep.subr.mxu0 0.0
    %3101 = vmatpush1.msra.mxu0 0.0
    %3102 = vmatprep.subr.mxu0 0.0
    %3103 = vmatpush1.msra.mxu0 0.0
    %3104 = vmatprep.subr.mxu0 0.0
    %3105 = vmatpush1.msra.mxu0 0.0
    %3106 = vmatprep.subr.mxu0 0.0
    %3107 = vmatpush1.msra.mxu0 0.0
    %3108 = vmatprep.subr.mxu0 0.0
    %3109 = vmatpush1.msra.mxu0 0.0
    %3110 = vmatprep.subr.mxu0 0.0
    %3111 = vmatpush1.msra.mxu0 %v3075
    %3112 = vmatprep.subr.mxu0 0.0
    %3113 = vmatpush2.msra.mxu0 0.0
    %3114 = vmatprep.subr.mxu0 0.0
    %3115 = vmatpush2.msra.mxu0 0.0
    %3116 = vmatprep.subr.mxu0 0.0
    %3117 = vmatpush2.msra.mxu0 0.0
    %3118 = vmatprep.subr.mxu0 0.0
    %3119 = vmatpush2.msra.mxu0 0.0
    %3120 = vmatprep.subr.mxu0 0.0
    %3121 = vmatpush2.msra.mxu0 0.0
    %3122 = vmatprep.subr.mxu0 0.0
    %3123 = vmatpush2.msra.mxu0 0.0
    %3124 = vmatprep.subr.mxu0 0.0
    %3125 = vmatpush2.msra.mxu0 0.0
    %3126 = vmatprep.subr.mxu0 0.0
    %3127 = vmatpush2.msra.mxu0 0.0
    %3128 = vmatprep.subr.mxu0 0.0
    %3129 = vmatpush2.msra.mxu0 0.0
    %3130 = vmatprep.subr.mxu0 0.0
    %3131 = vmatpush2.msra.mxu0 0.0
    %3132 = vmatprep.subr.mxu0 0.0
    %3133 = vmatpush2.msra.mxu0 0.0
    %3134 = vmatprep.subr.mxu0 0.0
    %3135 = vmatpush2.msra.mxu0 0.0
    %3136 = vmatprep.subr.mxu0 0.0
    %3137 = vmatpush2.msra.mxu0 0.0
    %3138 = vmatprep.subr.mxu0 0.0
    %3139 = vmatpush2.msra.mxu0 0.0
    %3140 = vmatprep.subr.mxu0 0.0
    %3141 = vmatpush2.msra.mxu0 0.0
    %3142 = vmatprep.subr.mxu0 0.0
    %3143 = vmatpush2.msra.mxu0 0.0
    %3144 = vmatprep.mubr.f32.mxu0 0.0
    %3145 = vmatmul.mubr.f32.gmra.mxu0 %v3078
    %v3146 = vpop.f32.mrf.mxu0
    %v3147 = vadd.f32 0.0, %v3146
    %v3148 = vpop.f32.mrf.mxu0
    %3149 = vdwg.mxu0
    %3150 = vrot.lane.b32.xlu0 %v355, 104
    %v3151 = vpop.permute.xlu0 %3150
    %v3154 = vsel %vm371, %v2996, 0
    %3156 = vmatprep.subr.mxu0 0.0
    %3157 = vmatpush1.msra.mxu0 0.0
    %3158 = vmatprep.subr.mxu0 0.0
    %3159 = vmatpush1.msra.mxu0 0.0
    %3160 = vmatprep.subr.mxu0 0.0
    %3161 = vmatpush1.msra.mxu0 0.0
    %3162 = vmatprep.subr.mxu0 0.0
    %3163 = vmatpush1.msra.mxu0 0.0
    %3164 = vmatprep.subr.mxu0 0.0
    %3165 = vmatpush1.msra.mxu0 0.0
    %3166 = vmatprep.subr.mxu0 0.0
    %3167 = vmatpush1.msra.mxu0 0.0
    %3168 = vmatprep.subr.mxu0 0.0
    %3169 = vmatpush1.msra.mxu0 0.0
    %3170 = vmatprep.subr.mxu0 0.0
    %3171 = vmatpush1.msra.mxu0 0.0
    %3172 = vmatprep.subr.mxu0 0.0
    %3173 = vmatpush1.msra.mxu0 0.0
    %3174 = vmatprep.subr.mxu0 0.0
    %3175 = vmatpush1.msra.mxu0 0.0
    %3176 = vmatprep.subr.mxu0 0.0
    %3177 = vmatpush1.msra.mxu0 0.0
    %3178 = vmatprep.subr.mxu0 0.0
    %3179 = vmatpush1.msra.mxu0 0.0
    %3180 = vmatprep.subr.mxu0 0.0
    %3181 = vmatpush1.msra.mxu0 0.0
    %3182 = vmatprep.subr.mxu0 0.0
    %3183 = vmatpush1.msra.mxu0 0.0
    %3184 = vmatprep.subr.mxu0 0.0
    %3185 = vmatpush1.msra.mxu0 0.0
    %3186 = vmatprep.subr.mxu0 0.0
    %3187 = vmatpush1.msra.mxu0 %v3151
    %3188 = vmatprep.subr.mxu0 0.0
    %3189 = vmatpush2.msra.mxu0 0.0
    %3190 = vmatprep.subr.mxu0 0.0
    %3191 = vmatpush2.msra.mxu0 0.0
    %3192 = vmatprep.subr.mxu0 0.0
    %3193 = vmatpush2.msra.mxu0 0.0
    %3194 = vmatprep.subr.mxu0 0.0
    %3195 = vmatpush2.msra.mxu0 0.0
    %3196 = vmatprep.subr.mxu0 0.0
    %3197 = vmatpush2.msra.mxu0 0.0
    %3198 = vmatprep.subr.mxu0 0.0
    %3199 = vmatpush2.msra.mxu0 0.0
    %3200 = vmatprep.subr.mxu0 0.0
    %3201 = vmatpush2.msra.mxu0 0.0
    %3202 = vmatprep.subr.mxu0 0.0
    %3203 = vmatpush2.msra.mxu0 0.0
    %3204 = vmatprep.subr.mxu0 0.0
    %3205 = vmatpush2.msra.mxu0 0.0
    %3206 = vmatprep.subr.mxu0 0.0
    %3207 = vmatpush2.msra.mxu0 0.0
    %3208 = vmatprep.subr.mxu0 0.0
    %3209 = vmatpush2.msra.mxu0 0.0
    %3210 = vmatprep.subr.mxu0 0.0
    %3211 = vmatpush2.msra.mxu0 0.0
    %3212 = vmatprep.subr.mxu0 0.0
    %3213 = vmatpush2.msra.mxu0 0.0
    %3214 = vmatprep.subr.mxu0 0.0
    %3215 = vmatpush2.msra.mxu0 0.0
    %3216 = vmatprep.subr.mxu0 0.0
    %3217 = vmatpush2.msra.mxu0 0.0
    %3218 = vmatprep.subr.mxu0 0.0
    %3219 = vmatpush2.msra.mxu0 0.0
    %3220 = vmatprep.mubr.f32.mxu0 0.0
    %3221 = vmatmul.mubr.f32.gmra.mxu0 %v3154
    %v3222 = vpop.f32.mrf.mxu0
    %v3223 = vadd.f32 0.0, %v3222
    %v3224 = vpop.f32.mrf.mxu0
    %3225 = vdwg.mxu0
    %3226 = vrot.lane.b32.xlu0 %v360, 104
    %v3227 = vpop.permute.xlu0 %3226
    %v3230 = vsel %vm371, %v2997, 0
    %3232 = vmatprep.subr.mxu0 0.0
    %3233 = vmatpush1.msra.mxu0 0.0
    %3234 = vmatprep.subr.mxu0 0.0
    %3235 = vmatpush1.msra.mxu0 0.0
    %3236 = vmatprep.subr.mxu0 0.0
    %3237 = vmatpush1.msra.mxu0 0.0
    %3238 = vmatprep.subr.mxu0 0.0
    %3239 = vmatpush1.msra.mxu0 0.0
    %3240 = vmatprep.subr.mxu0 0.0
    %3241 = vmatpush1.msra.mxu0 0.0
    %3242 = vmatprep.subr.mxu0 0.0
    %3243 = vmatpush1.msra.mxu0 0.0
    %3244 = vmatprep.subr.mxu0 0.0
    %3245 = vmatpush1.msra.mxu0 0.0
    %3246 = vmatprep.subr.mxu0 0.0
    %3247 = vmatpush1.msra.mxu0 0.0
    %3248 = vmatprep.subr.mxu0 0.0
    %3249 = vmatpush1.msra.mxu0 0.0
    %3250 = vmatprep.subr.mxu0 0.0
    %3251 = vmatpush1.msra.mxu0 0.0
    %3252 = vmatprep.subr.mxu0 0.0
    %3253 = vmatpush1.msra.mxu0 0.0
    %3254 = vmatprep.subr.mxu0 0.0
    %3255 = vmatpush1.msra.mxu0 0.0
    %3256 = vmatprep.subr.mxu0 0.0
    %3257 = vmatpush1.msra.mxu0 0.0
    %3258 = vmatprep.subr.mxu0 0.0
    %3259 = vmatpush1.msra.mxu0 0.0
    %3260 = vmatprep.subr.mxu0 0.0
    %3261 = vmatpush1.msra.mxu0 0.0
    %3262 = vmatprep.subr.mxu0 0.0
    %3263 = vmatpush1.msra.mxu0 %v3227
    %3264 = vmatprep.subr.mxu0 0.0
    %3265 = vmatpush2.msra.mxu0 0.0
    %3266 = vmatprep.subr.mxu0 0.0
    %3267 = vmatpush2.msra.mxu0 0.0
    %3268 = vmatprep.subr.mxu0 0.0
    %3269 = vmatpush2.msra.mxu0 0.0
    %3270 = vmatprep.subr.mxu0 0.0
    %3271 = vmatpush2.msra.mxu0 0.0
    %3272 = vmatprep.subr.mxu0 0.0
    %3273 = vmatpush2.msra.mxu0 0.0
    %3274 = vmatprep.subr.mxu0 0.0
    %3275 = vmatpush2.msra.mxu0 0.0
    %3276 = vmatprep.subr.mxu0 0.0
    %3277 = vmatpush2.msra.mxu0 0.0
    %3278 = vmatprep.subr.mxu0 0.0
    %3279 = vmatpush2.msra.mxu0 0.0
    %3280 = vmatprep.subr.mxu0 0.0
    %3281 = vmatpush2.msra.mxu0 0.0
    %3282 = vmatprep.subr.mxu0 0.0
    %3283 = vmatpush2.msra.mxu0 0.0
    %3284 = vmatprep.subr.mxu0 0.0
    %3285 = vmatpush2.msra.mxu0 0.0
    %3286 = vmatprep.subr.mxu0 0.0
    %3287 = vmatpush2.msra.mxu0 0.0
    %3288 = vmatprep.subr.mxu0 0.0
    %3289 = vmatpush2.msra.mxu0 0.0
    %3290 = vmatprep.subr.mxu0 0.0
    %3291 = vmatpush2.msra.mxu0 0.0
    %3292 = vmatprep.subr.mxu0 0.0
    %3293 = vmatpush2.msra.mxu0 0.0
    %3294 = vmatprep.subr.mxu0 0.0
    %3295 = vmatpush2.msra.mxu0 0.0
    %3296 = vmatprep.mubr.f32.mxu0 0.0
    %3297 = vmatmul.mubr.f32.gmra.mxu0 %v3230
    %v3298 = vpop.f32.mrf.mxu0
    %v3299 = vadd.f32 0.0, %v3298
    %v3300 = vpop.f32.mrf.mxu0
    %3301 = vdwg.mxu0
    %v3302 = vld [vmem:[%s7 + $0x18] sm:$0xff]
    %v3304 = vsel %vm371, %v3071, 0
    %v3307 = vsel %vm371, %v3147, 0
    %v3310 = vsel %vm371, %v3223, 0
    %v3313 = vsel %vm371, %v3299, 0
    %3315 = vmatprep.subr.mxu0 0.0
    %3316 = vmatpush1.msra.mxu0 0.0
    %3317 = vmatprep.subr.mxu0 0.0
    %3318 = vmatpush1.msra.mxu0 0.0
    %3319 = vmatprep.subr.mxu0 0.0
    %3320 = vmatpush1.msra.mxu0 0.0
    %3321 = vmatprep.subr.mxu0 0.0
    %3322 = vmatpush1.msra.mxu0 0.0
    %3323 = vmatprep.subr.mxu0 0.0
    %3324 = vmatpush1.msra.mxu0 0.0
    %3325 = vmatprep.subr.mxu0 0.0
    %3326 = vmatpush1.msra.mxu0 0.0
    %3327 = vmatprep.subr.mxu0 0.0
    %3328 = vmatpush1.msra.mxu0 0.0
    %3329 = vmatprep.subr.mxu0 0.0
    %3330 = vmatpush1.msra.mxu0 0.0
    %3331 = vmatprep.subr.mxu0 0.0
    %3332 = vmatpush1.msra.mxu0 0.0
    %3333 = vmatprep.subr.mxu0 0.0
    %3334 = vmatpush1.msra.mxu0 0.0
    %3335 = vmatprep.subr.mxu0 0.0
    %3336 = vmatpush1.msra.mxu0 0.0
    %3337 = vmatprep.subr.mxu0 0.0
    %3338 = vmatpush1.msra.mxu0 0.0
    %3339 = vmatprep.subr.mxu0 0.0
    %3340 = vmatpush1.msra.mxu0 0.0
    %3341 = vmatprep.subr.mxu0 0.0
    %3342 = vmatpush1.msra.mxu0 0.0
    %3343 = vmatprep.subr.mxu0 0.0
    %3344 = vmatpush1.msra.mxu0 0.0
    %3345 = vmatprep.subr.mxu0 0.0
    %3346 = vmatpush1.msra.mxu0 %v3302
    %3347 = vmatprep.subr.mxu0 0.0
    %3348 = vmatpush2.msra.mxu0 0.0
    %3349 = vmatprep.subr.mxu0 0.0
    %3350 = vmatpush2.msra.mxu0 0.0
    %3351 = vmatprep.subr.mxu0 0.0
    %3352 = vmatpush2.msra.mxu0 0.0
    %3353 = vmatprep.subr.mxu0 0.0
    %3354 = vmatpush2.msra.mxu0 0.0
    %3355 = vmatprep.subr.mxu0 0.0
    %3356 = vmatpush2.msra.mxu0 0.0
    %3357 = vmatprep.subr.mxu0 0.0
    %3358 = vmatpush2.msra.mxu0 0.0
    %3359 = vmatprep.subr.mxu0 0.0
    %3360 = vmatpush2.msra.mxu0 0.0
    %3361 = vmatprep.subr.mxu0 0.0
    %3362 = vmatpush2.msra.mxu0 0.0
    %3363 = vmatprep.subr.mxu0 0.0
    %3364 = vmatpush2.msra.mxu0 0.0
    %3365 = vmatprep.subr.mxu0 0.0
    %3366 = vmatpush2.msra.mxu0 0.0
    %3367 = vmatprep.subr.mxu0 0.0
    %3368 = vmatpush2.msra.mxu0 0.0
    %3369 = vmatprep.subr.mxu0 0.0
    %3370 = vmatpush2.msra.mxu0 0.0
    %3371 = vmatprep.subr.mxu0 0.0
    %3372 = vmatpush2.msra.mxu0 0.0
    %3373 = vmatprep.subr.mxu0 0.0
    %3374 = vmatpush2.msra.mxu0 0.0
    %3375 = vmatprep.subr.mxu0 0.0
    %3376 = vmatpush2.msra.mxu0 0.0
    %3377 = vmatprep.subr.mxu0 0.0
    %3378 = vmatpush2.msra.mxu0 0.0
    %3379 = vmatprep.mubr.f32.mxu0 0.0
    %3380 = vmatmul.mubr.f32.gmra.mxu0 %v3304
    %v3381 = vpop.f32.mrf.mxu0
    %v3382 = vadd.f32 0.0, %v3381
    %v3383 = vpop.f32.mrf.mxu0
    %3384 = vmatprep.mubr.f32.mxu0 0.0
    %3385 = vmatmul.mubr.f32.gmra.mxu0 %v3307
    %v3386 = vpop.f32.mrf.mxu0
    %v3387 = vadd.f32 0.0, %v3386
    %v3388 = vpop.f32.mrf.mxu0
    %3389 = vmatprep.mubr.f32.mxu0 0.0
    %3390 = vmatmul.mubr.f32.gmra.mxu0 %v3310
    %v3391 = vpop.f32.mrf.mxu0
    %v3392 = vadd.f32 0.0, %v3391
    %v3393 = vpop.f32.mrf.mxu0
    %3394 = vmatprep.mubr.f32.mxu0 0.0
    %3395 = vmatmul.mubr.f32.gmra.mxu0 %v3313
    %v3396 = vpop.f32.mrf.mxu0
    %v3397 = vadd.f32 0.0, %v3396
    %v3398 = vpop.f32.mrf.mxu0
    %3399 = vdwg.mxu0
    %v3400 = vadd.f32 %v2638, %v3382
    %v3401 = vadd.f32 %v2639, %v3387
    %v3402 = vadd.f32 %v2640, %v3392
    %v3403 = vadd.f32 %v2641, %v3397
    %v3404 = vadd.f32 %v3400, %v58
    %v3405 = vadd.f32 %v3401, %v59
    %v3406 = vadd.f32 %v3402, %v60
    %v3407 = vadd.f32 %v3403, %v61
    %v3408 = vld [vmem:[%s9] sm:$0x1]
    %v3409 = vld [vmem:[%s10] sm:$0x1]
    %v3410 = vsel %vm73, %v3404, 0.0
    %3411 = vadd.xlane.f32.xlu0 %v3410
    %v3412 = vpop.xlane.xlu0 %3411
    %v3413 = vsel %vm73, %v3405, 0.0
    %3414 = vadd.xlane.f32.xlu0 %v3413
    %v3415 = vpop.xlane.xlu0 %3414
    %v3416 = vsel %vm73, %v3406, 0.0
    %3417 = vadd.xlane.f32.xlu0 %v3416
    %v3418 = vpop.xlane.xlu0 %3417
    %v3419 = vsel %vm73, %v3407, 0.0
    %3420 = vadd.xlane.f32.xlu0 %v3419
    %v3421 = vpop.xlane.xlu0 %3420
    %v3422 = vrcp.pop 32.0
    %v3423 = vmul.f32 %v3412, %v3422
    %v3424 = vmul.f32 %v3415, %v3422
    %v3425 = vmul.f32 %v3418, %v3422
    %v3426 = vmul.f32 %v3421, %v3422
    %v3427 = vsub.f32 %v3404, %v3423
    %v3428 = vsub.f32 %v3405, %v3424
    %v3429 = vsub.f32 %v3406, %v3425
    %v3430 = vsub.f32 %v3407, %v3426
    %v3431 = vmul.f32 %v3427, %v3427
    %v3432 = vmul.f32 %v3428, %v3428
    %v3433 = vmul.f32 %v3429, %v3429
    %v3434 = vmul.f32 %v3430, %v3430
    %v3435 = vsel %vm73, %v3431, 0.0
    %3436 = vadd.xlane.f32.xlu0 %v3435
    %v3437 = vpop.xlane.xlu0 %3436
    %v3438 = vsel %vm73, %v3432, 0.0
    %3439 = vadd.xlane.f32.xlu0 %v3438
    %v3440 = vpop.xlane.xlu0 %3439
    %v3441 = vsel %vm73, %v3433, 0.0
    %3442 = vadd.xlane.f32.xlu0 %v3441
    %v3443 = vpop.xlane.xlu0 %3442
    %v3444 = vsel %vm73, %v3434, 0.0
    %3445 = vadd.xlane.f32.xlu0 %v3444
    %v3446 = vpop.xlane.xlu0 %3445
    %v3447 = vmul.f32 %v3437, %v3422
    %v3448 = vmul.f32 %v3440, %v3422
    %v3449 = vmul.f32 %v3443, %v3422
    %v3450 = vmul.f32 %v3446, %v3422
    %v3451 = vadd.f32 %v3447, 1e-05
    %v3452 = vadd.f32 %v3448, 1e-05
    %v3453 = vadd.f32 %v3449, 1e-05
    %v3454 = vadd.f32 %v3450, 1e-05
    %v3455 = vrsqrt.pop %v3451
    %v3456 = vrsqrt.pop %v3452
    %v3457 = vrsqrt.pop %v3453
    %v3458 = vrsqrt.pop %v3454
    %v3459 = vmul.f32 %v3427, %v3455
    %v3460 = vmul.f32 %v3428, %v3456
    %v3461 = vmul.f32 %v3429, %v3457
    %v3462 = vmul.f32 %v3430, %v3458
    %v3464 = vlaneseq
    %v3465 = vshrl.u32 %v3464, 7
    %v3466 = vsub.s32 0, %v3465
    %v3467 = vrot.slane %v3408, %v3466
    %v3469 = vmul.f32 %v3459, %v3467
    %v3470 = vmul.f32 %v3460, %v3467
    %v3471 = vmul.f32 %v3461, %v3467
    %v3472 = vmul.f32 %v3462, %v3467
    %v3474 = vlaneseq
    %v3475 = vshrl.u32 %v3474, 7
    %v3476 = vsub.s32 0, %v3475
    %v3477 = vrot.slane %v3409, %v3476
    %v3479 = vadd.f32 %v3469, %v3477
    %v3480 = vadd.f32 %v3470, %v3477
    %v3481 = vadd.f32 %v3471, %v3477
    %v3482 = vadd.f32 %v3472, %v3477
    %v3483 = vpack.c.bf16 %v3480, %v3479
    %v3484 = vpack.c.bf16 %v3482, %v3481
    %v3485 = vld [vmem:[%s14] sm:$0x1]
    %v3487 = vlaneseq
    %v3488 = vshrl.u32 %v3487, 7
    %v3489 = vsub.s32 0, %v3488
    %v3490 = vrot.slane %v3485, %v3489
    %v3492 = vadd.f32 %v3490, 0.0
    %v3493 = vld [vmem:[%s11] sm:$0xff]
    %v3494 = vld [vmem:[%s11 + $0x8] sm:$0xff]
    %v3495 = vld [vmem:[%s11 + $0x40] sm:$0xff]
    %v3496 = vld [vmem:[%s11 + $0x48] sm:$0xff]
    %v3497 = vld [vmem:[%s11 + $0x80] sm:$0xff]
    %v3498 = vld [vmem:[%s11 + $0x88] sm:$0xff]
    %v3499 = vld [vmem:[%s11 + $0xc0] sm:$0xff]
    %v3500 = vld [vmem:[%s11 + $0xc8] sm:$0xff]
    %v3501 = vld [vmem:[%s12] sm:$0xf]
    %v3503 = vlaneseq
    %v3504 = vshrl.u32 %v3503, 7
    %v3505 = vsub.s32 0, %v3504
    %v3506 = vrot.slane %v3501, %v3505
    %v3507 = vlaneseq
    %v3508 = vshrl.u32 %v3507, 7
    %v3509 = vsub.s32 1, %v3508
    %v3510 = vrot.slane %v3501, %v3509
    %v3511 = vlaneseq
    %v3512 = vshrl.u32 %v3511, 7
    %v3513 = vsub.s32 2, %v3512
    %v3514 = vrot.slane %v3501, %v3513
    %v3515 = vlaneseq
    %v3516 = vshrl.u32 %v3515, 7
    %v3517 = vsub.s32 3, %v3516
    %v3518 = vrot.slane %v3501, %v3517
    %v3531 = vunpack.c.l.b16 %v3493
    %v3532 = vunpack.c.h.b16 %v3493
    %v3533 = vunpack.c.l.b16 %v3494
    %v3534 = vunpack.c.h.b16 %v3494
    %v3535 = vunpack.c.l.b16 %v3495
    %v3536 = vunpack.c.h.b16 %v3495
    %v3537 = vunpack.c.l.b16 %v3496
    %v3538 = vunpack.c.h.b16 %v3496
    %v3539 = vunpack.c.l.b16 %v3497
    %v3540 = vunpack.c.h.b16 %v3497
    %v3541 = vunpack.c.l.b16 %v3498
    %v3542 = vunpack.c.h.b16 %v3498
    %v3543 = vunpack.c.l.b16 %v3499
    %v3544 = vunpack.c.h.b16 %v3499
    %v3545 = vunpack.c.l.b16 %v3500
    %v3546 = vunpack.c.h.b16 %v3500
    %v3547 = vpack.c.b16 %v3535, %v3531
    %v3548 = vpack.c.b16 %v3536, %v3532
    %v3549 = vpack.c.b16 %v3537, %v3533
    %v3550 = vpack.c.b16 %v3538, %v3534
    %v3551 = vpack.c.b16 %v3543, %v3539
    %v3552 = vpack.c.b16 %v3544, %v3540
    %v3553 = vpack.c.b16 %v3545, %v3541
    %v3554 = vpack.c.b16 %v3546, %v3542
    %v3564 = vsel %vm73, %v3483, 0
    %v3567 = vsel %vm73, %v3484, 0
    %3569 = vmatprep.subr.bf16.mxu0 0
    %3570 = vmatpush1.bf16.msra.mxu0 0
    %3571 = vmatprep.subr.bf16.mxu0 0
    %3572 = vmatpush1.bf16.msra.mxu0 0
    %3573 = vmatprep.subr.bf16.mxu0 0
    %3574 = vmatpush1.bf16.msra.mxu0 0
    %3575 = vmatprep.subr.bf16.mxu0 0
    %3576 = vmatpush1.bf16.msra.mxu0 0
    %3577 = vmatprep.subr.bf16.mxu0 0
    %3578 = vmatpush1.bf16.msra.mxu0 0
    %3579 = vmatprep.subr.bf16.mxu0 0
    %3580 = vmatpush1.bf16.msra.mxu0 0
    %3581 = vmatprep.subr.bf16.mxu0 %v3552
    %3582 = vmatpush1.bf16.msra.mxu0 %v3551
    %3583 = vmatprep.subr.bf16.mxu0 %v3548
    %3584 = vmatpush1.bf16.msra.mxu0 %v3547
    %3585 = vmatprep.subr.bf16.mxu0 0
    %3586 = vmatpush2.bf16.msra.mxu0 0
    %3587 = vmatprep.subr.bf16.mxu0 0
    %3588 = vmatpush2.bf16.msra.mxu0 0
    %3589 = vmatprep.subr.bf16.mxu0 0
    %3590 = vmatpush2.bf16.msra.mxu0 0
    %3591 = vmatprep.subr.bf16.mxu0 0
    %3592 = vmatpush2.bf16.msra.mxu0 0
    %3593 = vmatprep.subr.bf16.mxu0 0
    %3594 = vmatpush2.bf16.msra.mxu0 0
    %3595 = vmatprep.subr.bf16.mxu0 0
    %3596 = vmatpush2.bf16.msra.mxu0 0
    %3597 = vmatprep.subr.bf16.mxu0 0
    %3598 = vmatpush2.bf16.msra.mxu0 0
    %3599 = vmatprep.subr.bf16.mxu0 0
    %3600 = vmatpush2.bf16.msra.mxu0 0
    %3601 = vmatprep.mubr.bf16.mxu0 0
    %3602 = vmatmul.mubr.bf16.gmra.mxu0 %v3564
    %v3603 = vpop.f32.mrf.mxu0
    %v3604 = vadd.f32 %v3506, %v3603
    %v3605 = vpop.f32.mrf.mxu0
    %v3606 = vadd.f32 %v3510, %v3605
    %v3607 = vpop.f32.mrf.mxu0
    %v3608 = vadd.f32 %v3506, %v3607
    %v3609 = vpop.f32.mrf.mxu0
    %v3610 = vadd.f32 %v3510, %v3609
    %3611 = vmatprep.mubr.bf16.mxu0 0
    %3612 = vmatmul.mubr.bf16.gmra.mxu0 %v3567
    %v3613 = vpop.f32.mrf.mxu0
    %v3614 = vadd.f32 %v3506, %v3613
    %v3615 = vpop.f32.mrf.mxu0
    %v3616 = vadd.f32 %v3510, %v3615
    %v3617 = vpop.f32.mrf.mxu0
    %v3618 = vadd.f32 %v3506, %v3617
    %v3619 = vpop.f32.mrf.mxu0
    %v3620 = vadd.f32 %v3510, %v3619
    %3621 = vdwg.mxu0
    %3622 = vmatprep.subr.bf16.mxu0 0
    %3623 = vmatpush1.bf16.msra.mxu0 0
    %3624 = vmatprep.subr.bf16.mxu0 0
    %3625 = vmatpush1.bf16.msra.mxu0 0
    %3626 = vmatprep.subr.bf16.mxu0 0
    %3627 = vmatpush1.bf16.msra.mxu0 0
    %3628 = vmatprep.subr.bf16.mxu0 0
    %3629 = vmatpush1.bf16.msra.mxu0 0
    %3630 = vmatprep.subr.bf16.mxu0 0
    %3631 = vmatpush1.bf16.msra.mxu0 0
    %3632 = vmatprep.subr.bf16.mxu0 0
    %3633 = vmatpush1.bf16.msra.mxu0 0
    %3634 = vmatprep.subr.bf16.mxu0 %v3554
    %3635 = vmatpush1.bf16.msra.mxu0 %v3553
    %3636 = vmatprep.subr.bf16.mxu0 %v3550
    %3637 = vmatpush1.bf16.msra.mxu0 %v3549
    %3638 = vmatprep.subr.bf16.mxu0 0
    %3639 = vmatpush2.bf16.msra.mxu0 0
    %3640 = vmatprep.subr.bf16.mxu0 0
    %3641 = vmatpush2.bf16.msra.mxu0 0
    %3642 = vmatprep.subr.bf16.mxu0 0
    %3643 = vmatpush2.bf16.msra.mxu0 0
    %3644 = vmatprep.subr.bf16.mxu0 0
    %3645 = vmatpush2.bf16.msra.mxu0 0
    %3646 = vmatprep.subr.bf16.mxu0 0
    %3647 = vmatpush2.bf16.msra.mxu0 0
    %3648 = vmatprep.subr.bf16.mxu0 0
    %3649 = vmatpush2.bf16.msra.mxu0 0
    %3650 = vmatprep.subr.bf16.mxu0 0
    %3651 = vmatpush2.bf16.msra.mxu0 0
    %3652 = vmatprep.subr.bf16.mxu0 0
    %3653 = vmatpush2.bf16.msra.mxu0 0
    %3654 = vmatprep.mubr.bf16.mxu0 0
    %3655 = vmatmul.mubr.bf16.gmra.mxu0 %v3564
    %v3656 = vpop.f32.mrf.mxu0
    %v3657 = vadd.f32 %v3514, %v3656
    %v3658 = vpop.f32.mrf.mxu0
    %v3659 = vadd.f32 %v3518, %v3658
    %v3660 = vpop.f32.mrf.mxu0
    %v3661 = vadd.f32 %v3514, %v3660
    %v3662 = vpop.f32.mrf.mxu0
    %v3663 = vadd.f32 %v3518, %v3662
    %3664 = vmatprep.mubr.bf16.mxu0 0
    %3665 = vmatmul.mubr.bf16.gmra.mxu0 %v3567
    %v3666 = vpop.f32.mrf.mxu0
    %v3667 = vadd.f32 %v3514, %v3666
    %v3668 = vpop.f32.mrf.mxu0
    %v3669 = vadd.f32 %v3518, %v3668
    %v3670 = vpop.f32.mrf.mxu0
    %v3671 = vadd.f32 %v3514, %v3670
    %v3672 = vpop.f32.mrf.mxu0
    %v3673 = vadd.f32 %v3518, %v3672
    %3674 = vdwg.mxu0
    %v3675 = vmax.f32 %v3604, 0.0
    %v3676 = vmax.f32 %v3606, 0.0
    %v3677 = vmax.f32 %v3657, 0.0
    %v3678 = vmax.f32 %v3659, 0.0
    %v3679 = vmax.f32 %v3608, 0.0
    %v3680 = vmax.f32 %v3610, 0.0
    %v3681 = vmax.f32 %v3661, 0.0
    %v3682 = vmax.f32 %v3663, 0.0
    %v3683 = vmax.f32 %v3614, 0.0
    %v3684 = vmax.f32 %v3616, 0.0
    %v3685 = vmax.f32 %v3667, 0.0
    %v3686 = vmax.f32 %v3669, 0.0
    %v3687 = vmax.f32 %v3618, 0.0
    %v3688 = vmax.f32 %v3620, 0.0
    %v3689 = vmax.f32 %v3671, 0.0
    %v3690 = vmax.f32 %v3673, 0.0
    %v3691 = vpack.c.bf16 %v3679, %v3675
    %v3692 = vpack.c.bf16 %v3680, %v3676
    %v3693 = vpack.c.bf16 %v3681, %v3677
    %v3694 = vpack.c.bf16 %v3682, %v3678
    %v3695 = vpack.c.bf16 %v3687, %v3683
    %v3696 = vpack.c.bf16 %v3688, %v3684
    %v3697 = vpack.c.bf16 %v3689, %v3685
    %v3698 = vpack.c.bf16 %v3690, %v3686
    %v3699 = vld [vmem:[%s13] sm:$0xf]
    %v3700 = vld [vmem:[%s13 + $0x4] sm:$0xf]
    %v3701 = vld [vmem:[%s13 + $0x8] sm:$0xf]
    %v3702 = vld [vmem:[%s13 + $0xc] sm:$0xf]
    %v3703 = vld [vmem:[%s13 + $0x10] sm:$0xf]
    %v3704 = vld [vmem:[%s13 + $0x14] sm:$0xf]
    %v3705 = vld [vmem:[%s13 + $0x18] sm:$0xf]
    %v3706 = vld [vmem:[%s13 + $0x1c] sm:$0xf]
    %v3707 = vld [vmem:[%s13 + $0x20] sm:$0xf]
    %v3708 = vld [vmem:[%s13 + $0x24] sm:$0xf]
    %v3709 = vld [vmem:[%s13 + $0x28] sm:$0xf]
    %v3710 = vld [vmem:[%s13 + $0x2c] sm:$0xf]
    %v3711 = vld [vmem:[%s13 + $0x30] sm:$0xf]
    %v3712 = vld [vmem:[%s13 + $0x34] sm:$0xf]
    %v3713 = vld [vmem:[%s13 + $0x38] sm:$0xf]
    %v3714 = vld [vmem:[%s13 + $0x3c] sm:$0xf]
    %v3715 = vld [vmem:[%s13 + $0x40] sm:$0xf]
    %v3716 = vld [vmem:[%s13 + $0x44] sm:$0xf]
    %v3717 = vld [vmem:[%s13 + $0x48] sm:$0xf]
    %v3718 = vld [vmem:[%s13 + $0x4c] sm:$0xf]
    %v3719 = vld [vmem:[%s13 + $0x50] sm:$0xf]
    %v3720 = vld [vmem:[%s13 + $0x54] sm:$0xf]
    %v3721 = vld [vmem:[%s13 + $0x58] sm:$0xf]
    %v3722 = vld [vmem:[%s13 + $0x5c] sm:$0xf]
    %v3723 = vld [vmem:[%s13 + $0x60] sm:$0xf]
    %v3724 = vld [vmem:[%s13 + $0x64] sm:$0xf]
    %v3725 = vld [vmem:[%s13 + $0x68] sm:$0xf]
    %v3726 = vld [vmem:[%s13 + $0x6c] sm:$0xf]
    %v3727 = vld [vmem:[%s13 + $0x70] sm:$0xf]
    %v3728 = vld [vmem:[%s13 + $0x74] sm:$0xf]
    %v3729 = vld [vmem:[%s13 + $0x78] sm:$0xf]
    %v3730 = vld [vmem:[%s13 + $0x7c] sm:$0xf]
    %v3731 = vld [vmem:[%s13 + $0x80] sm:$0xf]
    %v3732 = vld [vmem:[%s13 + $0x84] sm:$0xf]
    %v3733 = vld [vmem:[%s13 + $0x88] sm:$0xf]
    %v3734 = vld [vmem:[%s13 + $0x8c] sm:$0xf]
    %v3735 = vld [vmem:[%s13 + $0x90] sm:$0xf]
    %v3736 = vld [vmem:[%s13 + $0x94] sm:$0xf]
    %v3737 = vld [vmem:[%s13 + $0x98] sm:$0xf]
    %v3738 = vld [vmem:[%s13 + $0x9c] sm:$0xf]
    %v3739 = vld [vmem:[%s13 + $0xa0] sm:$0xf]
    %v3740 = vld [vmem:[%s13 + $0xa4] sm:$0xf]
    %v3741 = vld [vmem:[%s13 + $0xa8] sm:$0xf]
    %v3742 = vld [vmem:[%s13 + $0xac] sm:$0xf]
    %v3743 = vld [vmem:[%s13 + $0xb0] sm:$0xf]
    %v3744 = vld [vmem:[%s13 + $0xb4] sm:$0xf]
    %v3745 = vld [vmem:[%s13 + $0xb8] sm:$0xf]
    %v3746 = vld [vmem:[%s13 + $0xbc] sm:$0xf]
    %v3747 = vld [vmem:[%s13 + $0xc0] sm:$0xf]
    %v3748 = vld [vmem:[%s13 + $0xc4] sm:$0xf]
    %v3749 = vld [vmem:[%s13 + $0xc8] sm:$0xf]
    %v3750 = vld [vmem:[%s13 + $0xcc] sm:$0xf]
    %v3751 = vld [vmem:[%s13 + $0xd0] sm:$0xf]
    %v3752 = vld [vmem:[%s13 + $0xd4] sm:$0xf]
    %v3753 = vld [vmem:[%s13 + $0xd8] sm:$0xf]
    %v3754 = vld [vmem:[%s13 + $0xdc] sm:$0xf]
    %v3755 = vld [vmem:[%s13 + $0xe0] sm:$0xf]
    %v3756 = vld [vmem:[%s13 + $0xe4] sm:$0xf]
    %v3757 = vld [vmem:[%s13 + $0xe8] sm:$0xf]
    %v3758 = vld [vmem:[%s13 + $0xec] sm:$0xf]
    %v3759 = vld [vmem:[%s13 + $0xf0] sm:$0xf]
    %v3760 = vld [vmem:[%s13 + $0xf4] sm:$0xf]
    %v3761 = vld [vmem:[%s13 + $0xf8] sm:$0xf]
    %v3762 = vld [vmem:[%s13 + $0xfc] sm:$0xf]
    %v3827 = vunpack.c.l.b16 %v3699
    %v3828 = vunpack.c.l.b16 %v3700
    %v3829 = vunpack.c.l.b16 %v3701
    %v3830 = vunpack.c.l.b16 %v3702
    %v3831 = vunpack.c.l.b16 %v3703
    %v3832 = vunpack.c.l.b16 %v3704
    %v3833 = vunpack.c.l.b16 %v3705
    %v3834 = vunpack.c.l.b16 %v3706
    %v3835 = vunpack.c.l.b16 %v3707
    %v3836 = vunpack.c.l.b16 %v3708
    %v3837 = vunpack.c.l.b16 %v3709
    %v3838 = vunpack.c.l.b16 %v3710
    %v3839 = vunpack.c.l.b16 %v3711
    %v3840 = vunpack.c.l.b16 %v3712
    %v3841 = vunpack.c.l.b16 %v3713
    %v3842 = vunpack.c.l.b16 %v3714
    %v3843 = vunpack.c.l.b16 %v3715
    %v3844 = vunpack.c.l.b16 %v3716
    %v3845 = vunpack.c.l.b16 %v3717
    %v3846 = vunpack.c.l.b16 %v3718
    %v3847 = vunpack.c.l.b16 %v3719
    %v3848 = vunpack.c.l.b16 %v3720
    %v3849 = vunpack.c.l.b16 %v3721
    %v3850 = vunpack.c.l.b16 %v3722
    %v3851 = vunpack.c.l.b16 %v3723
    %v3852 = vunpack.c.l.b16 %v3724
    %v3853 = vunpack.c.l.b16 %v3725
    %v3854 = vunpack.c.l.b16 %v3726
    %v3855 = vunpack.c.l.b16 %v3727
    %v3856 = vunpack.c.l.b16 %v3728
    %v3857 = vunpack.c.l.b16 %v3729
    %v3858 = vunpack.c.l.b16 %v3730
    %v3859 = vunpack.c.l.b16 %v3731
    %v3860 = vunpack.c.l.b16 %v3732
    %v3861 = vunpack.c.l.b16 %v3733
    %v3862 = vunpack.c.l.b16 %v3734
    %v3863 = vunpack.c.l.b16 %v3735
    %v3864 = vunpack.c.l.b16 %v3736
    %v3865 = vunpack.c.l.b16 %v3737
    %v3866 = vunpack.c.l.b16 %v3738
    %v3867 = vunpack.c.l.b16 %v3739
    %v3868 = vunpack.c.l.b16 %v3740
    %v3869 = vunpack.c.l.b16 %v3741
    %v3870 = vunpack.c.l.b16 %v3742
    %v3871 = vunpack.c.l.b16 %v3743
    %v3872 = vunpack.c.l.b16 %v3744
    %v3873 = vunpack.c.l.b16 %v3745
    %v3874 = vunpack.c.l.b16 %v3746
    %v3875 = vunpack.c.l.b16 %v3747
    %v3876 = vunpack.c.l.b16 %v3748
    %v3877 = vunpack.c.l.b16 %v3749
    %v3878 = vunpack.c.l.b16 %v3750
    %v3879 = vunpack.c.l.b16 %v3751
    %v3880 = vunpack.c.l.b16 %v3752
    %v3881 = vunpack.c.l.b16 %v3753
    %v3882 = vunpack.c.l.b16 %v3754
    %v3883 = vunpack.c.l.b16 %v3755
    %v3884 = vunpack.c.l.b16 %v3756
    %v3885 = vunpack.c.l.b16 %v3757
    %v3886 = vunpack.c.l.b16 %v3758
    %v3887 = vunpack.c.l.b16 %v3759
    %v3888 = vunpack.c.l.b16 %v3760
    %v3889 = vunpack.c.l.b16 %v3761
    %v3890 = vunpack.c.l.b16 %v3762
    %v3891 = vpack.c.b16 %v3828, %v3827
    %v3892 = vpack.c.b16 %v3830, %v3829
    %v3893 = vpack.c.b16 %v3832, %v3831
    %v3894 = vpack.c.b16 %v3834, %v3833
    %v3895 = vpack.c.b16 %v3836, %v3835
    %v3896 = vpack.c.b16 %v3838, %v3837
    %v3897 = vpack.c.b16 %v3840, %v3839
    %v3898 = vpack.c.b16 %v3842, %v3841
    %v3899 = vpack.c.b16 %v3844, %v3843
    %v3900 = vpack.c.b16 %v3846, %v3845
    %v3901 = vpack.c.b16 %v3848, %v3847
    %v3902 = vpack.c.b16 %v3850, %v3849
    %v3903 = vpack.c.b16 %v3852, %v3851
    %v3904 = vpack.c.b16 %v3854, %v3853
    %v3905 = vpack.c.b16 %v3856, %v3855
    %v3906 = vpack.c.b16 %v3858, %v3857
    %v3907 = vpack.c.b16 %v3860, %v3859
    %v3908 = vpack.c.b16 %v3862, %v3861
    %v3909 = vpack.c.b16 %v3864, %v3863
    %v3910 = vpack.c.b16 %v3866, %v3865
    %v3911 = vpack.c.b16 %v3868, %v3867
    %v3912 = vpack.c.b16 %v3870, %v3869
    %v3913 = vpack.c.b16 %v3872, %v3871
    %v3914 = vpack.c.b16 %v3874, %v3873
    %v3915 = vpack.c.b16 %v3876, %v3875
    %v3916 = vpack.c.b16 %v3878, %v3877
    %v3917 = vpack.c.b16 %v3880, %v3879
    %v3918 = vpack.c.b16 %v3882, %v3881
    %v3919 = vpack.c.b16 %v3884, %v3883
    %v3920 = vpack.c.b16 %v3886, %v3885
    %v3921 = vpack.c.b16 %v3888, %v3887
    %v3922 = vpack.c.b16 %v3890, %v3889
    %3955 = vmatprep.subr.bf16.mxu0 0
    %3956 = vmatpush1.bf16.msra.mxu0 %v3898
    %3957 = vmatprep.subr.bf16.mxu0 0
    %3958 = vmatpush1.bf16.msra.mxu0 %v3897
    %3959 = vmatprep.subr.bf16.mxu0 0
    %3960 = vmatpush1.bf16.msra.mxu0 %v3896
    %3961 = vmatprep.subr.bf16.mxu0 0
    %3962 = vmatpush1.bf16.msra.mxu0 %v3895
    %3963 = vmatprep.subr.bf16.mxu0 0
    %3964 = vmatpush1.bf16.msra.mxu0 %v3894
    %3965 = vmatprep.subr.bf16.mxu0 0
    %3966 = vmatpush1.bf16.msra.mxu0 %v3893
    %3967 = vmatprep.subr.bf16.mxu0 0
    %3968 = vmatpush1.bf16.msra.mxu0 %v3892
    %3969 = vmatprep.subr.bf16.mxu0 0
    %3970 = vmatpush1.bf16.msra.mxu0 %v3891
    %3971 = vmatprep.subr.bf16.mxu0 0
    %3972 = vmatpush2.bf16.msra.mxu0 %v3906
    %3973 = vmatprep.subr.bf16.mxu0 0
    %3974 = vmatpush2.bf16.msra.mxu0 %v3905
    %3975 = vmatprep.subr.bf16.mxu0 0
    %3976 = vmatpush2.bf16.msra.mxu0 %v3904
    %3977 = vmatprep.subr.bf16.mxu0 0
    %3978 = vmatpush2.bf16.msra.mxu0 %v3903
    %3979 = vmatprep.subr.bf16.mxu0 0
    %3980 = vmatpush2.bf16.msra.mxu0 %v3902
    %3981 = vmatprep.subr.bf16.mxu0 0
    %3982 = vmatpush2.bf16.msra.mxu0 %v3901
    %3983 = vmatprep.subr.bf16.mxu0 0
    %3984 = vmatpush2.bf16.msra.mxu0 %v3900
    %3985 = vmatprep.subr.bf16.mxu0 0
    %3986 = vmatpush2.bf16.msra.mxu0 %v3899
    %3987 = vmatprep.mubr.bf16.mxu0 %v3692
    %3988 = vmatmul.mubr.bf16.gmra.mxu0 %v3691
    %v3989 = vpop.f32.mrf.mxu0
    %v3990 = vadd.f32 0.0, %v3989
    %v3991 = vpop.f32.mrf.mxu0
    %v3992 = vpop.f32.mrf.mxu0
    %v3993 = vadd.f32 0.0, %v3992
    %v3994 = vpop.f32.mrf.mxu0
    %3995 = vmatprep.mubr.bf16.mxu0 %v3696
    %3996 = vmatmul.mubr.bf16.gmra.mxu0 %v3695
    %v3997 = vpop.f32.mrf.mxu0
    %v3998 = vadd.f32 0.0, %v3997
    %v3999 = vpop.f32.mrf.mxu0
    %v4000 = vpop.f32.mrf.mxu0
    %v4001 = vadd.f32 0.0, %v4000
    %v4002 = vpop.f32.mrf.mxu0
    %4003 = vdwg.mxu0
    %4004 = vmatprep.subr.bf16.mxu0 0
    %4005 = vmatpush1.bf16.msra.mxu0 %v3914
    %4006 = vmatprep.subr.bf16.mxu0 0
    %4007 = vmatpush1.bf16.msra.mxu0 %v3913
    %4008 = vmatprep.subr.bf16.mxu0 0
    %4009 = vmatpush1.bf16.msra.mxu0 %v3912
    %4010 = vmatprep.subr.bf16.mxu0 0
    %4011 = vmatpush1.bf16.msra.mxu0 %v3911
    %4012 = vmatprep.subr.bf16.mxu0 0
    %4013 = vmatpush1.bf16.msra.mxu0 %v3910
    %4014 = vmatprep.subr.bf16.mxu0 0
    %4015 = vmatpush1.bf16.msra.mxu0 %v3909
    %4016 = vmatprep.subr.bf16.mxu0 0
    %4017 = vmatpush1.bf16.msra.mxu0 %v3908
    %4018 = vmatprep.subr.bf16.mxu0 0
    %4019 = vmatpush1.bf16.msra.mxu0 %v3907
    %4020 = vmatprep.subr.bf16.mxu0 0
    %4021 = vmatpush2.bf16.msra.mxu0 %v3922
    %4022 = vmatprep.subr.bf16.mxu0 0
    %4023 = vmatpush2.bf16.msra.mxu0 %v3921
    %4024 = vmatprep.subr.bf16.mxu0 0
    %4025 = vmatpush2.bf16.msra.mxu0 %v3920
    %4026 = vmatprep.subr.bf16.mxu0 0
    %4027 = vmatpush2.bf16.msra.mxu0 %v3919
    %4028 = vmatprep.subr.bf16.mxu0 0
    %4029 = vmatpush2.bf16.msra.mxu0 %v3918
    %4030 = vmatprep.subr.bf16.mxu0 0
    %4031 = vmatpush2.bf16.msra.mxu0 %v3917
    %4032 = vmatprep.subr.bf16.mxu0 0
    %4033 = vmatpush2.bf16.msra.mxu0 %v3916
    %4034 = vmatprep.subr.bf16.mxu0 0
    %4035 = vmatpush2.bf16.msra.mxu0 %v3915
    %4036 = vmatprep.mubr.bf16.mxu0 %v3694
    %4037 = vmatmul.mubr.bf16.gmra.mxu0 %v3693
    %v4038 = vpop.f32.mrf.mxu0
    %v4039 = vadd.f32 %v3990, %v4038
    %v4040 = vpop.f32.mrf.mxu0
    %v4041 = vpop.f32.mrf.mxu0
    %v4042 = vadd.f32 %v3993, %v4041
    %v4043 = vpop.f32.mrf.mxu0
    %4044 = vmatprep.mubr.bf16.mxu0 %v3698
    %4045 = vmatmul.mubr.bf16.gmra.mxu0 %v3697
    %v4046 = vpop.f32.mrf.mxu0
    %v4047 = vadd.f32 %v3998, %v4046
    %v4048 = vpop.f32.mrf.mxu0
    %v4049 = vpop.f32.mrf.mxu0
    %v4050 = vadd.f32 %v4001, %v4049
    %v4051 = vpop.f32.mrf.mxu0
    %4052 = vdwg.mxu0
    %v4053 = vadd.f32 %v3492, %v4039
    %v4054 = vadd.f32 %v3492, %v4042
    %v4055 = vadd.f32 %v3492, %v4047
    %v4056 = vadd.f32 %v3492, %v4050
    %s4057 = scalar_lea.vmem %s11, 16
    %v4058 = vld [vmem:[%s4057] sm:$0xff]
    %v4059 = vld [vmem:[%s4057 + $0x8] sm:$0xff]
    %v4060 = vld [vmem:[%s4057 + $0x40] sm:$0xff]
    %v4061 = vld [vmem:[%s4057 + $0x48] sm:$0xff]
    %v4062 = vld [vmem:[%s4057 + $0x80] sm:$0xff]
    %v4063 = vld [vmem:[%s4057 + $0x88] sm:$0xff]
    %v4064 = vld [vmem:[%s4057 + $0xc0] sm:$0xff]
    %v4065 = vld [vmem:[%s4057 + $0xc8] sm:$0xff]
    %s4066 = scalar_lea.vmem %s12, 4
    %v4067 = vld [vmem:[%s4066] sm:$0xf]
    %v4069 = vlaneseq
    %v4070 = vshrl.u32 %v4069, 7
    %v4071 = vsub.s32 0, %v4070
    %v4072 = vrot.slane %v4067, %v4071
    %v4073 = vlaneseq
    %v4074 = vshrl.u32 %v4073, 7
    %v4075 = vsub.s32 1, %v4074
    %v4076 = vrot.slane %v4067, %v4075
    %v4077 = vlaneseq
    %v4078 = vshrl.u32 %v4077, 7
    %v4079 = vsub.s32 2, %v4078
    %v4080 = vrot.slane %v4067, %v4079
    %v4081 = vlaneseq
    %v4082 = vshrl.u32 %v4081, 7
    %v4083 = vsub.s32 3, %v4082
    %v4084 = vrot.slane %v4067, %v4083
    %v4097 = vunpack.c.l.b16 %v4058
    %v4098 = vunpack.c.h.b16 %v4058
    %v4099 = vunpack.c.l.b16 %v4059
    %v4100 = vunpack.c.h.b16 %v4059
    %v4101 = vunpack.c.l.b16 %v4060
    %v4102 = vunpack.c.h.b16 %v4060
    %v4103 = vunpack.c.l.b16 %v4061
    %v4104 = vunpack.c.h.b16 %v4061
    %v4105 = vunpack.c.l.b16 %v4062
    %v4106 = vunpack.c.h.b16 %v4062
    %v4107 = vunpack.c.l.b16 %v4063
    %v4108 = vunpack.c.h.b16 %v4063
    %v4109 = vunpack.c.l.b16 %v4064
    %v4110 = vunpack.c.h.b16 %v4064
    %v4111 = vunpack.c.l.b16 %v4065
    %v4112 = vunpack.c.h.b16 %v4065
    %v4113 = vpack.c.b16 %v4101, %v4097
    %v4114 = vpack.c.b16 %v4102, %v4098
    %v4115 = vpack.c.b16 %v4103, %v4099
    %v4116 = vpack.c.b16 %v4104, %v4100
    %v4117 = vpack.c.b16 %v4109, %v4105
    %v4118 = vpack.c.b16 %v4110, %v4106
    %v4119 = vpack.c.b16 %v4111, %v4107
    %v4120 = vpack.c.b16 %v4112, %v4108
    %4129 = vmatprep.subr.bf16.mxu0 0
    %4130 = vmatpush1.bf16.msra.mxu0 0
    %4131 = vmatprep.subr.bf16.mxu0 0
    %4132 = vmatpush1.bf16.msra.mxu0 0
    %4133 = vmatprep.subr.bf16.mxu0 0
    %4134 = vmatpush1.bf16.msra.mxu0 0
    %4135 = vmatprep.subr.bf16.mxu0 0
    %4136 = vmatpush1.bf16.msra.mxu0 0
    %4137 = vmatprep.subr.bf16.mxu0 0
    %4138 = vmatpush1.bf16.msra.mxu0 0
    %4139 = vmatprep.subr.bf16.mxu0 0
    %4140 = vmatpush1.bf16.msra.mxu0 0
    %4141 = vmatprep.subr.bf16.mxu0 %v4118
    %4142 = vmatpush1.bf16.msra.mxu0 %v4117
    %4143 = vmatprep.subr.bf16.mxu0 %v4114
    %4144 = vmatpush1.bf16.msra.mxu0 %v4113
    %4145 = vmatprep.subr.bf16.mxu0 0
    %4146 = vmatpush2.bf16.msra.mxu0 0
    %4147 = vmatprep.subr.bf16.mxu0 0
    %4148 = vmatpush2.bf16.msra.mxu0 0
    %4149 = vmatprep.subr.bf16.mxu0 0
    %4150 = vmatpush2.bf16.msra.mxu0 0
    %4151 = vmatprep.subr.bf16.mxu0 0
    %4152 = vmatpush2.bf16.msra.mxu0 0
    %4153 = vmatprep.subr.bf16.mxu0 0
    %4154 = vmatpush2.bf16.msra.mxu0 0
    %4155 = vmatprep.subr.bf16.mxu0 0
    %4156 = vmatpush2.bf16.msra.mxu0 0
    %4157 = vmatprep.subr.bf16.mxu0 0
    %4158 = vmatpush2.bf16.msra.mxu0 0
    %4159 = vmatprep.subr.bf16.mxu0 0
    %4160 = vmatpush2.bf16.msra.mxu0 0
    %4161 = vmatprep.mubr.bf16.mxu0 0
    %4162 = vmatmul.mubr.bf16.gmra.mxu0 %v3564
    %v4163 = vpop.f32.mrf.mxu0
    %v4164 = vadd.f32 %v4072, %v4163
    %v4165 = vpop.f32.mrf.mxu0
    %v4166 = vadd.f32 %v4076, %v4165
    %v4167 = vpop.f32.mrf.mxu0
    %v4168 = vadd.f32 %v4072, %v4167
    %v4169 = vpop.f32.mrf.mxu0
    %v4170 = vadd.f32 %v4076, %v4169
    %4171 = vmatprep.mubr.bf16.mxu0 0
    %4172 = vmatmul.mubr.bf16.gmra.mxu0 %v3567
    %v4173 = vpop.f32.mrf.mxu0
    %v4174 = vadd.f32 %v4072, %v4173
    %v4175 = vpop.f32.mrf.mxu0
    %v4176 = vadd.f32 %v4076, %v4175
    %v4177 = vpop.f32.mrf.mxu0
    %v4178 = vadd.f32 %v4072, %v4177
    %v4179 = vpop.f32.mrf.mxu0
    %v4180 = vadd.f32 %v4076, %v4179
    %4181 = vdwg.mxu0
    %4182 = vmatprep.subr.bf16.mxu0 0
    %4183 = vmatpush1.bf16.msra.mxu0 0
    %4184 = vmatprep.subr.bf16.mxu0 0
    %4185 = vmatpush1.bf16.msra.mxu0 0
    %4186 = vmatprep.subr.bf16.mxu0 0
    %4187 = vmatpush1.bf16.msra.mxu0 0
    %4188 = vmatprep.subr.bf16.mxu0 0
    %4189 = vmatpush1.bf16.msra.mxu0 0
    %4190 = vmatprep.subr.bf16.mxu0 0
    %4191 = vmatpush1.bf16.msra.mxu0 0
    %4192 = vmatprep.subr.bf16.mxu0 0
    %4193 = vmatpush1.bf16.msra.mxu0 0
    %4194 = vmatprep.subr.bf16.mxu0 %v4120
    %4195 = vmatpush1.bf16.msra.mxu0 %v4119
    %4196 = vmatprep.subr.bf16.mxu0 %v4116
    %4197 = vmatpush1.bf16.msra.mxu0 %v4115
    %4198 = vmatprep.subr.bf16.mxu0 0
    %4199 = vmatpush2.bf16.msra.mxu0 0
    %4200 = vmatprep.subr.bf16.mxu0 0
    %4201 = vmatpush2.bf16.msra.mxu0 0
    %4202 = vmatprep.subr.bf16.mxu0 0
    %4203 = vmatpush2.bf16.msra.mxu0 0
    %4204 = vmatprep.subr.bf16.mxu0 0
    %4205 = vmatpush2.bf16.msra.mxu0 0
    %4206 = vmatprep.subr.bf16.mxu0 0
    %4207 = vmatpush2.bf16.msra.mxu0 0
    %4208 = vmatprep.subr.bf16.mxu0 0
    %4209 = vmatpush2.bf16.msra.mxu0 0
    %4210 = vmatprep.subr.bf16.mxu0 0
    %4211 = vmatpush2.bf16.msra.mxu0 0
    %4212 = vmatprep.subr.bf16.mxu0 0
    %4213 = vmatpush2.bf16.msra.mxu0 0
    %4214 = vmatprep.mubr.bf16.mxu0 0
    %4215 = vmatmul.mubr.bf16.gmra.mxu0 %v3564
    %v4216 = vpop.f32.mrf.mxu0
    %v4217 = vadd.f32 %v4080, %v4216
    %v4218 = vpop.f32.mrf.mxu0
    %v4219 = vadd.f32 %v4084, %v4218
    %v4220 = vpop.f32.mrf.mxu0
    %v4221 = vadd.f32 %v4080, %v4220
    %v4222 = vpop.f32.mrf.mxu0
    %v4223 = vadd.f32 %v4084, %v4222
    %4224 = vmatprep.mubr.bf16.mxu0 0
    %4225 = vmatmul.mubr.bf16.gmra.mxu0 %v3567
    %v4226 = vpop.f32.mrf.mxu0
    %v4227 = vadd.f32 %v4080, %v4226
    %v4228 = vpop.f32.mrf.mxu0
    %v4229 = vadd.f32 %v4084, %v4228
    %v4230 = vpop.f32.mrf.mxu0
    %v4231 = vadd.f32 %v4080, %v4230
    %v4232 = vpop.f32.mrf.mxu0
    %v4233 = vadd.f32 %v4084, %v4232
    %4234 = vdwg.mxu0
    %v4235 = vmax.f32 %v4164, 0.0
    %v4236 = vmax.f32 %v4166, 0.0
    %v4237 = vmax.f32 %v4217, 0.0
    %v4238 = vmax.f32 %v4219, 0.0
    %v4239 = vmax.f32 %v4168, 0.0
    %v4240 = vmax.f32 %v4170, 0.0
    %v4241 = vmax.f32 %v4221, 0.0
    %v4242 = vmax.f32 %v4223, 0.0
    %v4243 = vmax.f32 %v4174, 0.0
    %v4244 = vmax.f32 %v4176, 0.0
    %v4245 = vmax.f32 %v4227, 0.0
    %v4246 = vmax.f32 %v4229, 0.0
    %v4247 = vmax.f32 %v4178, 0.0
    %v4248 = vmax.f32 %v4180, 0.0
    %v4249 = vmax.f32 %v4231, 0.0
    %v4250 = vmax.f32 %v4233, 0.0
    %v4251 = vpack.c.bf16 %v4239, %v4235
    %v4252 = vpack.c.bf16 %v4240, %v4236
    %v4253 = vpack.c.bf16 %v4241, %v4237
    %v4254 = vpack.c.bf16 %v4242, %v4238
    %v4255 = vpack.c.bf16 %v4247, %v4243
    %v4256 = vpack.c.bf16 %v4248, %v4244
    %v4257 = vpack.c.bf16 %v4249, %v4245
    %v4258 = vpack.c.bf16 %v4250, %v4246
    %s4259 = scalar_lea.vmem %s13, 256
    %v4260 = vld [vmem:[%s4259] sm:$0xf]
    %v4261 = vld [vmem:[%s4259 + $0x4] sm:$0xf]
    %v4262 = vld [vmem:[%s4259 + $0x8] sm:$0xf]
    %v4263 = vld [vmem:[%s4259 + $0xc] sm:$0xf]
    %v4264 = vld [vmem:[%s4259 + $0x10] sm:$0xf]
    %v4265 = vld [vmem:[%s4259 + $0x14] sm:$0xf]
    %v4266 = vld [vmem:[%s4259 + $0x18] sm:$0xf]
    %v4267 = vld [vmem:[%s4259 + $0x1c] sm:$0xf]
    %v4268 = vld [vmem:[%s4259 + $0x20] sm:$0xf]
    %v4269 = vld [vmem:[%s4259 + $0x24] sm:$0xf]
    %v4270 = vld [vmem:[%s4259 + $0x28] sm:$0xf]
    %v4271 = vld [vmem:[%s4259 + $0x2c] sm:$0xf]
    %v4272 = vld [vmem:[%s4259 + $0x30] sm:$0xf]
    %v4273 = vld [vmem:[%s4259 + $0x34] sm:$0xf]
    %v4274 = vld [vmem:[%s4259 + $0x38] sm:$0xf]
    %v4275 = vld [vmem:[%s4259 + $0x3c] sm:$0xf]
    %v4276 = vld [vmem:[%s4259 + $0x40] sm:$0xf]
    %v4277 = vld [vmem:[%s4259 + $0x44] sm:$0xf]
    %v4278 = vld [vmem:[%s4259 + $0x48] sm:$0xf]
    %v4279 = vld [vmem:[%s4259 + $0x4c] sm:$0xf]
    %v4280 = vld [vmem:[%s4259 + $0x50] sm:$0xf]
    %v4281 = vld [vmem:[%s4259 + $0x54] sm:$0xf]
    %v4282 = vld [vmem:[%s4259 + $0x58] sm:$0xf]
    %v4283 = vld [vmem:[%s4259 + $0x5c] sm:$0xf]
    %v4284 = vld [vmem:[%s4259 + $0x60] sm:$0xf]
    %v4285 = vld [vmem:[%s4259 + $0x64] sm:$0xf]
    %v4286 = vld [vmem:[%s4259 + $0x68] sm:$0xf]
    %v4287 = vld [vmem:[%s4259 + $0x6c] sm:$0xf]
    %v4288 = vld [vmem:[%s4259 + $0x70] sm:$0xf]
    %v4289 = vld [vmem:[%s4259 + $0x74] sm:$0xf]
    %v4290 = vld [vmem:[%s4259 + $0x78] sm:$0xf]
    %v4291 = vld [vmem:[%s4259 + $0x7c] sm:$0xf]
    %v4292 = vld [vmem:[%s4259 + $0x80] sm:$0xf]
    %v4293 = vld [vmem:[%s4259 + $0x84] sm:$0xf]
    %v4294 = vld [vmem:[%s4259 + $0x88] sm:$0xf]
    %v4295 = vld [vmem:[%s4259 + $0x8c] sm:$0xf]
    %v4296 = vld [vmem:[%s4259 + $0x90] sm:$0xf]
    %v4297 = vld [vmem:[%s4259 + $0x94] sm:$0xf]
    %v4298 = vld [vmem:[%s4259 + $0x98] sm:$0xf]
    %v4299 = vld [vmem:[%s4259 + $0x9c] sm:$0xf]
    %v4300 = vld [vmem:[%s4259 + $0xa0] sm:$0xf]
    %v4301 = vld [vmem:[%s4259 + $0xa4] sm:$0xf]
    %v4302 = vld [vmem:[%s4259 + $0xa8] sm:$0xf]
    %v4303 = vld [vmem:[%s4259 + $0xac] sm:$0xf]
    %v4304 = vld [vmem:[%s4259 + $0xb0] sm:$0xf]
    %v4305 = vld [vmem:[%s4259 + $0xb4] sm:$0xf]
    %v4306 = vld [vmem:[%s4259 + $0xb8] sm:$0xf]
    %v4307 = vld [vmem:[%s4259 + $0xbc] sm:$0xf]
    %v4308 = vld [vmem:[%s4259 + $0xc0] sm:$0xf]
    %v4309 = vld [vmem:[%s4259 + $0xc4] sm:$0xf]
    %v4310 = vld [vmem:[%s4259 + $0xc8] sm:$0xf]
    %v4311 = vld [vmem:[%s4259 + $0xcc] sm:$0xf]
    %v4312 = vld [vmem:[%s4259 + $0xd0] sm:$0xf]
    %v4313 = vld [vmem:[%s4259 + $0xd4] sm:$0xf]
    %v4314 = vld [vmem:[%s4259 + $0xd8] sm:$0xf]
    %v4315 = vld [vmem:[%s4259 + $0xdc] sm:$0xf]
    %v4316 = vld [vmem:[%s4259 + $0xe0] sm:$0xf]
    %v4317 = vld [vmem:[%s4259 + $0xe4] sm:$0xf]
    %v4318 = vld [vmem:[%s4259 + $0xe8] sm:$0xf]
    %v4319 = vld [vmem:[%s4259 + $0xec] sm:$0xf]
    %v4320 = vld [vmem:[%s4259 + $0xf0] sm:$0xf]
    %v4321 = vld [vmem:[%s4259 + $0xf4] sm:$0xf]
    %v4322 = vld [vmem:[%s4259 + $0xf8] sm:$0xf]
    %v4323 = vld [vmem:[%s4259 + $0xfc] sm:$0xf]
    %v4388 = vunpack.c.l.b16 %v4260
    %v4389 = vunpack.c.l.b16 %v4261
    %v4390 = vunpack.c.l.b16 %v4262
    %v4391 = vunpack.c.l.b16 %v4263
    %v4392 = vunpack.c.l.b16 %v4264
    %v4393 = vunpack.c.l.b16 %v4265
    %v4394 = vunpack.c.l.b16 %v4266
    %v4395 = vunpack.c.l.b16 %v4267
    %v4396 = vunpack.c.l.b16 %v4268
    %v4397 = vunpack.c.l.b16 %v4269
    %v4398 = vunpack.c.l.b16 %v4270
    %v4399 = vunpack.c.l.b16 %v4271
    %v4400 = vunpack.c.l.b16 %v4272
    %v4401 = vunpack.c.l.b16 %v4273
    %v4402 = vunpack.c.l.b16 %v4274
    %v4403 = vunpack.c.l.b16 %v4275
    %v4404 = vunpack.c.l.b16 %v4276
    %v4405 = vunpack.c.l.b16 %v4277
    %v4406 = vunpack.c.l.b16 %v4278
    %v4407 = vunpack.c.l.b16 %v4279
    %v4408 = vunpack.c.l.b16 %v4280
    %v4409 = vunpack.c.l.b16 %v4281
    %v4410 = vunpack.c.l.b16 %v4282
    %v4411 = vunpack.c.l.b16 %v4283
    %v4412 = vunpack.c.l.b16 %v4284
    %v4413 = vunpack.c.l.b16 %v4285
    %v4414 = vunpack.c.l.b16 %v4286
    %v4415 = vunpack.c.l.b16 %v4287
    %v4416 = vunpack.c.l.b16 %v4288
    %v4417 = vunpack.c.l.b16 %v4289
    %v4418 = vunpack.c.l.b16 %v4290
    %v4419 = vunpack.c.l.b16 %v4291
    %v4420 = vunpack.c.l.b16 %v4292
    %v4421 = vunpack.c.l.b16 %v4293
    %v4422 = vunpack.c.l.b16 %v4294
    %v4423 = vunpack.c.l.b16 %v4295
    %v4424 = vunpack.c.l.b16 %v4296
    %v4425 = vunpack.c.l.b16 %v4297
    %v4426 = vunpack.c.l.b16 %v4298
    %v4427 = vunpack.c.l.b16 %v4299
    %v4428 = vunpack.c.l.b16 %v4300
    %v4429 = vunpack.c.l.b16 %v4301
    %v4430 = vunpack.c.l.b16 %v4302
    %v4431 = vunpack.c.l.b16 %v4303
    %v4432 = vunpack.c.l.b16 %v4304
    %v4433 = vunpack.c.l.b16 %v4305
    %v4434 = vunpack.c.l.b16 %v4306
    %v4435 = vunpack.c.l.b16 %v4307
    %v4436 = vunpack.c.l.b16 %v4308
    %v4437 = vunpack.c.l.b16 %v4309
    %v4438 = vunpack.c.l.b16 %v4310
    %v4439 = vunpack.c.l.b16 %v4311
    %v4440 = vunpack.c.l.b16 %v4312
    %v4441 = vunpack.c.l.b16 %v4313
    %v4442 = vunpack.c.l.b16 %v4314
    %v4443 = vunpack.c.l.b16 %v4315
    %v4444 = vunpack.c.l.b16 %v4316
    %v4445 = vunpack.c.l.b16 %v4317
    %v4446 = vunpack.c.l.b16 %v4318
    %v4447 = vunpack.c.l.b16 %v4319
    %v4448 = vunpack.c.l.b16 %v4320
    %v4449 = vunpack.c.l.b16 %v4321
    %v4450 = vunpack.c.l.b16 %v4322
    %v4451 = vunpack.c.l.b16 %v4323
    %v4452 = vpack.c.b16 %v4389, %v4388
    %v4453 = vpack.c.b16 %v4391, %v4390
    %v4454 = vpack.c.b16 %v4393, %v4392
    %v4455 = vpack.c.b16 %v4395, %v4394
    %v4456 = vpack.c.b16 %v4397, %v4396
    %v4457 = vpack.c.b16 %v4399, %v4398
    %v4458 = vpack.c.b16 %v4401, %v4400
    %v4459 = vpack.c.b16 %v4403, %v4402
    %v4460 = vpack.c.b16 %v4405, %v4404
    %v4461 = vpack.c.b16 %v4407, %v4406
    %v4462 = vpack.c.b16 %v4409, %v4408
    %v4463 = vpack.c.b16 %v4411, %v4410
    %v4464 = vpack.c.b16 %v4413, %v4412
    %v4465 = vpack.c.b16 %v4415, %v4414
    %v4466 = vpack.c.b16 %v4417, %v4416
    %v4467 = vpack.c.b16 %v4419, %v4418
    %v4468 = vpack.c.b16 %v4421, %v4420
    %v4469 = vpack.c.b16 %v4423, %v4422
    %v4470 = vpack.c.b16 %v4425, %v4424
    %v4471 = vpack.c.b16 %v4427, %v4426
    %v4472 = vpack.c.b16 %v4429, %v4428
    %v4473 = vpack.c.b16 %v4431, %v4430
    %v4474 = vpack.c.b16 %v4433, %v4432
    %v4475 = vpack.c.b16 %v4435, %v4434
    %v4476 = vpack.c.b16 %v4437, %v4436
    %v4477 = vpack.c.b16 %v4439, %v4438
    %v4478 = vpack.c.b16 %v4441, %v4440
    %v4479 = vpack.c.b16 %v4443, %v4442
    %v4480 = vpack.c.b16 %v4445, %v4444
    %v4481 = vpack.c.b16 %v4447, %v4446
    %v4482 = vpack.c.b16 %v4449, %v4448
    %v4483 = vpack.c.b16 %v4451, %v4450
    %4516 = vmatprep.subr.bf16.mxu0 0
    %4517 = vmatpush1.bf16.msra.mxu0 %v4459
    %4518 = vmatprep.subr.bf16.mxu0 0
    %4519 = vmatpush1.bf16.msra.mxu0 %v4458
    %4520 = vmatprep.subr.bf16.mxu0 0
    %4521 = vmatpush1.bf16.msra.mxu0 %v4457
    %4522 = vmatprep.subr.bf16.mxu0 0
    %4523 = vmatpush1.bf16.msra.mxu0 %v4456
    %4524 = vmatprep.subr.bf16.mxu0 0
    %4525 = vmatpush1.bf16.msra.mxu0 %v4455
    %4526 = vmatprep.subr.bf16.mxu0 0
    %4527 = vmatpush1.bf16.msra.mxu0 %v4454
    %4528 = vmatprep.subr.bf16.mxu0 0
    %4529 = vmatpush1.bf16.msra.mxu0 %v4453
    %4530 = vmatprep.subr.bf16.mxu0 0
    %4531 = vmatpush1.bf16.msra.mxu0 %v4452
    %4532 = vmatprep.subr.bf16.mxu0 0
    %4533 = vmatpush2.bf16.msra.mxu0 %v4467
    %4534 = vmatprep.subr.bf16.mxu0 0
    %4535 = vmatpush2.bf16.msra.mxu0 %v4466
    %4536 = vmatprep.subr.bf16.mxu0 0
    %4537 = vmatpush2.bf16.msra.mxu0 %v4465
    %4538 = vmatprep.subr.bf16.mxu0 0
    %4539 = vmatpush2.bf16.msra.mxu0 %v4464
    %4540 = vmatprep.subr.bf16.mxu0 0
    %4541 = vmatpush2.bf16.msra.mxu0 %v4463
    %4542 = vmatprep.subr.bf16.mxu0 0
    %4543 = vmatpush2.bf16.msra.mxu0 %v4462
    %4544 = vmatprep.subr.bf16.mxu0 0
    %4545 = vmatpush2.bf16.msra.mxu0 %v4461
    %4546 = vmatprep.subr.bf16.mxu0 0
    %4547 = vmatpush2.bf16.msra.mxu0 %v4460
    %4548 = vmatprep.mubr.bf16.mxu0 %v4252
    %4549 = vmatmul.mubr.bf16.gmra.mxu0 %v4251
    %v4550 = vpop.f32.mrf.mxu0
    %v4551 = vadd.f32 0.0, %v4550
    %v4552 = vpop.f32.mrf.mxu0
    %v4553 = vpop.f32.mrf.mxu0
    %v4554 = vadd.f32 0.0, %v4553
    %v4555 = vpop.f32.mrf.mxu0
    %4556 = vmatprep.mubr.bf16.mxu0 %v4256
    %4557 = vmatmul.mubr.bf16.gmra.mxu0 %v4255
    %v4558 = vpop.f32.mrf.mxu0
    %v4559 = vadd.f32 0.0, %v4558
    %v4560 = vpop.f32.mrf.mxu0
    %v4561 = vpop.f32.mrf.mxu0
    %v4562 = vadd.f32 0.0, %v4561
    %v4563 = vpop.f32.mrf.mxu0
    %4564 = vdwg.mxu0
    %4565 = vmatprep.subr.bf16.mxu0 0
    %4566 = vmatpush1.bf16.msra.mxu0 %v4475
    %4567 = vmatprep.subr.bf16.mxu0 0
    %4568 = vmatpush1.bf16.msra.mxu0 %v4474
    %4569 = vmatprep.subr.bf16.mxu0 0
    %4570 = vmatpush1.bf16.msra.mxu0 %v4473
    %4571 = vmatprep.subr.bf16.mxu0 0
    %4572 = vmatpush1.bf16.msra.mxu0 %v4472
    %4573 = vmatprep.subr.bf16.mxu0 0
    %4574 = vmatpush1.bf16.msra.mxu0 %v4471
    %4575 = vmatprep.subr.bf16.mxu0 0
    %4576 = vmatpush1.bf16.msra.mxu0 %v4470
    %4577 = vmatprep.subr.bf16.mxu0 0
    %4578 = vmatpush1.bf16.msra.mxu0 %v4469
    %4579 = vmatprep.subr.bf16.mxu0 0
    %4580 = vmatpush1.bf16.msra.mxu0 %v4468
    %4581 = vmatprep.subr.bf16.mxu0 0
    %4582 = vmatpush2.bf16.msra.mxu0 %v4483
    %4583 = vmatprep.subr.bf16.mxu0 0
    %4584 = vmatpush2.bf16.msra.mxu0 %v4482
    %4585 = vmatprep.subr.bf16.mxu0 0
    %4586 = vmatpush2.bf16.msra.mxu0 %v4481
    %4587 = vmatprep.subr.bf16.mxu0 0
    %4588 = vmatpush2.bf16.msra.mxu0 %v4480
    %4589 = vmatprep.subr.bf16.mxu0 0
    %4590 = vmatpush2.bf16.msra.mxu0 %v4479
    %4591 = vmatprep.subr.bf16.mxu0 0
    %4592 = vmatpush2.bf16.msra.mxu0 %v4478
    %4593 = vmatprep.subr.bf16.mxu0 0
    %4594 = vmatpush2.bf16.msra.mxu0 %v4477
    %4595 = vmatprep.subr.bf16.mxu0 0
    %4596 = vmatpush2.bf16.msra.mxu0 %v4476
    %4597 = vmatprep.mubr.bf16.mxu0 %v4254
    %4598 = vmatmul.mubr.bf16.gmra.mxu0 %v4253
    %v4599 = vpop.f32.mrf.mxu0
    %v4600 = vadd.f32 %v4551, %v4599
    %v4601 = vpop.f32.mrf.mxu0
    %v4602 = vpop.f32.mrf.mxu0
    %v4603 = vadd.f32 %v4554, %v4602
    %v4604 = vpop.f32.mrf.mxu0
    %4605 = vmatprep.mubr.bf16.mxu0 %v4258
    %4606 = vmatmul.mubr.bf16.gmra.mxu0 %v4257
    %v4607 = vpop.f32.mrf.mxu0
    %v4608 = vadd.f32 %v4559, %v4607
    %v4609 = vpop.f32.mrf.mxu0
    %v4610 = vpop.f32.mrf.mxu0
    %v4611 = vadd.f32 %v4562, %v4610
    %v4612 = vpop.f32.mrf.mxu0
    %4613 = vdwg.mxu0
    %v4614 = vadd.f32 %v4053, %v4600
    %v4615 = vadd.f32 %v4054, %v4603
    %v4616 = vadd.f32 %v4055, %v4608
    %v4617 = vadd.f32 %v4056, %v4611
    %s4618 = scalar_lea.vmem %s11, 32
    %v4619 = vld [vmem:[%s4618] sm:$0xff]
    %v4620 = vld [vmem:[%s4618 + $0x8] sm:$0xff]
    %v4621 = vld [vmem:[%s4618 + $0x40] sm:$0xff]
    %v4622 = vld [vmem:[%s4618 + $0x48] sm:$0xff]
    %v4623 = vld [vmem:[%s4618 + $0x80] sm:$0xff]
    %v4624 = vld [vmem:[%s4618 + $0x88] sm:$0xff]
    %v4625 = vld [vmem:[%s4618 + $0xc0] sm:$0xff]
    %v4626 = vld [vmem:[%s4618 + $0xc8] sm:$0xff]
    %s4627 = scalar_lea.vmem %s12, 8
    %v4628 = vld [vmem:[%s4627] sm:$0xf]
    %v4630 = vlaneseq
    %v4631 = vshrl.u32 %v4630, 7
    %v4632 = vsub.s32 0, %v4631
    %v4633 = vrot.slane %v4628, %v4632
    %v4634 = vlaneseq
    %v4635 = vshrl.u32 %v4634, 7
    %v4636 = vsub.s32 1, %v4635
    %v4637 = vrot.slane %v4628, %v4636
    %v4638 = vlaneseq
    %v4639 = vshrl.u32 %v4638, 7
    %v4640 = vsub.s32 2, %v4639
    %v4641 = vrot.slane %v4628, %v4640
    %v4642 = vlaneseq
    %v4643 = vshrl.u32 %v4642, 7
    %v4644 = vsub.s32 3, %v4643
    %v4645 = vrot.slane %v4628, %v4644
    %v4658 = vunpack.c.l.b16 %v4619
    %v4659 = vunpack.c.h.b16 %v4619
    %v4660 = vunpack.c.l.b16 %v4620
    %v4661 = vunpack.c.h.b16 %v4620
    %v4662 = vunpack.c.l.b16 %v4621
    %v4663 = vunpack.c.h.b16 %v4621
    %v4664 = vunpack.c.l.b16 %v4622
    %v4665 = vunpack.c.h.b16 %v4622
    %v4666 = vunpack.c.l.b16 %v4623
    %v4667 = vunpack.c.h.b16 %v4623
    %v4668 = vunpack.c.l.b16 %v4624
    %v4669 = vunpack.c.h.b16 %v4624
    %v4670 = vunpack.c.l.b16 %v4625
    %v4671 = vunpack.c.h.b16 %v4625
    %v4672 = vunpack.c.l.b16 %v4626
    %v4673 = vunpack.c.h.b16 %v4626
    %v4674 = vpack.c.b16 %v4662, %v4658
    %v4675 = vpack.c.b16 %v4663, %v4659
    %v4676 = vpack.c.b16 %v4664, %v4660
    %v4677 = vpack.c.b16 %v4665, %v4661
    %v4678 = vpack.c.b16 %v4670, %v4666
    %v4679 = vpack.c.b16 %v4671, %v4667
    %v4680 = vpack.c.b16 %v4672, %v4668
    %v4681 = vpack.c.b16 %v4673, %v4669
    %4690 = vmatprep.subr.bf16.mxu0 0
    %4691 = vmatpush1.bf16.msra.mxu0 0
    %4692 = vmatprep.subr.bf16.mxu0 0
    %4693 = vmatpush1.bf16.msra.mxu0 0
    %4694 = vmatprep.subr.bf16.mxu0 0
    %4695 = vmatpush1.bf16.msra.mxu0 0
    %4696 = vmatprep.subr.bf16.mxu0 0
    %4697 = vmatpush1.bf16.msra.mxu0 0
    %4698 = vmatprep.subr.bf16.mxu0 0
    %4699 = vmatpush1.bf16.msra.mxu0 0
    %4700 = vmatprep.subr.bf16.mxu0 0
    %4701 = vmatpush1.bf16.msra.mxu0 0
    %4702 = vmatprep.subr.bf16.mxu0 %v4679
    %4703 = vmatpush1.bf16.msra.mxu0 %v4678
    %4704 = vmatprep.subr.bf16.mxu0 %v4675
    %4705 = vmatpush1.bf16.msra.mxu0 %v4674
    %4706 = vmatprep.subr.bf16.mxu0 0
    %4707 = vmatpush2.bf16.msra.mxu0 0
    %4708 = vmatprep.subr.bf16.mxu0 0
    %4709 = vmatpush2.bf16.msra.mxu0 0
    %4710 = vmatprep.subr.bf16.mxu0 0
    %4711 = vmatpush2.bf16.msra.mxu0 0
    %4712 = vmatprep.subr.bf16.mxu0 0
    %4713 = vmatpush2.bf16.msra.mxu0 0
    %4714 = vmatprep.subr.bf16.mxu0 0
    %4715 = vmatpush2.bf16.msra.mxu0 0
    %4716 = vmatprep.subr.bf16.mxu0 0
    %4717 = vmatpush2.bf16.msra.mxu0 0
    %4718 = vmatprep.subr.bf16.mxu0 0
    %4719 = vmatpush2.bf16.msra.mxu0 0
    %4720 = vmatprep.subr.bf16.mxu0 0
    %4721 = vmatpush2.bf16.msra.mxu0 0
    %4722 = vmatprep.mubr.bf16.mxu0 0
    %4723 = vmatmul.mubr.bf16.gmra.mxu0 %v3564
    %v4724 = vpop.f32.mrf.mxu0
    %v4725 = vadd.f32 %v4633, %v4724
    %v4726 = vpop.f32.mrf.mxu0
    %v4727 = vadd.f32 %v4637, %v4726
    %v4728 = vpop.f32.mrf.mxu0
    %v4729 = vadd.f32 %v4633, %v4728
    %v4730 = vpop.f32.mrf.mxu0
    %v4731 = vadd.f32 %v4637, %v4730
    %4732 = vmatprep.mubr.bf16.mxu0 0
    %4733 = vmatmul.mubr.bf16.gmra.mxu0 %v3567
    %v4734 = vpop.f32.mrf.mxu0
    %v4735 = vadd.f32 %v4633, %v4734
    %v4736 = vpop.f32.mrf.mxu0
    %v4737 = vadd.f32 %v4637, %v4736
    %v4738 = vpop.f32.mrf.mxu0
    %v4739 = vadd.f32 %v4633, %v4738
    %v4740 = vpop.f32.mrf.mxu0
    %v4741 = vadd.f32 %v4637, %v4740
    %4742 = vdwg.mxu0
    %4743 = vmatprep.subr.bf16.mxu0 0
    %4744 = vmatpush1.bf16.msra.mxu0 0
    %4745 = vmatprep.subr.bf16.mxu0 0
    %4746 = vmatpush1.bf16.msra.mxu0 0
    %4747 = vmatprep.subr.bf16.mxu0 0
    %4748 = vmatpush1.bf16.msra.mxu0 0
    %4749 = vmatprep.subr.bf16.mxu0 0
    %4750 = vmatpush1.bf16.msra.mxu0 0
    %4751 = vmatprep.subr.bf16.mxu0 0
    %4752 = vmatpush1.bf16.msra.mxu0 0
    %4753 = vmatprep.subr.bf16.mxu0 0
    %4754 = vmatpush1.bf16.msra.mxu0 0
    %4755 = vmatprep.subr.bf16.mxu0 %v4681
    %4756 = vmatpush1.bf16.msra.mxu0 %v4680
    %4757 = vmatprep.subr.bf16.mxu0 %v4677
    %4758 = vmatpush1.bf16.msra.mxu0 %v4676
    %4759 = vmatprep.subr.bf16.mxu0 0
    %4760 = vmatpush2.bf16.msra.mxu0 0
    %4761 = vmatprep.subr.bf16.mxu0 0
    %4762 = vmatpush2.bf16.msra.mxu0 0
    %4763 = vmatprep.subr.bf16.mxu0 0
    %4764 = vmatpush2.bf16.msra.mxu0 0
    %4765 = vmatprep.subr.bf16.mxu0 0
    %4766 = vmatpush2.bf16.msra.mxu0 0
    %4767 = vmatprep.subr.bf16.mxu0 0
    %4768 = vmatpush2.bf16.msra.mxu0 0
    %4769 = vmatprep.subr.bf16.mxu0 0
    %4770 = vmatpush2.bf16.msra.mxu0 0
    %4771 = vmatprep.subr.bf16.mxu0 0
    %4772 = vmatpush2.bf16.msra.mxu0 0
    %4773 = vmatprep.subr.bf16.mxu0 0
    %4774 = vmatpush2.bf16.msra.mxu0 0
    %4775 = vmatprep.mubr.bf16.mxu0 0
    %4776 = vmatmul.mubr.bf16.gmra.mxu0 %v3564
    %v4777 = vpop.f32.mrf.mxu0
    %v4778 = vadd.f32 %v4641, %v4777
    %v4779 = vpop.f32.mrf.mxu0
    %v4780 = vadd.f32 %v4645, %v4779
    %v4781 = vpop.f32.mrf.mxu0
    %v4782 = vadd.f32 %v4641, %v4781
    %v4783 = vpop.f32.mrf.mxu0
    %v4784 = vadd.f32 %v4645, %v4783
    %4785 = vmatprep.mubr.bf16.mxu0 0
    %4786 = vmatmul.mubr.bf16.gmra.mxu0 %v3567
    %v4787 = vpop.f32.mrf.mxu0
    %v4788 = vadd.f32 %v4641, %v4787
    %v4789 = vpop.f32.mrf.mxu0
    %v4790 = vadd.f32 %v4645, %v4789
    %v4791 = vpop.f32.mrf.mxu0
    %v4792 = vadd.f32 %v4641, %v4791
    %v4793 = vpop.f32.mrf.mxu0
    %v4794 = vadd.f32 %v4645, %v4793
    %4795 = vdwg.mxu0
    %v4796 = vmax.f32 %v4725, 0.0
    %v4797 = vmax.f32 %v4727, 0.0
    %v4798 = vmax.f32 %v4778, 0.0
    %v4799 = vmax.f32 %v4780, 0.0
    %v4800 = vmax.f32 %v4729, 0.0
    %v4801 = vmax.f32 %v4731, 0.0
    %v4802 = vmax.f32 %v4782, 0.0
    %v4803 = vmax.f32 %v4784, 0.0
    %v4804 = vmax.f32 %v4735, 0.0
    %v4805 = vmax.f32 %v4737, 0.0
    %v4806 = vmax.f32 %v4788, 0.0
    %v4807 = vmax.f32 %v4790, 0.0
    %v4808 = vmax.f32 %v4739, 0.0
    %v4809 = vmax.f32 %v4741, 0.0
    %v4810 = vmax.f32 %v4792, 0.0
    %v4811 = vmax.f32 %v4794, 0.0
    %v4812 = vpack.c.bf16 %v4800, %v4796
    %v4813 = vpack.c.bf16 %v4801, %v4797
    %v4814 = vpack.c.bf16 %v4802, %v4798
    %v4815 = vpack.c.bf16 %v4803, %v4799
    %v4816 = vpack.c.bf16 %v4808, %v4804
    %v4817 = vpack.c.bf16 %v4809, %v4805
    %v4818 = vpack.c.bf16 %v4810, %v4806
    %v4819 = vpack.c.bf16 %v4811, %v4807
    %s4820 = scalar_lea.vmem %s13, 512
    %v4821 = vld [vmem:[%s4820] sm:$0xf]
    %v4822 = vld [vmem:[%s4820 + $0x4] sm:$0xf]
    %v4823 = vld [vmem:[%s4820 + $0x8] sm:$0xf]
    %v4824 = vld [vmem:[%s4820 + $0xc] sm:$0xf]
    %v4825 = vld [vmem:[%s4820 + $0x10] sm:$0xf]
    %v4826 = vld [vmem:[%s4820 + $0x14] sm:$0xf]
    %v4827 = vld [vmem:[%s4820 + $0x18] sm:$0xf]
    %v4828 = vld [vmem:[%s4820 + $0x1c] sm:$0xf]
    %v4829 = vld [vmem:[%s4820 + $0x20] sm:$0xf]
    %v4830 = vld [vmem:[%s4820 + $0x24] sm:$0xf]
    %v4831 = vld [vmem:[%s4820 + $0x28] sm:$0xf]
    %v4832 = vld [vmem:[%s4820 + $0x2c] sm:$0xf]
    %v4833 = vld [vmem:[%s4820 + $0x30] sm:$0xf]
    %v4834 = vld [vmem:[%s4820 + $0x34] sm:$0xf]
    %v4835 = vld [vmem:[%s4820 + $0x38] sm:$0xf]
    %v4836 = vld [vmem:[%s4820 + $0x3c] sm:$0xf]
    %v4837 = vld [vmem:[%s4820 + $0x40] sm:$0xf]
    %v4838 = vld [vmem:[%s4820 + $0x44] sm:$0xf]
    %v4839 = vld [vmem:[%s4820 + $0x48] sm:$0xf]
    %v4840 = vld [vmem:[%s4820 + $0x4c] sm:$0xf]
    %v4841 = vld [vmem:[%s4820 + $0x50] sm:$0xf]
    %v4842 = vld [vmem:[%s4820 + $0x54] sm:$0xf]
    %v4843 = vld [vmem:[%s4820 + $0x58] sm:$0xf]
    %v4844 = vld [vmem:[%s4820 + $0x5c] sm:$0xf]
    %v4845 = vld [vmem:[%s4820 + $0x60] sm:$0xf]
    %v4846 = vld [vmem:[%s4820 + $0x64] sm:$0xf]
    %v4847 = vld [vmem:[%s4820 + $0x68] sm:$0xf]
    %v4848 = vld [vmem:[%s4820 + $0x6c] sm:$0xf]
    %v4849 = vld [vmem:[%s4820 + $0x70] sm:$0xf]
    %v4850 = vld [vmem:[%s4820 + $0x74] sm:$0xf]
    %v4851 = vld [vmem:[%s4820 + $0x78] sm:$0xf]
    %v4852 = vld [vmem:[%s4820 + $0x7c] sm:$0xf]
    %v4853 = vld [vmem:[%s4820 + $0x80] sm:$0xf]
    %v4854 = vld [vmem:[%s4820 + $0x84] sm:$0xf]
    %v4855 = vld [vmem:[%s4820 + $0x88] sm:$0xf]
    %v4856 = vld [vmem:[%s4820 + $0x8c] sm:$0xf]
    %v4857 = vld [vmem:[%s4820 + $0x90] sm:$0xf]
    %v4858 = vld [vmem:[%s4820 + $0x94] sm:$0xf]
    %v4859 = vld [vmem:[%s4820 + $0x98] sm:$0xf]
    %v4860 = vld [vmem:[%s4820 + $0x9c] sm:$0xf]
    %v4861 = vld [vmem:[%s4820 + $0xa0] sm:$0xf]
    %v4862 = vld [vmem:[%s4820 + $0xa4] sm:$0xf]
    %v4863 = vld [vmem:[%s4820 + $0xa8] sm:$0xf]
    %v4864 = vld [vmem:[%s4820 + $0xac] sm:$0xf]
    %v4865 = vld [vmem:[%s4820 + $0xb0] sm:$0xf]
    %v4866 = vld [vmem:[%s4820 + $0xb4] sm:$0xf]
    %v4867 = vld [vmem:[%s4820 + $0xb8] sm:$0xf]
    %v4868 = vld [vmem:[%s4820 + $0xbc] sm:$0xf]
    %v4869 = vld [vmem:[%s4820 + $0xc0] sm:$0xf]
    %v4870 = vld [vmem:[%s4820 + $0xc4] sm:$0xf]
    %v4871 = vld [vmem:[%s4820 + $0xc8] sm:$0xf]
    %v4872 = vld [vmem:[%s4820 + $0xcc] sm:$0xf]
    %v4873 = vld [vmem:[%s4820 + $0xd0] sm:$0xf]
    %v4874 = vld [vmem:[%s4820 + $0xd4] sm:$0xf]
    %v4875 = vld [vmem:[%s4820 + $0xd8] sm:$0xf]
    %v4876 = vld [vmem:[%s4820 + $0xdc] sm:$0xf]
    %v4877 = vld [vmem:[%s4820 + $0xe0] sm:$0xf]
    %v4878 = vld [vmem:[%s4820 + $0xe4] sm:$0xf]
    %v4879 = vld [vmem:[%s4820 + $0xe8] sm:$0xf]
    %v4880 = vld [vmem:[%s4820 + $0xec] sm:$0xf]
    %v4881 = vld [vmem:[%s4820 + $0xf0] sm:$0xf]
    %v4882 = vld [vmem:[%s4820 + $0xf4] sm:$0xf]
    %v4883 = vld [vmem:[%s4820 + $0xf8] sm:$0xf]
    %v4884 = vld [vmem:[%s4820 + $0xfc] sm:$0xf]
    %v4949 = vunpack.c.l.b16 %v4821
    %v4950 = vunpack.c.l.b16 %v4822
    %v4951 = vunpack.c.l.b16 %v4823
    %v4952 = vunpack.c.l.b16 %v4824
    %v4953 = vunpack.c.l.b16 %v4825
    %v4954 = vunpack.c.l.b16 %v4826
    %v4955 = vunpack.c.l.b16 %v4827
    %v4956 = vunpack.c.l.b16 %v4828
    %v4957 = vunpack.c.l.b16 %v4829
    %v4958 = vunpack.c.l.b16 %v4830
    %v4959 = vunpack.c.l.b16 %v4831
    %v4960 = vunpack.c.l.b16 %v4832
    %v4961 = vunpack.c.l.b16 %v4833
    %v4962 = vunpack.c.l.b16 %v4834
    %v4963 = vunpack.c.l.b16 %v4835
    %v4964 = vunpack.c.l.b16 %v4836
    %v4965 = vunpack.c.l.b16 %v4837
    %v4966 = vunpack.c.l.b16 %v4838
    %v4967 = vunpack.c.l.b16 %v4839
    %v4968 = vunpack.c.l.b16 %v4840
    %v4969 = vunpack.c.l.b16 %v4841
    %v4970 = vunpack.c.l.b16 %v4842
    %v4971 = vunpack.c.l.b16 %v4843
    %v4972 = vunpack.c.l.b16 %v4844
    %v4973 = vunpack.c.l.b16 %v4845
    %v4974 = vunpack.c.l.b16 %v4846
    %v4975 = vunpack.c.l.b16 %v4847
    %v4976 = vunpack.c.l.b16 %v4848
    %v4977 = vunpack.c.l.b16 %v4849
    %v4978 = vunpack.c.l.b16 %v4850
    %v4979 = vunpack.c.l.b16 %v4851
    %v4980 = vunpack.c.l.b16 %v4852
    %v4981 = vunpack.c.l.b16 %v4853
    %v4982 = vunpack.c.l.b16 %v4854
    %v4983 = vunpack.c.l.b16 %v4855
    %v4984 = vunpack.c.l.b16 %v4856
    %v4985 = vunpack.c.l.b16 %v4857
    %v4986 = vunpack.c.l.b16 %v4858
    %v4987 = vunpack.c.l.b16 %v4859
    %v4988 = vunpack.c.l.b16 %v4860
    %v4989 = vunpack.c.l.b16 %v4861
    %v4990 = vunpack.c.l.b16 %v4862
    %v4991 = vunpack.c.l.b16 %v4863
    %v4992 = vunpack.c.l.b16 %v4864
    %v4993 = vunpack.c.l.b16 %v4865
    %v4994 = vunpack.c.l.b16 %v4866
    %v4995 = vunpack.c.l.b16 %v4867
    %v4996 = vunpack.c.l.b16 %v4868
    %v4997 = vunpack.c.l.b16 %v4869
    %v4998 = vunpack.c.l.b16 %v4870
    %v4999 = vunpack.c.l.b16 %v4871
    %v5000 = vunpack.c.l.b16 %v4872
    %v5001 = vunpack.c.l.b16 %v4873
    %v5002 = vunpack.c.l.b16 %v4874
    %v5003 = vunpack.c.l.b16 %v4875
    %v5004 = vunpack.c.l.b16 %v4876
    %v5005 = vunpack.c.l.b16 %v4877
    %v5006 = vunpack.c.l.b16 %v4878
    %v5007 = vunpack.c.l.b16 %v4879
    %v5008 = vunpack.c.l.b16 %v4880
    %v5009 = vunpack.c.l.b16 %v4881
    %v5010 = vunpack.c.l.b16 %v4882
    %v5011 = vunpack.c.l.b16 %v4883
    %v5012 = vunpack.c.l.b16 %v4884
    %v5013 = vpack.c.b16 %v4950, %v4949
    %v5014 = vpack.c.b16 %v4952, %v4951
    %v5015 = vpack.c.b16 %v4954, %v4953
    %v5016 = vpack.c.b16 %v4956, %v4955
    %v5017 = vpack.c.b16 %v4958, %v4957
    %v5018 = vpack.c.b16 %v4960, %v4959
    %v5019 = vpack.c.b16 %v4962, %v4961
    %v5020 = vpack.c.b16 %v4964, %v4963
    %v5021 = vpack.c.b16 %v4966, %v4965
    %v5022 = vpack.c.b16 %v4968, %v4967
    %v5023 = vpack.c.b16 %v4970, %v4969
    %v5024 = vpack.c.b16 %v4972, %v4971
    %v5025 = vpack.c.b16 %v4974, %v4973
    %v5026 = vpack.c.b16 %v4976, %v4975
    %v5027 = vpack.c.b16 %v4978, %v4977
    %v5028 = vpack.c.b16 %v4980, %v4979
    %v5029 = vpack.c.b16 %v4982, %v4981
    %v5030 = vpack.c.b16 %v4984, %v4983
    %v5031 = vpack.c.b16 %v4986, %v4985
    %v5032 = vpack.c.b16 %v4988, %v4987
    %v5033 = vpack.c.b16 %v4990, %v4989
    %v5034 = vpack.c.b16 %v4992, %v4991
    %v5035 = vpack.c.b16 %v4994, %v4993
    %v5036 = vpack.c.b16 %v4996, %v4995
    %v5037 = vpack.c.b16 %v4998, %v4997
    %v5038 = vpack.c.b16 %v5000, %v4999
    %v5039 = vpack.c.b16 %v5002, %v5001
    %v5040 = vpack.c.b16 %v5004, %v5003
    %v5041 = vpack.c.b16 %v5006, %v5005
    %v5042 = vpack.c.b16 %v5008, %v5007
    %v5043 = vpack.c.b16 %v5010, %v5009
    %v5044 = vpack.c.b16 %v5012, %v5011
    %5077 = vmatprep.subr.bf16.mxu0 0
    %5078 = vmatpush1.bf16.msra.mxu0 %v5020
    %5079 = vmatprep.subr.bf16.mxu0 0
    %5080 = vmatpush1.bf16.msra.mxu0 %v5019
    %5081 = vmatprep.subr.bf16.mxu0 0
    %5082 = vmatpush1.bf16.msra.mxu0 %v5018
    %5083 = vmatprep.subr.bf16.mxu0 0
    %5084 = vmatpush1.bf16.msra.mxu0 %v5017
    %5085 = vmatprep.subr.bf16.mxu0 0
    %5086 = vmatpush1.bf16.msra.mxu0 %v5016
    %5087 = vmatprep.subr.bf16.mxu0 0
    %5088 = vmatpush1.bf16.msra.mxu0 %v5015
    %5089 = vmatprep.subr.bf16.mxu0 0
    %5090 = vmatpush1.bf16.msra.mxu0 %v5014
    %5091 = vmatprep.subr.bf16.mxu0 0
    %5092 = vmatpush1.bf16.msra.mxu0 %v5013
    %5093 = vmatprep.subr.bf16.mxu0 0
    %5094 = vmatpush2.bf16.msra.mxu0 %v5028
    %5095 = vmatprep.subr.bf16.mxu0 0
    %5096 = vmatpush2.bf16.msra.mxu0 %v5027
    %5097 = vmatprep.subr.bf16.mxu0 0
    %5098 = vmatpush2.bf16.msra.mxu0 %v5026
    %5099 = vmatprep.subr.bf16.mxu0 0
    %5100 = vmatpush2.bf16.msra.mxu0 %v5025
    %5101 = vmatprep.subr.bf16.mxu0 0
    %5102 = vmatpush2.bf16.msra.mxu0 %v5024
    %5103 = vmatprep.subr.bf16.mxu0 0
    %5104 = vmatpush2.bf16.msra.mxu0 %v5023
    %5105 = vmatprep.subr.bf16.mxu0 0
    %5106 = vmatpush2.bf16.msra.mxu0 %v5022
    %5107 = vmatprep.subr.bf16.mxu0 0
    %5108 = vmatpush2.bf16.msra.mxu0 %v5021
    %5109 = vmatprep.mubr.bf16.mxu0 %v4813
    %5110 = vmatmul.mubr.bf16.gmra.mxu0 %v4812
    %v5111 = vpop.f32.mrf.mxu0
    %v5112 = vadd.f32 0.0, %v5111
    %v5113 = vpop.f32.mrf.mxu0
    %v5114 = vpop.f32.mrf.mxu0
    %v5115 = vadd.f32 0.0, %v5114
    %v5116 = vpop.f32.mrf.mxu0
    %5117 = vmatprep.mubr.bf16.mxu0 %v4817
    %5118 = vmatmul.mubr.bf16.gmra.mxu0 %v4816
    %v5119 = vpop.f32.mrf.mxu0
    %v5120 = vadd.f32 0.0, %v5119
    %v5121 = vpop.f32.mrf.mxu0
    %v5122 = vpop.f32.mrf.mxu0
    %v5123 = vadd.f32 0.0, %v5122
    %v5124 = vpop.f32.mrf.mxu0
    %5125 = vdwg.mxu0
    %5126 = vmatprep.subr.bf16.mxu0 0
    %5127 = vmatpush1.bf16.msra.mxu0 %v5036
    %5128 = vmatprep.subr.bf16.mxu0 0
    %5129 = vmatpush1.bf16.msra.mxu0 %v5035
    %5130 = vmatprep.subr.bf16.mxu0 0
    %5131 = vmatpush1.bf16.msra.mxu0 %v5034
    %5132 = vmatprep.subr.bf16.mxu0 0
    %5133 = vmatpush1.bf16.msra.mxu0 %v5033
    %5134 = vmatprep.subr.bf16.mxu0 0
    %5135 = vmatpush1.bf16.msra.mxu0 %v5032
    %5136 = vmatprep.subr.bf16.mxu0 0
    %5137 = vmatpush1.bf16.msra.mxu0 %v5031
    %5138 = vmatprep.subr.bf16.mxu0 0
    %5139 = vmatpush1.bf16.msra.mxu0 %v5030
    %5140 = vmatprep.subr.bf16.mxu0 0
    %5141 = vmatpush1.bf16.msra.mxu0 %v5029
    %5142 = vmatprep.subr.bf16.mxu0 0
    %5143 = vmatpush2.bf16.msra.mxu0 %v5044
    %5144 = vmatprep.subr.bf16.mxu0 0
    %5145 = vmatpush2.bf16.msra.mxu0 %v5043
    %5146 = vmatprep.subr.bf16.mxu0 0
    %5147 = vmatpush2.bf16.msra.mxu0 %v5042
    %5148 = vmatprep.subr.bf16.mxu0 0
    %5149 = vmatpush2.bf16.msra.mxu0 %v5041
    %5150 = vmatprep.subr.bf16.mxu0 0
    %5151 = vmatpush2.bf16.msra.mxu0 %v5040
    %5152 = vmatprep.subr.bf16.mxu0 0
    %5153 = vmatpush2.bf16.msra.mxu0 %v5039
    %5154 = vmatprep.subr.bf16.mxu0 0
    %5155 = vmatpush2.bf16.msra.mxu0 %v5038
    %5156 = vmatprep.subr.bf16.mxu0 0
    %5157 = vmatpush2.bf16.msra.mxu0 %v5037
    %5158 = vmatprep.mubr.bf16.mxu0 %v4815
    %5159 = vmatmul.mubr.bf16.gmra.mxu0 %v4814
    %v5160 = vpop.f32.mrf.mxu0
    %v5161 = vadd.f32 %v5112, %v5160
    %v5162 = vpop.f32.mrf.mxu0
    %v5163 = vpop.f32.mrf.mxu0
    %v5164 = vadd.f32 %v5115, %v5163
    %v5165 = vpop.f32.mrf.mxu0
    %5166 = vmatprep.mubr.bf16.mxu0 %v4819
    %5167 = vmatmul.mubr.bf16.gmra.mxu0 %v4818
    %v5168 = vpop.f32.mrf.mxu0
    %v5169 = vadd.f32 %v5120, %v5168
    %v5170 = vpop.f32.mrf.mxu0
    %v5171 = vpop.f32.mrf.mxu0
    %v5172 = vadd.f32 %v5123, %v5171
    %v5173 = vpop.f32.mrf.mxu0
    %5174 = vdwg.mxu0
    %v5175 = vadd.f32 %v4614, %v5161
    %v5176 = vadd.f32 %v4615, %v5164
    %v5177 = vadd.f32 %v4616, %v5169
    %v5178 = vadd.f32 %v4617, %v5172
    %s5179 = scalar_lea.vmem %s11, 48
    %v5180 = vld [vmem:[%s5179] sm:$0xff]
    %v5181 = vld [vmem:[%s5179 + $0x8] sm:$0xff]
    %v5182 = vld [vmem:[%s5179 + $0x40] sm:$0xff]
    %v5183 = vld [vmem:[%s5179 + $0x48] sm:$0xff]
    %v5184 = vld [vmem:[%s5179 + $0x80] sm:$0xff]
    %v5185 = vld [vmem:[%s5179 + $0x88] sm:$0xff]
    %v5186 = vld [vmem:[%s5179 + $0xc0] sm:$0xff]
    %v5187 = vld [vmem:[%s5179 + $0xc8] sm:$0xff]
    %s5188 = scalar_lea.vmem %s12, 12
    %v5189 = vld [vmem:[%s5188] sm:$0xf]
    %v5191 = vlaneseq
    %v5192 = vshrl.u32 %v5191, 7
    %v5193 = vsub.s32 0, %v5192
    %v5194 = vrot.slane %v5189, %v5193
    %v5195 = vlaneseq
    %v5196 = vshrl.u32 %v5195, 7
    %v5197 = vsub.s32 1, %v5196
    %v5198 = vrot.slane %v5189, %v5197
    %v5199 = vlaneseq
    %v5200 = vshrl.u32 %v5199, 7
    %v5201 = vsub.s32 2, %v5200
    %v5202 = vrot.slane %v5189, %v5201
    %v5203 = vlaneseq
    %v5204 = vshrl.u32 %v5203, 7
    %v5205 = vsub.s32 3, %v5204
    %v5206 = vrot.slane %v5189, %v5205
    %v5219 = vunpack.c.l.b16 %v5180
    %v5220 = vunpack.c.h.b16 %v5180
    %v5221 = vunpack.c.l.b16 %v5181
    %v5222 = vunpack.c.h.b16 %v5181
    %v5223 = vunpack.c.l.b16 %v5182
    %v5224 = vunpack.c.h.b16 %v5182
    %v5225 = vunpack.c.l.b16 %v5183
    %v5226 = vunpack.c.h.b16 %v5183
    %v5227 = vunpack.c.l.b16 %v5184
    %v5228 = vunpack.c.h.b16 %v5184
    %v5229 = vunpack.c.l.b16 %v5185
    %v5230 = vunpack.c.h.b16 %v5185
    %v5231 = vunpack.c.l.b16 %v5186
    %v5232 = vunpack.c.h.b16 %v5186
    %v5233 = vunpack.c.l.b16 %v5187
    %v5234 = vunpack.c.h.b16 %v5187
    %v5235 = vpack.c.b16 %v5223, %v5219
    %v5236 = vpack.c.b16 %v5224, %v5220
    %v5237 = vpack.c.b16 %v5225, %v5221
    %v5238 = vpack.c.b16 %v5226, %v5222
    %v5239 = vpack.c.b16 %v5231, %v5227
    %v5240 = vpack.c.b16 %v5232, %v5228
    %v5241 = vpack.c.b16 %v5233, %v5229
    %v5242 = vpack.c.b16 %v5234, %v5230
    %5251 = vmatprep.subr.bf16.mxu0 0
    %5252 = vmatpush1.bf16.msra.mxu0 0
    %5253 = vmatprep.subr.bf16.mxu0 0
    %5254 = vmatpush1.bf16.msra.mxu0 0
    %5255 = vmatprep.subr.bf16.mxu0 0
    %5256 = vmatpush1.bf16.msra.mxu0 0
    %5257 = vmatprep.subr.bf16.mxu0 0
    %5258 = vmatpush1.bf16.msra.mxu0 0
    %5259 = vmatprep.subr.bf16.mxu0 0
    %5260 = vmatpush1.bf16.msra.mxu0 0
    %5261 = vmatprep.subr.bf16.mxu0 0
    %5262 = vmatpush1.bf16.msra.mxu0 0
    %5263 = vmatprep.subr.bf16.mxu0 %v5240
    %5264 = vmatpush1.bf16.msra.mxu0 %v5239
    %5265 = vmatprep.subr.bf16.mxu0 %v5236
    %5266 = vmatpush1.bf16.msra.mxu0 %v5235
    %5267 = vmatprep.subr.bf16.mxu0 0
    %5268 = vmatpush2.bf16.msra.mxu0 0
    %5269 = vmatprep.subr.bf16.mxu0 0
    %5270 = vmatpush2.bf16.msra.mxu0 0
    %5271 = vmatprep.subr.bf16.mxu0 0
    %5272 = vmatpush2.bf16.msra.mxu0 0
    %5273 = vmatprep.subr.bf16.mxu0 0
    %5274 = vmatpush2.bf16.msra.mxu0 0
    %5275 = vmatprep.subr.bf16.mxu0 0
    %5276 = vmatpush2.bf16.msra.mxu0 0
    %5277 = vmatprep.subr.bf16.mxu0 0
    %5278 = vmatpush2.bf16.msra.mxu0 0
    %5279 = vmatprep.subr.bf16.mxu0 0
    %5280 = vmatpush2.bf16.msra.mxu0 0
    %5281 = vmatprep.subr.bf16.mxu0 0
    %5282 = vmatpush2.bf16.msra.mxu0 0
    %5283 = vmatprep.mubr.bf16.mxu0 0
    %5284 = vmatmul.mubr.bf16.gmra.mxu0 %v3564
    %v5285 = vpop.f32.mrf.mxu0
    %v5286 = vadd.f32 %v5194, %v5285
    %v5287 = vpop.f32.mrf.mxu0
    %v5288 = vadd.f32 %v5198, %v5287
    %v5289 = vpop.f32.mrf.mxu0
    %v5290 = vadd.f32 %v5194, %v5289
    %v5291 = vpop.f32.mrf.mxu0
    %v5292 = vadd.f32 %v5198, %v5291
    %5293 = vmatprep.mubr.bf16.mxu0 0
    %5294 = vmatmul.mubr.bf16.gmra.mxu0 %v3567
    %v5295 = vpop.f32.mrf.mxu0
    %v5296 = vadd.f32 %v5194, %v5295
    %v5297 = vpop.f32.mrf.mxu0
    %v5298 = vadd.f32 %v5198, %v5297
    %v5299 = vpop.f32.mrf.mxu0
    %v5300 = vadd.f32 %v5194, %v5299
    %v5301 = vpop.f32.mrf.mxu0
    %v5302 = vadd.f32 %v5198, %v5301
    %5303 = vdwg.mxu0
    %5304 = vmatprep.subr.bf16.mxu0 0
    %5305 = vmatpush1.bf16.msra.mxu0 0
    %5306 = vmatprep.subr.bf16.mxu0 0
    %5307 = vmatpush1.bf16.msra.mxu0 0
    %5308 = vmatprep.subr.bf16.mxu0 0
    %5309 = vmatpush1.bf16.msra.mxu0 0
    %5310 = vmatprep.subr.bf16.mxu0 0
    %5311 = vmatpush1.bf16.msra.mxu0 0
    %5312 = vmatprep.subr.bf16.mxu0 0
    %5313 = vmatpush1.bf16.msra.mxu0 0
    %5314 = vmatprep.subr.bf16.mxu0 0
    %5315 = vmatpush1.bf16.msra.mxu0 0
    %5316 = vmatprep.subr.bf16.mxu0 %v5242
    %5317 = vmatpush1.bf16.msra.mxu0 %v5241
    %5318 = vmatprep.subr.bf16.mxu0 %v5238
    %5319 = vmatpush1.bf16.msra.mxu0 %v5237
    %5320 = vmatprep.subr.bf16.mxu0 0
    %5321 = vmatpush2.bf16.msra.mxu0 0
    %5322 = vmatprep.subr.bf16.mxu0 0
    %5323 = vmatpush2.bf16.msra.mxu0 0
    %5324 = vmatprep.subr.bf16.mxu0 0
    %5325 = vmatpush2.bf16.msra.mxu0 0
    %5326 = vmatprep.subr.bf16.mxu0 0
    %5327 = vmatpush2.bf16.msra.mxu0 0
    %5328 = vmatprep.subr.bf16.mxu0 0
    %5329 = vmatpush2.bf16.msra.mxu0 0
    %5330 = vmatprep.subr.bf16.mxu0 0
    %5331 = vmatpush2.bf16.msra.mxu0 0
    %5332 = vmatprep.subr.bf16.mxu0 0
    %5333 = vmatpush2.bf16.msra.mxu0 0
    %5334 = vmatprep.subr.bf16.mxu0 0
    %5335 = vmatpush2.bf16.msra.mxu0 0
    %5336 = vmatprep.mubr.bf16.mxu0 0
    %5337 = vmatmul.mubr.bf16.gmra.mxu0 %v3564
    %v5338 = vpop.f32.mrf.mxu0
    %v5339 = vadd.f32 %v5202, %v5338
    %v5340 = vpop.f32.mrf.mxu0
    %v5341 = vadd.f32 %v5206, %v5340
    %v5342 = vpop.f32.mrf.mxu0
    %v5343 = vadd.f32 %v5202, %v5342
    %v5344 = vpop.f32.mrf.mxu0
    %v5345 = vadd.f32 %v5206, %v5344
    %5346 = vmatprep.mubr.bf16.mxu0 0
    %5347 = vmatmul.mubr.bf16.gmra.mxu0 %v3567
    %v5348 = vpop.f32.mrf.mxu0
    %v5349 = vadd.f32 %v5202, %v5348
    %v5350 = vpop.f32.mrf.mxu0
    %v5351 = vadd.f32 %v5206, %v5350
    %v5352 = vpop.f32.mrf.mxu0
    %v5353 = vadd.f32 %v5202, %v5352
    %v5354 = vpop.f32.mrf.mxu0
    %v5355 = vadd.f32 %v5206, %v5354
    %5356 = vdwg.mxu0
    %v5357 = vmax.f32 %v5286, 0.0
    %v5358 = vmax.f32 %v5288, 0.0
    %v5359 = vmax.f32 %v5339, 0.0
    %v5360 = vmax.f32 %v5341, 0.0
    %v5361 = vmax.f32 %v5290, 0.0
    %v5362 = vmax.f32 %v5292, 0.0
    %v5363 = vmax.f32 %v5343, 0.0
    %v5364 = vmax.f32 %v5345, 0.0
    %v5365 = vmax.f32 %v5296, 0.0
    %v5366 = vmax.f32 %v5298, 0.0
    %v5367 = vmax.f32 %v5349, 0.0
    %v5368 = vmax.f32 %v5351, 0.0
    %v5369 = vmax.f32 %v5300, 0.0
    %v5370 = vmax.f32 %v5302, 0.0
    %v5371 = vmax.f32 %v5353, 0.0
    %v5372 = vmax.f32 %v5355, 0.0
    %v5373 = vpack.c.bf16 %v5361, %v5357
    %v5374 = vpack.c.bf16 %v5362, %v5358
    %v5375 = vpack.c.bf16 %v5363, %v5359
    %v5376 = vpack.c.bf16 %v5364, %v5360
    %v5377 = vpack.c.bf16 %v5369, %v5365
    %v5378 = vpack.c.bf16 %v5370, %v5366
    %v5379 = vpack.c.bf16 %v5371, %v5367
    %v5380 = vpack.c.bf16 %v5372, %v5368
    %s5381 = scalar_lea.vmem %s13, 768
    %v5382 = vld [vmem:[%s5381] sm:$0xf]
    %v5383 = vld [vmem:[%s5381 + $0x4] sm:$0xf]
    %v5384 = vld [vmem:[%s5381 + $0x8] sm:$0xf]
    %v5385 = vld [vmem:[%s5381 + $0xc] sm:$0xf]
    %v5386 = vld [vmem:[%s5381 + $0x10] sm:$0xf]
    %v5387 = vld [vmem:[%s5381 + $0x14] sm:$0xf]
    %v5388 = vld [vmem:[%s5381 + $0x18] sm:$0xf]
    %v5389 = vld [vmem:[%s5381 + $0x1c] sm:$0xf]
    %v5390 = vld [vmem:[%s5381 + $0x20] sm:$0xf]
    %v5391 = vld [vmem:[%s5381 + $0x24] sm:$0xf]
    %v5392 = vld [vmem:[%s5381 + $0x28] sm:$0xf]
    %v5393 = vld [vmem:[%s5381 + $0x2c] sm:$0xf]
    %v5394 = vld [vmem:[%s5381 + $0x30] sm:$0xf]
    %v5395 = vld [vmem:[%s5381 + $0x34] sm:$0xf]
    %v5396 = vld [vmem:[%s5381 + $0x38] sm:$0xf]
    %v5397 = vld [vmem:[%s5381 + $0x3c] sm:$0xf]
    %v5398 = vld [vmem:[%s5381 + $0x40] sm:$0xf]
    %v5399 = vld [vmem:[%s5381 + $0x44] sm:$0xf]
    %v5400 = vld [vmem:[%s5381 + $0x48] sm:$0xf]
    %v5401 = vld [vmem:[%s5381 + $0x4c] sm:$0xf]
    %v5402 = vld [vmem:[%s5381 + $0x50] sm:$0xf]
    %v5403 = vld [vmem:[%s5381 + $0x54] sm:$0xf]
    %v5404 = vld [vmem:[%s5381 + $0x58] sm:$0xf]
    %v5405 = vld [vmem:[%s5381 + $0x5c] sm:$0xf]
    %v5406 = vld [vmem:[%s5381 + $0x60] sm:$0xf]
    %v5407 = vld [vmem:[%s5381 + $0x64] sm:$0xf]
    %v5408 = vld [vmem:[%s5381 + $0x68] sm:$0xf]
    %v5409 = vld [vmem:[%s5381 + $0x6c] sm:$0xf]
    %v5410 = vld [vmem:[%s5381 + $0x70] sm:$0xf]
    %v5411 = vld [vmem:[%s5381 + $0x74] sm:$0xf]
    %v5412 = vld [vmem:[%s5381 + $0x78] sm:$0xf]
    %v5413 = vld [vmem:[%s5381 + $0x7c] sm:$0xf]
    %v5414 = vld [vmem:[%s5381 + $0x80] sm:$0xf]
    %v5415 = vld [vmem:[%s5381 + $0x84] sm:$0xf]
    %v5416 = vld [vmem:[%s5381 + $0x88] sm:$0xf]
    %v5417 = vld [vmem:[%s5381 + $0x8c] sm:$0xf]
    %v5418 = vld [vmem:[%s5381 + $0x90] sm:$0xf]
    %v5419 = vld [vmem:[%s5381 + $0x94] sm:$0xf]
    %v5420 = vld [vmem:[%s5381 + $0x98] sm:$0xf]
    %v5421 = vld [vmem:[%s5381 + $0x9c] sm:$0xf]
    %v5422 = vld [vmem:[%s5381 + $0xa0] sm:$0xf]
    %v5423 = vld [vmem:[%s5381 + $0xa4] sm:$0xf]
    %v5424 = vld [vmem:[%s5381 + $0xa8] sm:$0xf]
    %v5425 = vld [vmem:[%s5381 + $0xac] sm:$0xf]
    %v5426 = vld [vmem:[%s5381 + $0xb0] sm:$0xf]
    %v5427 = vld [vmem:[%s5381 + $0xb4] sm:$0xf]
    %v5428 = vld [vmem:[%s5381 + $0xb8] sm:$0xf]
    %v5429 = vld [vmem:[%s5381 + $0xbc] sm:$0xf]
    %v5430 = vld [vmem:[%s5381 + $0xc0] sm:$0xf]
    %v5431 = vld [vmem:[%s5381 + $0xc4] sm:$0xf]
    %v5432 = vld [vmem:[%s5381 + $0xc8] sm:$0xf]
    %v5433 = vld [vmem:[%s5381 + $0xcc] sm:$0xf]
    %v5434 = vld [vmem:[%s5381 + $0xd0] sm:$0xf]
    %v5435 = vld [vmem:[%s5381 + $0xd4] sm:$0xf]
    %v5436 = vld [vmem:[%s5381 + $0xd8] sm:$0xf]
    %v5437 = vld [vmem:[%s5381 + $0xdc] sm:$0xf]
    %v5438 = vld [vmem:[%s5381 + $0xe0] sm:$0xf]
    %v5439 = vld [vmem:[%s5381 + $0xe4] sm:$0xf]
    %v5440 = vld [vmem:[%s5381 + $0xe8] sm:$0xf]
    %v5441 = vld [vmem:[%s5381 + $0xec] sm:$0xf]
    %v5442 = vld [vmem:[%s5381 + $0xf0] sm:$0xf]
    %v5443 = vld [vmem:[%s5381 + $0xf4] sm:$0xf]
    %v5444 = vld [vmem:[%s5381 + $0xf8] sm:$0xf]
    %v5445 = vld [vmem:[%s5381 + $0xfc] sm:$0xf]
    %v5510 = vunpack.c.l.b16 %v5382
    %v5511 = vunpack.c.l.b16 %v5383
    %v5512 = vunpack.c.l.b16 %v5384
    %v5513 = vunpack.c.l.b16 %v5385
    %v5514 = vunpack.c.l.b16 %v5386
    %v5515 = vunpack.c.l.b16 %v5387
    %v5516 = vunpack.c.l.b16 %v5388
    %v5517 = vunpack.c.l.b16 %v5389
    %v5518 = vunpack.c.l.b16 %v5390
    %v5519 = vunpack.c.l.b16 %v5391
    %v5520 = vunpack.c.l.b16 %v5392
    %v5521 = vunpack.c.l.b16 %v5393
    %v5522 = vunpack.c.l.b16 %v5394
    %v5523 = vunpack.c.l.b16 %v5395
    %v5524 = vunpack.c.l.b16 %v5396
    %v5525 = vunpack.c.l.b16 %v5397
    %v5526 = vunpack.c.l.b16 %v5398
    %v5527 = vunpack.c.l.b16 %v5399
    %v5528 = vunpack.c.l.b16 %v5400
    %v5529 = vunpack.c.l.b16 %v5401
    %v5530 = vunpack.c.l.b16 %v5402
    %v5531 = vunpack.c.l.b16 %v5403
    %v5532 = vunpack.c.l.b16 %v5404
    %v5533 = vunpack.c.l.b16 %v5405
    %v5534 = vunpack.c.l.b16 %v5406
    %v5535 = vunpack.c.l.b16 %v5407
    %v5536 = vunpack.c.l.b16 %v5408
    %v5537 = vunpack.c.l.b16 %v5409
    %v5538 = vunpack.c.l.b16 %v5410
    %v5539 = vunpack.c.l.b16 %v5411
    %v5540 = vunpack.c.l.b16 %v5412
    %v5541 = vunpack.c.l.b16 %v5413
    %v5542 = vunpack.c.l.b16 %v5414
    %v5543 = vunpack.c.l.b16 %v5415
    %v5544 = vunpack.c.l.b16 %v5416
    %v5545 = vunpack.c.l.b16 %v5417
    %v5546 = vunpack.c.l.b16 %v5418
    %v5547 = vunpack.c.l.b16 %v5419
    %v5548 = vunpack.c.l.b16 %v5420
    %v5549 = vunpack.c.l.b16 %v5421
    %v5550 = vunpack.c.l.b16 %v5422
    %v5551 = vunpack.c.l.b16 %v5423
    %v5552 = vunpack.c.l.b16 %v5424
    %v5553 = vunpack.c.l.b16 %v5425
    %v5554 = vunpack.c.l.b16 %v5426
    %v5555 = vunpack.c.l.b16 %v5427
    %v5556 = vunpack.c.l.b16 %v5428
    %v5557 = vunpack.c.l.b16 %v5429
    %v5558 = vunpack.c.l.b16 %v5430
    %v5559 = vunpack.c.l.b16 %v5431
    %v5560 = vunpack.c.l.b16 %v5432
    %v5561 = vunpack.c.l.b16 %v5433
    %v5562 = vunpack.c.l.b16 %v5434
    %v5563 = vunpack.c.l.b16 %v5435
    %v5564 = vunpack.c.l.b16 %v5436
    %v5565 = vunpack.c.l.b16 %v5437
    %v5566 = vunpack.c.l.b16 %v5438
    %v5567 = vunpack.c.l.b16 %v5439
    %v5568 = vunpack.c.l.b16 %v5440
    %v5569 = vunpack.c.l.b16 %v5441
    %v5570 = vunpack.c.l.b16 %v5442
    %v5571 = vunpack.c.l.b16 %v5443
    %v5572 = vunpack.c.l.b16 %v5444
    %v5573 = vunpack.c.l.b16 %v5445
    %v5574 = vpack.c.b16 %v5511, %v5510
    %v5575 = vpack.c.b16 %v5513, %v5512
    %v5576 = vpack.c.b16 %v5515, %v5514
    %v5577 = vpack.c.b16 %v5517, %v5516
    %v5578 = vpack.c.b16 %v5519, %v5518
    %v5579 = vpack.c.b16 %v5521, %v5520
    %v5580 = vpack.c.b16 %v5523, %v5522
    %v5581 = vpack.c.b16 %v5525, %v5524
    %v5582 = vpack.c.b16 %v5527, %v5526
    %v5583 = vpack.c.b16 %v5529, %v5528
    %v5584 = vpack.c.b16 %v5531, %v5530
    %v5585 = vpack.c.b16 %v5533, %v5532
    %v5586 = vpack.c.b16 %v5535, %v5534
    %v5587 = vpack.c.b16 %v5537, %v5536
    %v5588 = vpack.c.b16 %v5539, %v5538
    %v5589 = vpack.c.b16 %v5541, %v5540
    %v5590 = vpack.c.b16 %v5543, %v5542
    %v5591 = vpack.c.b16 %v5545, %v5544
    %v5592 = vpack.c.b16 %v5547, %v5546
    %v5593 = vpack.c.b16 %v5549, %v5548
    %v5594 = vpack.c.b16 %v5551, %v5550
    %v5595 = vpack.c.b16 %v5553, %v5552
    %v5596 = vpack.c.b16 %v5555, %v5554
    %v5597 = vpack.c.b16 %v5557, %v5556
    %v5598 = vpack.c.b16 %v5559, %v5558
    %v5599 = vpack.c.b16 %v5561, %v5560
    %v5600 = vpack.c.b16 %v5563, %v5562
    %v5601 = vpack.c.b16 %v5565, %v5564
    %v5602 = vpack.c.b16 %v5567, %v5566
    %v5603 = vpack.c.b16 %v5569, %v5568
    %v5604 = vpack.c.b16 %v5571, %v5570
    %v5605 = vpack.c.b16 %v5573, %v5572
    %5638 = vmatprep.subr.bf16.mxu0 0
    %5639 = vmatpush1.bf16.msra.mxu0 %v5581
    %5640 = vmatprep.subr.bf16.mxu0 0
    %5641 = vmatpush1.bf16.msra.mxu0 %v5580
    %5642 = vmatprep.subr.bf16.mxu0 0
    %5643 = vmatpush1.bf16.msra.mxu0 %v5579
    %5644 = vmatprep.subr.bf16.mxu0 0
    %5645 = vmatpush1.bf16.msra.mxu0 %v5578
    %5646 = vmatprep.subr.bf16.mxu0 0
    %5647 = vmatpush1.bf16.msra.mxu0 %v5577
    %5648 = vmatprep.subr.bf16.mxu0 0
    %5649 = vmatpush1.bf16.msra.mxu0 %v5576
    %5650 = vmatprep.subr.bf16.mxu0 0
    %5651 = vmatpush1.bf16.msra.mxu0 %v5575
    %5652 = vmatprep.subr.bf16.mxu0 0
    %5653 = vmatpush1.bf16.msra.mxu0 %v5574
    %5654 = vmatprep.subr.bf16.mxu0 0
    %5655 = vmatpush2.bf16.msra.mxu0 %v5589
    %5656 = vmatprep.subr.bf16.mxu0 0
    %5657 = vmatpush2.bf16.msra.mxu0 %v5588
    %5658 = vmatprep.subr.bf16.mxu0 0
    %5659 = vmatpush2.bf16.msra.mxu0 %v5587
    %5660 = vmatprep.subr.bf16.mxu0 0
    %5661 = vmatpush2.bf16.msra.mxu0 %v5586
    %5662 = vmatprep.subr.bf16.mxu0 0
    %5663 = vmatpush2.bf16.msra.mxu0 %v5585
    %5664 = vmatprep.subr.bf16.mxu0 0
    %5665 = vmatpush2.bf16.msra.mxu0 %v5584
    %5666 = vmatprep.subr.bf16.mxu0 0
    %5667 = vmatpush2.bf16.msra.mxu0 %v5583
    %5668 = vmatprep.subr.bf16.mxu0 0
    %5669 = vmatpush2.bf16.msra.mxu0 %v5582
    %5670 = vmatprep.mubr.bf16.mxu0 %v5374
    %5671 = vmatmul.mubr.bf16.gmra.mxu0 %v5373
    %v5672 = vpop.f32.mrf.mxu0
    %v5673 = vadd.f32 0.0, %v5672
    %v5674 = vpop.f32.mrf.mxu0
    %v5675 = vpop.f32.mrf.mxu0
    %v5676 = vadd.f32 0.0, %v5675
    %v5677 = vpop.f32.mrf.mxu0
    %5678 = vmatprep.mubr.bf16.mxu0 %v5378
    %5679 = vmatmul.mubr.bf16.gmra.mxu0 %v5377
    %v5680 = vpop.f32.mrf.mxu0
    %v5681 = vadd.f32 0.0, %v5680
    %v5682 = vpop.f32.mrf.mxu0
    %v5683 = vpop.f32.mrf.mxu0
    %v5684 = vadd.f32 0.0, %v5683
    %v5685 = vpop.f32.mrf.mxu0
    %5686 = vdwg.mxu0
    %5687 = vmatprep.subr.bf16.mxu0 0
    %5688 = vmatpush1.bf16.msra.mxu0 %v5597
    %5689 = vmatprep.subr.bf16.mxu0 0
    %5690 = vmatpush1.bf16.msra.mxu0 %v5596
    %5691 = vmatprep.subr.bf16.mxu0 0
    %5692 = vmatpush1.bf16.msra.mxu0 %v5595
    %5693 = vmatprep.subr.bf16.mxu0 0
    %5694 = vmatpush1.bf16.msra.mxu0 %v5594
    %5695 = vmatprep.subr.bf16.mxu0 0
    %5696 = vmatpush1.bf16.msra.mxu0 %v5593
    %5697 = vmatprep.subr.bf16.mxu0 0
    %5698 = vmatpush1.bf16.msra.mxu0 %v5592
    %5699 = vmatprep.subr.bf16.mxu0 0
    %5700 = vmatpush1.bf16.msra.mxu0 %v5591
    %5701 = vmatprep.subr.bf16.mxu0 0
    %5702 = vmatpush1.bf16.msra.mxu0 %v5590
    %5703 = vmatprep.subr.bf16.mxu0 0
    %5704 = vmatpush2.bf16.msra.mxu0 %v5605
    %5705 = vmatprep.subr.bf16.mxu0 0
    %5706 = vmatpush2.bf16.msra.mxu0 %v5604
    %5707 = vmatprep.subr.bf16.mxu0 0
    %5708 = vmatpush2.bf16.msra.mxu0 %v5603
    %5709 = vmatprep.subr.bf16.mxu0 0
    %5710 = vmatpush2.bf16.msra.mxu0 %v5602
    %5711 = vmatprep.subr.bf16.mxu0 0
    %5712 = vmatpush2.bf16.msra.mxu0 %v5601
    %5713 = vmatprep.subr.bf16.mxu0 0
    %5714 = vmatpush2.bf16.msra.mxu0 %v5600
    %5715 = vmatprep.subr.bf16.mxu0 0
    %5716 = vmatpush2.bf16.msra.mxu0 %v5599
    %5717 = vmatprep.subr.bf16.mxu0 0
    %5718 = vmatpush2.bf16.msra.mxu0 %v5598
    %5719 = vmatprep.mubr.bf16.mxu0 %v5376
    %5720 = vmatmul.mubr.bf16.gmra.mxu0 %v5375
    %v5721 = vpop.f32.mrf.mxu0
    %v5722 = vadd.f32 %v5673, %v5721
    %v5723 = vpop.f32.mrf.mxu0
    %v5724 = vpop.f32.mrf.mxu0
    %v5725 = vadd.f32 %v5676, %v5724
    %v5726 = vpop.f32.mrf.mxu0
    %5727 = vmatprep.mubr.bf16.mxu0 %v5380
    %5728 = vmatmul.mubr.bf16.gmra.mxu0 %v5379
    %v5729 = vpop.f32.mrf.mxu0
    %v5730 = vadd.f32 %v5681, %v5729
    %v5731 = vpop.f32.mrf.mxu0
    %v5732 = vpop.f32.mrf.mxu0
    %v5733 = vadd.f32 %v5684, %v5732
    %v5734 = vpop.f32.mrf.mxu0
    %5735 = vdwg.mxu0
    %v5736 = vadd.f32 %v5175, %v5722
    %v5737 = vadd.f32 %v5176, %v5725
    %v5738 = vadd.f32 %v5177, %v5730
    %v5739 = vadd.f32 %v5178, %v5733
    %v5740 = vadd.f32 %v5736, %v3479
    %v5741 = vadd.f32 %v5737, %v3480
    %v5742 = vadd.f32 %v5738, %v3481
    %v5743 = vadd.f32 %v5739, %v3482
    %v5744 = vld [vmem:[%s15] sm:$0x1]
    %v5745 = vld [vmem:[%s16] sm:$0x1]
    %v5746 = vsel %vm73, %v5740, 0.0
    %5747 = vadd.xlane.f32.xlu0 %v5746
    %v5748 = vpop.xlane.xlu0 %5747
    %v5749 = vsel %vm73, %v5741, 0.0
    %5750 = vadd.xlane.f32.xlu0 %v5749
    %v5751 = vpop.xlane.xlu0 %5750
    %v5752 = vsel %vm73, %v5742, 0.0
    %5753 = vadd.xlane.f32.xlu0 %v5752
    %v5754 = vpop.xlane.xlu0 %5753
    %v5755 = vsel %vm73, %v5743, 0.0
    %5756 = vadd.xlane.f32.xlu0 %v5755
    %v5757 = vpop.xlane.xlu0 %5756
    %v5758 = vmul.f32 %v5748, %v3422
    %v5759 = vmul.f32 %v5751, %v3422
    %v5760 = vmul.f32 %v5754, %v3422
    %v5761 = vmul.f32 %v5757, %v3422
    %v5762 = vsub.f32 %v5740, %v5758
    %v5763 = vsub.f32 %v5741, %v5759
    %v5764 = vsub.f32 %v5742, %v5760
    %v5765 = vsub.f32 %v5743, %v5761
    %v5766 = vmul.f32 %v5762, %v5762
    %v5767 = vmul.f32 %v5763, %v5763
    %v5768 = vmul.f32 %v5764, %v5764
    %v5769 = vmul.f32 %v5765, %v5765
    %v5770 = vsel %vm73, %v5766, 0.0
    %5771 = vadd.xlane.f32.xlu0 %v5770
    %v5772 = vpop.xlane.xlu0 %5771
    %v5773 = vsel %vm73, %v5767, 0.0
    %5774 = vadd.xlane.f32.xlu0 %v5773
    %v5775 = vpop.xlane.xlu0 %5774
    %v5776 = vsel %vm73, %v5768, 0.0
    %5777 = vadd.xlane.f32.xlu0 %v5776
    %v5778 = vpop.xlane.xlu0 %5777
    %v5779 = vsel %vm73, %v5769, 0.0
    %5780 = vadd.xlane.f32.xlu0 %v5779
    %v5781 = vpop.xlane.xlu0 %5780
    %v5782 = vmul.f32 %v5772, %v3422
    %v5783 = vmul.f32 %v5775, %v3422
    %v5784 = vmul.f32 %v5778, %v3422
    %v5785 = vmul.f32 %v5781, %v3422
    %v5786 = vadd.f32 %v5782, 1e-05
    %v5787 = vadd.f32 %v5783, 1e-05
    %v5788 = vadd.f32 %v5784, 1e-05
    %v5789 = vadd.f32 %v5785, 1e-05
    %v5790 = vrsqrt.pop %v5786
    %v5791 = vrsqrt.pop %v5787
    %v5792 = vrsqrt.pop %v5788
    %v5793 = vrsqrt.pop %v5789
    %v5794 = vmul.f32 %v5762, %v5790
    %v5795 = vmul.f32 %v5763, %v5791
    %v5796 = vmul.f32 %v5764, %v5792
    %v5797 = vmul.f32 %v5765, %v5793
    %v5799 = vlaneseq
    %v5800 = vshrl.u32 %v5799, 7
    %v5801 = vsub.s32 0, %v5800
    %v5802 = vrot.slane %v5744, %v5801
    %v5804 = vmul.f32 %v5794, %v5802
    %v5805 = vmul.f32 %v5795, %v5802
    %v5806 = vmul.f32 %v5796, %v5802
    %v5807 = vmul.f32 %v5797, %v5802
    %v5809 = vlaneseq
    %v5810 = vshrl.u32 %v5809, 7
    %v5811 = vsub.s32 0, %v5810
    %v5812 = vrot.slane %v5745, %v5811
    %v5814 = vadd.f32 %v5804, %v5812
    %v5815 = vadd.f32 %v5805, %v5812
    %v5816 = vadd.f32 %v5806, %v5812
    %v5817 = vadd.f32 %v5807, %v5812
    %5818 = vst.msk [vmem:[#allocation2] sm:$0xff] %vm73, %v5814
    %5819 = vst.msk [vmem:[#allocation2 + $0x8] sm:$0xff] %vm73, %v5815
    %5820 = vst.msk [vmem:[#allocation2 + $0x10] sm:$0xff] %vm73, %v5816
    %5821 = vst.msk [vmem:[#allocation2 + $0x18] sm:$0xff] %vm73, %v5817
    // Predicated region
    $region70: #{tpu_custom_call.1} parent=1 // pred_check
      _
    $region71: #{tpu_custom_call.1} parent=1 // pred_check_branch
      %5823 = sbr.rel (0) target = $region73
    $region72: #{tpu_custom_call.1} parent=1 // pred_region
      %s5825 = ssub.s32 512, 512
      %5826 = vsyncadd [#allocation3], %s5825
      %s5827 = sshll.u32 [#allocation2], 4
      %s5828 = int_to_ptr.vmem [resolvable:$true] %s5827
      %5833 = dma.vmem_to_hbm [thread:$0]  %s5828, 512, %s17, [#allocation3], 128, 128, 8
    $region73: #{tpu_custom_call.1} parent=1 // pred_fallthru
      _
    // Predicated region
    $region74: #{tpu_custom_call.1} parent=1 // pred_check
      _
    $region75: #{tpu_custom_call.1} parent=1 // pred_check_branch
      %5835 = sbr.rel (0) target = $region77
    $region76: #{tpu_custom_call.1} parent=1 // pred_region
      %5836 = dma.done [#allocation3], 512
    $region77: #{tpu_custom_call.1} parent=1 // pred_fallthru
      _
    %5837 = vsyncpa [#allocation3], 1

</llo_original>
